<compile_context>
chip_gen: v7x
topology: tpu7x:2x2x1
jax: 0.10.0
libtpu: 0.0.40
codegen_flags: <defaults>
</compile_context>

<pallas_src>
import functools
import math

import jax
import jax.numpy as jnp
from jax.experimental import pallas as pl
from jax.experimental.pallas import tpu as pltpu


# ----------------------------------------------------------------------------
# helpers
# ----------------------------------------------------------------------------

def _pick_tile(dim, target, multiple):
    """Largest tile <= target that exactly divides `dim` and is a multiple of
    `multiple`; falls back to the full dim (always a legal block shape)."""
    if dim <= target:
        return dim
    t = (target // multiple) * multiple
    while t >= multiple:
        if dim % t == 0:
            return t
        t -= multiple
    return dim


def _ln_f32(x, g, b, eps):
    """LayerNorm matching the PyTorch module: unbiased std, eps added to std."""
    d = x.shape[-1]
    mean = jnp.mean(x, axis=-1, keepdims=True)
    var = jnp.sum((x - mean) ** 2, axis=-1, keepdims=True) * (1.0 / (d - 1))
    inv = pl.reciprocal(jnp.sqrt(var) + eps, approx=True)   # EUP, frees VALU
    return g * (x - mean) * inv + b


# ----------------------------------------------------------------------------
# Pallas kernels
# ----------------------------------------------------------------------------

def _layernorm_kernel(x_ref, g_ref, b_ref, o_ref, *, eps):
    x = x_ref[...].astype(jnp.float32)
    o_ref[...] = _ln_f32(x, g_ref[...], b_ref[...], eps).astype(o_ref.dtype)


def _ln_linear_kernel(x_ref, g_ref, b_ref, w_ref, bias_ref, o_ref, *, eps):
    """Fused LayerNorm + matmul + bias (LN recomputed per N-tile, hidden under MXU)."""
    x = x_ref[...].astype(jnp.float32)
    xn = _ln_f32(x, g_ref[...], b_ref[...], eps)
    y = jnp.dot(xn.astype(w_ref.dtype), w_ref[...],
                preferred_element_type=jnp.float32) + bias_ref[...]
    o_ref[...] = y.astype(o_ref.dtype)


def _linear_kernel(x_ref, w_ref, b_ref, o_ref, *, relu):
    y = jnp.dot(x_ref[...], w_ref[...],
                preferred_element_type=jnp.float32) + b_ref[...]
    if relu:
        y = jnp.maximum(y, 0.0)
    o_ref[...] = y.astype(o_ref.dtype)


def _ln_ffn_kernel(x_ref, g_ref, b_ref, w1_ref, b1_ref, w2_ref, b2_ref,
                   o_ref, xn_ref, acc_ref, *, eps):
    """Fused LN + W1 + bias + ReLU + W2 + residual; d_ff is the reduction axis."""
    j = pl.program_id(1)

    @pl.when(j == 0)
    def _init():
        x = x_ref[...].astype(jnp.float32)
        xn_ref[...] = _ln_f32(x, g_ref[...], b_ref[...], eps)
        acc_ref[...] = jnp.zeros_like(acc_ref)

    h1 = jnp.dot(xn_ref[...].astype(w1_ref.dtype), w1_ref[...],
                 preferred_element_type=jnp.float32) + b1_ref[...]
    h1 = jnp.maximum(h1, 0.0)
    acc_ref[...] += jnp.dot(h1.astype(w2_ref.dtype), w2_ref[...],
                            preferred_element_type=jnp.float32)

    @pl.when(j == pl.num_programs(1) - 1)
    def _finalize():
        # residual add fused into the epilogue (x is the pre-norm input)
        y = x_ref[...].astype(jnp.float32) + acc_ref[...] + b2_ref[...]
        o_ref[...] = y.astype(o_ref.dtype)


def _mha_kernel(q_ref, k_ref, v_ref, m_ref, wo_ref, bo_ref, r_ref, o_ref, *, h):
    """All heads of one batch element per grid step; heads are column slices of
    D = h*dk, so the output store is a single lane-dense (Tq, D) tile.
    Fuses the output projection W_o (decomposed as sum_i head_i @ W_o[i*dk:(i+1)*dk, :],
    identical to concat+matmul), the output bias and the residual add."""
    q = q_ref[0]                         # (Tq, D) native dtype -> MXU fast path
    k = k_ref[0]                         # (Tk, D)
    v = v_ref[0]                         # (Tk, D)
    mask = m_ref[0]                      # (Tq, Tk), one copy per batch element
    wo = wo_ref[...]                     # (D, D)
    tq, d = q.shape
    dk = d // h
    scale = 1.0 / math.sqrt(dk)

    y = jnp.zeros((tq, d), jnp.float32)
    for i in range(h):                   # h is static; stays in VMEM/vregs
        sl = slice(i * dk, (i + 1) * dk)
        s = jnp.dot(q[:, sl], k[:, sl].T,
                    preferred_element_type=jnp.float32) * scale
        s = jnp.where(mask == 0, -1e9, s)            # masked_fill(mask==0, -1e9)
        s = s - jnp.max(s, axis=-1, keepdims=True)   # numerically stable softmax
        p = jnp.exp(s)
        p = p * pl.reciprocal(jnp.sum(p, axis=-1, keepdims=True), approx=True)
        o_h = jnp.dot(p.astype(v.dtype), v[:, sl],
                      preferred_element_type=jnp.float32)
        y = y + jnp.dot(o_h.astype(wo.dtype), wo[sl, :],
                        preferred_element_type=jnp.float32)
    y = y + bo_ref[...] + r_ref[0].astype(jnp.float32)   # fused bias + residual
    o_ref[0] = y.astype(o_ref.dtype)


# ----------------------------------------------------------------------------
# pallas_call wrappers
# ----------------------------------------------------------------------------

def layernorm(x, gamma, beta, eps=1e-6):
    B, T, D = x.shape
    M = B * T
    tm = _pick_tile(M, 256, 8)
    out = pl.pallas_call(
        functools.partial(_layernorm_kernel, eps=eps),
        out_shape=jax.ShapeDtypeStruct((M, D), x.dtype),
        grid=(M // tm,),
        in_specs=[pl.BlockSpec((tm, D), lambda i: (i, 0)),
                  pl.BlockSpec((1, D), lambda i: (0, 0)),
                  pl.BlockSpec((1, D), lambda i: (0, 0))],
        out_specs=pl.BlockSpec((tm, D), lambda i: (i, 0)),
        compiler_params=pltpu.CompilerParams(dimension_semantics=("parallel",)),
    )(x.reshape(M, D), gamma.reshape(1, D), beta.reshape(1, D))
    return out.reshape(B, T, D)


def ln_linear(x2d, gamma, beta, w, b, eps=1e-6):
    M, K = x2d.shape
    N = w.shape[1]
    tm = _pick_tile(M, 256, 8)
    tn = _pick_tile(N, 512, 128)
    return pl.pallas_call(
        functools.partial(_ln_linear_kernel, eps=eps),
        out_shape=jax.ShapeDtypeStruct((M, N), x2d.dtype),
        grid=(M // tm, N // tn),
        in_specs=[pl.BlockSpec((tm, K), lambda i, j: (i, 0)),
                  pl.BlockSpec((1, K), lambda i, j: (0, 0)),
                  pl.BlockSpec((1, K), lambda i, j: (0, 0)),
                  pl.BlockSpec((K, tn), lambda i, j: (0, j)),
                  pl.BlockSpec((1, tn), lambda i, j: (0, j))],
        out_specs=pl.BlockSpec((tm, tn), lambda i, j: (i, j)),
        compiler_params=pltpu.CompilerParams(
            dimension_semantics=("parallel", "parallel")),
    )(x2d, gamma.reshape(1, K), beta.reshape(1, K), w, b.reshape(1, N))


def linear(x2d, w, b, relu=False):
    M, K = x2d.shape
    N = w.shape[1]
    tm = _pick_tile(M, 256, 8)
    tn = _pick_tile(N, 512, 128)
    return pl.pallas_call(
        functools.partial(_linear_kernel, relu=relu),
        out_shape=jax.ShapeDtypeStruct((M, N), x2d.dtype),
        grid=(M // tm, N // tn),
        in_specs=[pl.BlockSpec((tm, K), lambda i, j: (i, 0)),
                  pl.BlockSpec((K, tn), lambda i, j: (0, j)),
                  pl.BlockSpec((1, tn), lambda i, j: (0, j))],
        out_specs=pl.BlockSpec((tm, tn), lambda i, j: (i, j)),
        compiler_params=pltpu.CompilerParams(
            dimension_semantics=("parallel", "parallel")),
    )(x2d, w, b.reshape(1, N))


def ln_ffn(x, gamma, beta, w1, b1, w2, b2, eps=1e-6):
    """x + W2(relu(W1(LN(x)) + b1)) + b2, fused in one kernel."""
    B, T, D = x.shape
    M = B * T
    d_ff = w1.shape[1]
    tm = _pick_tile(M, 256, 8)
    tf = _pick_tile(d_ff, 512, 128)
    out = pl.pallas_call(
        functools.partial(_ln_ffn_kernel, eps=eps),
        out_shape=jax.ShapeDtypeStruct((M, D), x.dtype),
        grid=(M // tm, d_ff // tf),
        in_specs=[pl.BlockSpec((tm, D), lambda i, j: (i, 0)),
                  pl.BlockSpec((1, D), lambda i, j: (0, 0)),
                  pl.BlockSpec((1, D), lambda i, j: (0, 0)),
                  pl.BlockSpec((D, tf), lambda i, j: (0, j)),
                  pl.BlockSpec((1, tf), lambda i, j: (0, j)),
                  pl.BlockSpec((tf, D), lambda i, j: (j, 0)),
                  pl.BlockSpec((1, D), lambda i, j: (0, 0))],
        out_specs=pl.BlockSpec((tm, D), lambda i, j: (i, 0)),
        scratch_shapes=[pltpu.VMEM((tm, D), jnp.float32),   # LN(x), computed once
                        pltpu.VMEM((tm, D), jnp.float32)],  # f32 accumulator
        compiler_params=pltpu.CompilerParams(
            dimension_semantics=("parallel", "arbitrary")),
    )(x.reshape(M, D), gamma.reshape(1, D), beta.reshape(1, D),
      w1, b1.reshape(1, d_ff), w2, b2.reshape(1, D))
    return out.reshape(B, T, D)


def multihead_attention(q, k, v, mask, wo, bo, resid, h):
    """q/k/v: (B, T, D) with heads as column slices.  Returns resid + W_o(attn)."""
    B, Tq, D = q.shape
    Tk = k.shape[1]
    mask_b = jnp.broadcast_to(mask, (B, Tq, Tk)).astype(q.dtype)  # per batch, not per head
    return pl.pallas_call(
        functools.partial(_mha_kernel, h=h),
        out_shape=jax.ShapeDtypeStruct((B, Tq, D), q.dtype),
        grid=(B,),
        in_specs=[pl.BlockSpec((1, Tq, D), lambda b: (b, 0, 0)),
                  pl.BlockSpec((1, Tk, D), lambda b: (b, 0, 0)),
                  pl.BlockSpec((1, Tk, D), lambda b: (b, 0, 0)),
                  pl.BlockSpec((1, Tq, Tk), lambda b: (b, 0, 0)),
                  pl.BlockSpec((D, D), lambda b: (0, 0)),
                  pl.BlockSpec((1, D), lambda b: (0, 0)),
                  pl.BlockSpec((1, Tq, D), lambda b: (b, 0, 0))],
        out_specs=pl.BlockSpec((1, Tq, D), lambda b: (b, 0, 0)),
        compiler_params=pltpu.CompilerParams(dimension_semantics=("parallel",)),
    )(q, k, v, mask_b, wo, bo.reshape(1, D), resid)


# ----------------------------------------------------------------------------
# Encoder / Decoder layers and full model forward
# ----------------------------------------------------------------------------

def encoder_layer(x, mask, p, h):
    B, T, D = x.shape
    x2 = x.reshape(B * T, D)
    # sublayer 0: x + self_attn(norm(x)) — fused LN + QKV projection
    qkv = ln_linear(x2, p["ln0_g"], p["ln0_b"], p["attn"]["w_qkv"], p["attn"]["b_qkv"])
    q = qkv[:, :D].reshape(B, T, D)
    k = qkv[:, D:2 * D].reshape(B, T, D)
    v = qkv[:, 2 * D:].reshape(B, T, D)
    x = multihead_attention(q, k, v, mask, p["attn"]["wo"], p["attn"]["bo"], x, h)
    # sublayer 1: x + ffn(norm(x)) — fully fused
    x = ln_ffn(x, p["ln1_g"], p["ln1_b"],
               p["ffn"]["w1"], p["ffn"]["b1"], p["ffn"]["w2"], p["ffn"]["b2"])
    return x


def decoder_layer(x, memory, src_mask, tgt_mask, p, h):
    B, Tq, D = x.shape
    Tk = memory.shape[1]
    # sublayer 0: self-attention
    x2 = x.reshape(B * Tq, D)
    qkv = ln_linear(x2, p["ln0_g"], p["ln0_b"],
                    p["self_attn"]["w_qkv"], p["self_attn"]["b_qkv"])
    q = qkv[:, :D].reshape(B, Tq, D)
    k = qkv[:, D:2 * D].reshape(B, Tq, D)
    v = qkv[:, 2 * D:].reshape(B, Tq, D)
    x = multihead_attention(q, k, v, tgt_mask,
                            p["self_attn"]["wo"], p["self_attn"]["bo"], x, h)
    # sublayer 1: cross-attention (Q from norm(x); K/V from raw memory)
    x2 = x.reshape(B * Tq, D)
    q = ln_linear(x2, p["ln1_g"], p["ln1_b"],
                  p["src_attn"]["wq"], p["src_attn"]["bq"]).reshape(B, Tq, D)
    kv = linear(memory.reshape(B * Tk, D), p["src_attn"]["w_kv"], p["src_attn"]["b_kv"])
    k = kv[:, :D].reshape(B, Tk, D)
    v = kv[:, D:].reshape(B, Tk, D)
    x = multihead_attention(q, k, v, src_mask,
                            p["src_attn"]["wo"], p["src_attn"]["bo"], x, h)
    # sublayer 2: feed-forward
    x = ln_ffn(x, p["ln2_g"], p["ln2_b"],
               p["ffn"]["w1"], p["ffn"]["b1"], p["ffn"]["w2"], p["ffn"]["b2"])
    return x


def transformer_forward(src_tokens, tgt_tokens, src_mask, tgt_mask, params, h):
    d_model = params["src_emb"].shape[1]
    scale = math.sqrt(d_model)
    pe = params["pe"]
    # TODO(synk): token-embedding gather + positional-encoding add are plain-JAX
    # glue (a gather has no clean rectangular BlockSpec); dropout = eval identity.
    src = jnp.take(params["src_emb"], src_tokens, axis=0) * scale
    src = src + pe[None, : src_tokens.shape[1], :]
    tgt = jnp.take(params["tgt_emb"], tgt_tokens, axis=0) * scale
    tgt = tgt + pe[None, : tgt_tokens.shape[1], :]

    x = src
    for lp in params["enc_layers"]:
        x = encoder_layer(x, src_mask, lp, h)
    memory = layernorm(x, params["enc_ln_g"], params["enc_ln_b"])

    y = tgt
    for lp in params["dec_layers"]:
        y = decoder_layer(y, memory, src_mask, tgt_mask, lp, h)
    return layernorm(y, params["dec_ln_g"], params["dec_ln_b"])


# ----------------------------------------------------------------------------
# Deterministic parameter construction + demo
# ----------------------------------------------------------------------------

def _dense(key, shape, scale=0.1):
    return scale * jax.random.normal(key, shape, jnp.float32)


def _init_attn(key, d_model):
    ks = jax.random.split(key, 8)
    wq, bq = _dense(ks[0], (d_model, d_model)), _dense(ks[1], (d_model,))
    wk, bk = _dense(ks[2], (d_model, d_model)), _dense(ks[3], (d_model,))
    wv, bv = _dense(ks[4], (d_model, d_model)), _dense(ks[5], (d_model,))
    wo, bo = _dense(ks[6], (d_model, d_model)), _dense(ks[7], (d_model,))
    # Per-head W_q/W_k/W_v (d_model -> d_k) concatenated along the output dim;
    # fused (D,3D)/(D,2D) variants avoid reading the activations three times.
    return {"wq": wq, "bq": bq,
            "w_kv": jnp.concatenate([wk, wv], axis=1),
            "b_kv": jnp.concatenate([bk, bv]),
            "w_qkv": jnp.concatenate([wq, wk, wv], axis=1),
            "b_qkv": jnp.concatenate([bq, bk, bv]),
            "wo": wo, "bo": bo}


def _init_ffn(key, d_model, d_ff):
    ks = jax.random.split(key, 4)
    return {"w1": _dense(ks[0], (d_model, d_ff)), "b1": _dense(ks[1], (d_ff,)),
            "w2": _dense(ks[2], (d_ff, d_model)), "b2": _dense(ks[3], (d_model,))}


def _init_encoder_layer(key, d_model, d_ff):
    k1, k2 = jax.random.split(key)
    ones = jnp.ones((d_model,), jnp.float32)
    zeros = jnp.zeros((d_model,), jnp.float32)
    return {"attn": _init_attn(k1, d_model), "ffn": _init_ffn(k2, d_model, d_ff),
            "ln0_g": ones, "ln0_b": zeros, "ln1_g": ones, "ln1_b": zeros}


def _init_decoder_layer(key, d_model, d_ff):
    k1, k2, k3 = jax.random.split(key, 3)
    ones = jnp.ones((d_model,), jnp.float32)
    zeros = jnp.zeros((d_model,), jnp.float32)
    return {"self_attn": _init_attn(k1, d_model), "src_attn": _init_attn(k2, d_model),
            "ffn": _init_ffn(k3, d_model, d_ff),
            "ln0_g": ones, "ln0_b": zeros, "ln1_g": ones, "ln1_b": zeros,
            "ln2_g": ones, "ln2_b": zeros}


def _make_pe(max_len, d_model):
    pos = jnp.arange(max_len, dtype=jnp.float32)[:, None]
    div = 1.0 / (10000.0 ** (jnp.arange(0, d_model, 2, dtype=jnp.float32) / d_model))
    pe = jnp.zeros((max_len, d_model), jnp.float32)
    pe = pe.at[:, 0::2].set(jnp.sin(pos * div))
    pe = pe.at[:, 1::2].set(jnp.cos(pos * div))
    return pe


def init_params(key, src_vocab, tgt_vocab, n_layers, d_model, d_ff, max_len=256):
    keys = jax.random.split(key, 2 * n_layers + 2)
    ones = jnp.ones((d_model,), jnp.float32)
    zeros = jnp.zeros((d_model,), jnp.float32)
    return {
        "src_emb": _dense(keys[0], (src_vocab, d_model), scale=1.0),
        "tgt_emb": _dense(keys[1], (tgt_vocab, d_model), scale=1.0),
        "pe": _make_pe(max_len, d_model),
        "enc_layers": [_init_encoder_layer(keys[2 + i], d_model, d_ff)
                       for i in range(n_layers)],
        "dec_layers": [_init_decoder_layer(keys[2 + n_layers + i], d_model, d_ff)
                       for i in range(n_layers)],
        "enc_ln_g": ones, "enc_ln_b": zeros,
        "dec_ln_g": ones, "dec_ln_b": zeros,
    }


if __name__ == "__main__":
    src_vocab, tgt_vocab = 64, 64
    n_layers, d_model, d_ff, n_heads = 2, 64, 128, 4
    B, T_src, T_tgt = 2, 8, 8

    key = jax.random.PRNGKey(0)
    k_params, k_src, k_tgt = jax.random.split(key, 3)

    src = jax.random.randint(k_src, (B, T_src), 0, src_vocab, dtype=jnp.int32)
    tgt = jax.random.randint(k_tgt, (B, T_tgt), 0, tgt_vocab, dtype=jnp.int32)

    # src_mask: (B, 1, T_src) all-ones; tgt_mask: causal (B, T_tgt, T_tgt)
    src_mask = jnp.ones((B, 1, T_src), jnp.float32)
    tgt_mask = jnp.broadcast_to(
        jnp.tril(jnp.ones((T_tgt, T_tgt), jnp.float32))[None], (B, T_tgt, T_tgt))

    params = init_params(k_params, src_vocab, tgt_vocab, n_layers, d_model, d_ff)

    fwd = jax.jit(functools.partial(transformer_forward, h=n_heads))
    out = jax.block_until_ready(fwd(src, tgt, src_mask, tgt_mask, params))
    assert out.shape == (B, T_tgt, d_model) and out.dtype == jnp.float32
    print("KERNEL_OK")
</pallas_src>

<mosaic_0001>
module attributes {stable_mosaic.version = 11 : i64} {
  func.func @_ln_linear_kernel(%arg0: i32, %arg1: i32, %arg2: memref<16x64xf32, #tpu.memory_space<vmem>>, %arg3: memref<1x64xf32, #tpu.memory_space<vmem>>, %arg4: memref<1x64xf32, #tpu.memory_space<vmem>>, %arg5: memref<64x192xf32, #tpu.memory_space<vmem>>, %arg6: memref<1x192xf32, #tpu.memory_space<vmem>>, %arg7: memref<16x192xf32, #tpu.memory_space<vmem>>) attributes {dimension_semantics = [#tpu.dimension_semantics<parallel>, #tpu.dimension_semantics<parallel>], iteration_bounds = array<i64: 1, 1>, scalar_prefetch = 0 : i64, scratch_operands = 0 : i64, tpu.core_type = #tpu.core_type<tc>, window_params = [{transform_indices = @transform_0, window_bounds = array<i64: 16, 64>}, {pipeline_mode = #tpu.pipeline_mode<synchronous>, transform_indices = @transform_1, window_bounds = array<i64: 1, 64>}, {pipeline_mode = #tpu.pipeline_mode<synchronous>, transform_indices = @transform_2, window_bounds = array<i64: 1, 64>}, {transform_indices = @transform_3, window_bounds = array<i64: 64, 192>}, {transform_indices = @transform_4, window_bounds = array<i64: 1, 192>}, {transform_indices = @transform_5, window_bounds = array<i64: 16, 192>}]} {
    %c0 = arith.constant 0 : index
    %c0_0 = arith.constant 0 : index
    %0 = vector.load %arg2[%c0, %c0_0] : memref<16x64xf32, #tpu.memory_space<vmem>>, vector<16x64xf32>
    %c0_1 = arith.constant 0 : index
    %c0_2 = arith.constant 0 : index
    %1 = vector.load %arg3[%c0_1, %c0_2] : memref<1x64xf32, #tpu.memory_space<vmem>>, vector<1x64xf32>
    %c0_3 = arith.constant 0 : index
    %c0_4 = arith.constant 0 : index
    %2 = vector.load %arg4[%c0_3, %c0_4] : memref<1x64xf32, #tpu.memory_space<vmem>>, vector<1x64xf32>
    %cst = arith.constant dense<0.000000e+00> : vector<16xf32>
    %3 = vector.multi_reduction <add>, %0, %cst [1] : vector<16x64xf32> to vector<16xf32>
    %4 = vector.shape_cast %3 : vector<16xf32> to vector<16x1xf32>
    %cst_5 = arith.constant 6.400000e+01 : f32
    %5 = vector.broadcast %cst_5 : f32 to vector<16x1xf32>
    %6 = arith.divf %4, %5 : vector<16x1xf32>
    %7 = vector.broadcast %6 : vector<16x1xf32> to vector<16x64xf32>
    %8 = arith.subf %0, %7 : vector<16x64xf32>
    %9 = arith.mulf %8, %8 : vector<16x64xf32>
    %cst_6 = arith.constant dense<0.000000e+00> : vector<16xf32>
    %10 = vector.multi_reduction <add>, %9, %cst_6 [1] : vector<16x64xf32> to vector<16xf32>
    %11 = vector.shape_cast %10 : vector<16xf32> to vector<16x1xf32>
    %cst_7 = arith.constant 0.0158730168 : f32
    %12 = vector.broadcast %cst_7 : f32 to vector<16x1xf32>
    %13 = arith.mulf %11, %12 : vector<16x1xf32>
    %14 = math.sqrt %13 : vector<16x1xf32>
    %cst_8 = arith.constant 9.99999997E-7 : f32
    %15 = vector.broadcast %cst_8 : f32 to vector<16x1xf32>
    %16 = arith.addf %14, %15 : vector<16x1xf32>
    %17 = tpu.reciprocal %16 {approx = true} : vector<16x1xf32> -> vector<16x1xf32>
    %18 = vector.broadcast %6 : vector<16x1xf32> to vector<16x64xf32>
    %19 = arith.subf %0, %18 : vector<16x64xf32>
    %20 = vector.broadcast %1 : vector<1x64xf32> to vector<16x64xf32>
    %21 = arith.mulf %20, %19 : vector<16x64xf32>
    %22 = vector.broadcast %17 : vector<16x1xf32> to vector<16x64xf32>
    %23 = arith.mulf %21, %22 : vector<16x64xf32>
    %24 = vector.broadcast %2 : vector<1x64xf32> to vector<16x64xf32>
    %25 = arith.addf %23, %24 : vector<16x64xf32>
    %c0_9 = arith.constant 0 : index
    %c0_10 = arith.constant 0 : index
    %26 = vector.load %arg5[%c0_9, %c0_10] : memref<64x192xf32, #tpu.memory_space<vmem>>, vector<64x192xf32>
    %cst_11 = arith.constant dense<0.000000e+00> : vector<16x192xf32>
    %27 = tpu.matmul %25, %26, %cst_11 {dimension_numbers = #tpu.dot_dimension_numbers<[1], [0], [0], [1], [0, 0, 1, 1], [], []>} : vector<16x64xf32>, vector<64x192xf32>, vector<16x192xf32> -> vector<16x192xf32>
    %c0_12 = arith.constant 0 : index
    %c0_13 = arith.constant 0 : index
    %28 = vector.load %arg6[%c0_12, %c0_13] : memref<1x192xf32, #tpu.memory_space<vmem>>, vector<1x192xf32>
    %29 = vector.broadcast %28 : vector<1x192xf32> to vector<16x192xf32>
    %30 = arith.addf %27, %29 : vector<16x192xf32>
    %c0_14 = arith.constant 0 : index
    %c0_15 = arith.constant 0 : index
    %31 = vector.load %arg7[%c0_14, %c0_15] : memref<16x192xf32, #tpu.memory_space<vmem>>, vector<16x192xf32>
    tpu.vector_store %arg7[%c0_14, %c0_15], %30 {strides = array<i32>} : memref<16x192xf32, #tpu.memory_space<vmem>>, vector<16x192xf32>,
    return
  }
  func.func @transform_0(%arg0: i32, %arg1: i32) -> (i32, i32) {
    %c0_i32 = arith.constant 0 : i32
    %c0_i32_0 = arith.constant 0 : i32
    return %arg0, %c0_i32 : i32, i32
  }
  func.func @transform_1(%arg0: i32, %arg1: i32) -> (i32, i32) {
    %c0_i32 = arith.constant 0 : i32
    %c0_i32_0 = arith.constant 0 : i32
    %c0_i32_1 = arith.constant 0 : i32
    return %c0_i32, %c0_i32_0 : i32, i32
  }
  func.func @transform_2(%arg0: i32, %arg1: i32) -> (i32, i32) {
    %c0_i32 = arith.constant 0 : i32
    %c0_i32_0 = arith.constant 0 : i32
    %c0_i32_1 = arith.constant 0 : i32
    return %c0_i32, %c0_i32_0 : i32, i32
  }
  func.func @transform_3(%arg0: i32, %arg1: i32) -> (i32, i32) {
    %c0_i32 = arith.constant 0 : i32
    %c0_i32_0 = arith.constant 0 : i32
    return %c0_i32, %arg1 : i32, i32
  }
  func.func @transform_4(%arg0: i32, %arg1: i32) -> (i32, i32) {
    %c0_i32 = arith.constant 0 : i32
    %c0_i32_0 = arith.constant 0 : i32
    return %c0_i32, %arg1 : i32, i32
  }
  func.func @transform_5(%arg0: i32, %arg1: i32) -> (i32, i32) {
    %c0_i32 = arith.constant 0 : i32
    return %arg0, %arg1 : i32, i32
  }
}

module attributes {stable_mosaic.version = 11 : i64} {
  func.func @_ln_ffn_kernel(%arg0: i32, %arg1: i32, %arg2: memref<16x64xf32, #tpu.memory_space<vmem>>, %arg3: memref<1x64xf32, #tpu.memory_space<vmem>>, %arg4: memref<1x64xf32, #tpu.memory_space<vmem>>, %arg5: memref<64x128xf32, #tpu.memory_space<vmem>>, %arg6: memref<1x128xf32, #tpu.memory_space<vmem>>, %arg7: memref<128x64xf32, #tpu.memory_space<vmem>>, %arg8: memref<1x64xf32, #tpu.memory_space<vmem>>, %arg9: memref<16x64xf32, #tpu.memory_space<vmem>>, %arg10: memref<16x64xf32, #tpu.memory_space<vmem>>, %arg11: memref<16x64xf32, #tpu.memory_space<vmem>>) attributes {dimension_semantics = [#tpu.dimension_semantics<parallel>, #tpu.dimension_semantics<arbitrary>], iteration_bounds = array<i64: 1, 1>, scalar_prefetch = 0 : i64, scratch_operands = 2 : i64, tpu.core_type = #tpu.core_type<tc>, window_params = [{transform_indices = @transform_0, window_bounds = array<i64: 16, 64>}, {pipeline_mode = #tpu.pipeline_mode<synchronous>, transform_indices = @transform_1, window_bounds = array<i64: 1, 64>}, {pipeline_mode = #tpu.pipeline_mode<synchronous>, transform_indices = @transform_2, window_bounds = array<i64: 1, 64>}, {transform_indices = @transform_3, window_bounds = array<i64: 64, 128>}, {transform_indices = @transform_4, window_bounds = array<i64: 1, 128>}, {transform_indices = @transform_5, window_bounds = array<i64: 128, 64>}, {pipeline_mode = #tpu.pipeline_mode<synchronous>, transform_indices = @transform_6, window_bounds = array<i64: 1, 64>}, {transform_indices = @transform_7, window_bounds = array<i64: 16, 64>}]} {
    %c0_i32 = arith.constant 0 : i32
    %0 = arith.cmpi eq, %arg1, %c0_i32 : i32
    %1 = arith.extui %0 : i1 to i32
    %c0_i32_0 = arith.constant 0 : i32
    %2 = arith.cmpi ne, %1, %c0_i32_0 : i32
    scf.if %2 {
      %c0_16 = arith.constant 0 : index
      %c0_17 = arith.constant 0 : index
      %19 = vector.load %arg2[%c0_16, %c0_17] : memref<16x64xf32, #tpu.memory_space<vmem>>, vector<16x64xf32>
      %c0_18 = arith.constant 0 : index
      %c0_19 = arith.constant 0 : index
      %20 = vector.load %arg3[%c0_18, %c0_19] : memref<1x64xf32, #tpu.memory_space<vmem>>, vector<1x64xf32>
      %c0_20 = arith.constant 0 : index
      %c0_21 = arith.constant 0 : index
      %21 = vector.load %arg4[%c0_20, %c0_21] : memref<1x64xf32, #tpu.memory_space<vmem>>, vector<1x64xf32>
      %cst_22 = arith.constant dense<0.000000e+00> : vector<16xf32>
      %22 = vector.multi_reduction <add>, %19, %cst_22 [1] : vector<16x64xf32> to vector<16xf32>
      %23 = vector.shape_cast %22 : vector<16xf32> to vector<16x1xf32>
      %cst_23 = arith.constant 6.400000e+01 : f32
      %24 = vector.broadcast %cst_23 : f32 to vector<16x1xf32>
      %25 = arith.divf %23, %24 : vector<16x1xf32>
      %26 = vector.broadcast %25 : vector<16x1xf32> to vector<16x64xf32>
      %27 = arith.subf %19, %26 : vector<16x64xf32>
      %28 = arith.mulf %27, %27 : vector<16x64xf32>
      %cst_24 = arith.constant dense<0.000000e+00> : vector<16xf32>
      %29 = vector.multi_reduction <add>, %28, %cst_24 [1] : vector<16x64xf32> to vector<16xf32>
      %30 = vector.shape_cast %29 : vector<16xf32> to vector<16x1xf32>
      %cst_25 = arith.constant 0.0158730168 : f32
      %31 = vector.broadcast %cst_25 : f32 to vector<16x1xf32>
      %32 = arith.mulf %30, %31 : vector<16x1xf32>
      %33 = math.sqrt %32 : vector<16x1xf32>
      %cst_26 = arith.constant 9.99999997E-7 : f32
      %34 = vector.broadcast %cst_26 : f32 to vector<16x1xf32>
      %35 = arith.addf %33, %34 : vector<16x1xf32>
      %36 = tpu.reciprocal %35 {approx = true} : vector<16x1xf32> -> vector<16x1xf32>
      %37 = vector.broadcast %25 : vector<16x1xf32> to vector<16x64xf32>
      %38 = arith.subf %19, %37 : vector<16x64xf32>
      %39 = vector.broadcast %20 : vector<1x64xf32> to vector<16x64xf32>
      %40 = arith.mulf %39, %38 : vector<16x64xf32>
      %41 = vector.broadcast %36 : vector<16x1xf32> to vector<16x64xf32>
      %42 = arith.mulf %40, %41 : vector<16x64xf32>
      %43 = vector.broadcast %21 : vector<1x64xf32> to vector<16x64xf32>
      %44 = arith.addf %42, %43 : vector<16x64xf32>
      %c0_27 = arith.constant 0 : index
      %c0_28 = arith.constant 0 : index
      %45 = vector.load %arg10[%c0_27, %c0_28] : memref<16x64xf32, #tpu.memory_space<vmem>>, vector<16x64xf32>
      tpu.vector_store %arg10[%c0_27, %c0_28], %44 {strides = array<i32>} : memref<16x64xf32, #tpu.memory_space<vmem>>, vector<16x64xf32>,
      %cst_29 = arith.constant 0.000000e+00 : f32
      %46 = vector.broadcast %cst_29 : f32 to vector<16x64xf32>
      %c0_30 = arith.constant 0 : index
      %c0_31 = arith.constant 0 : index
      %47 = vector.load %arg11[%c0_30, %c0_31] : memref<16x64xf32, #tpu.memory_space<vmem>>, vector<16x64xf32>
      tpu.vector_store %arg11[%c0_30, %c0_31], %46 {strides = array<i32>} : memref<16x64xf32, #tpu.memory_space<vmem>>, vector<16x64xf32>,
    } else {
    }
    %c0 = arith.constant 0 : index
    %c0_1 = arith.constant 0 : index
    %3 = vector.load %arg10[%c0, %c0_1] : memref<16x64xf32, #tpu.memory_space<vmem>>, vector<16x64xf32>
    %c0_2 = arith.constant 0 : index
    %c0_3 = arith.constant 0 : index
    %4 = vector.load %arg5[%c0_2, %c0_3] : memref<64x128xf32, #tpu.memory_space<vmem>>, vector<64x128xf32>
    %cst = arith.constant dense<0.000000e+00> : vector<16x128xf32>
    %5 = tpu.matmul %3, %4, %cst {dimension_numbers = #tpu.dot_dimension_numbers<[1], [0], [0], [1], [0, 0, 1, 1], [], []>} : vector<16x64xf32>, vector<64x128xf32>, vector<16x128xf32> -> vector<16x128xf32>
    %c0_4 = arith.constant 0 : index
    %c0_5 = arith.constant 0 : index
    %6 = vector.load %arg6[%c0_4, %c0_5] : memref<1x128xf32, #tpu.memory_space<vmem>>, vector<1x128xf32>
    %7 = vector.broadcast %6 : vector<1x128xf32> to vector<16x128xf32>
    %8 = arith.addf %5, %7 : vector<16x128xf32>
    %cst_6 = arith.constant 0.000000e+00 : f32
    %9 = vector.broadcast %cst_6 : f32 to vector<16x128xf32>
    %10 = arith.maximumf %8, %9 : vector<16x128xf32>
    %c0_7 = arith.constant 0 : index
    %c0_8 = arith.constant 0 : index
    %11 = vector.load %arg11[%c0_7, %c0_8] : memref<16x64xf32, #tpu.memory_space<vmem>>, vector<16x64xf32>
    %c0_9 = arith.constant 0 : index
    %c0_10 = arith.constant 0 : index
    %12 = vector.load %arg7[%c0_9, %c0_10] : memref<128x64xf32, #tpu.memory_space<vmem>>, vector<128x64xf32>
    %cst_11 = arith.constant dense<0.000000e+00> : vector<16x64xf32>
    %13 = tpu.matmul %10, %12, %cst_11 {dimension_numbers = #tpu.dot_dimension_numbers<[1], [0], [0], [1], [0, 0, 1, 1], [], []>} : vector<16x128xf32>, vector<128x64xf32>, vector<16x64xf32> -> vector<16x64xf32>
    %14 = arith.addf %11, %13 : vector<16x64xf32>
    %c0_12 = arith.constant 0 : index
    %c0_13 = arith.constant 0 : index
    %15 = vector.load %arg11[%c0_12, %c0_13] : memref<16x64xf32, #tpu.memory_space<vmem>>, vector<16x64xf32>
    tpu.vector_store %arg11[%c0_12, %c0_13], %14 {strides = array<i32>} : memref<16x64xf32, #tpu.memory_space<vmem>>, vector<16x64xf32>,
    %c0_i32_14 = arith.constant 0 : i32
    %16 = arith.cmpi eq, %arg1, %c0_i32_14 : i32
    %17 = arith.extui %16 : i1 to i32
    %c0_i32_15 = arith.constant 0 : i32
    %18 = arith.cmpi ne, %17, %c0_i32_15 : i32
    scf.if %18 {
      %c0_16 = arith.constant 0 : index
      %c0_17 = arith.constant 0 : index
      %19 = vector.load %arg2[%c0_16, %c0_17] : memref<16x64xf32, #tpu.memory_space<vmem>>, vector<16x64xf32>
      %c0_18 = arith.constant 0 : index
      %c0_19 = arith.constant 0 : index
      %20 = vector.load %arg11[%c0_18, %c0_19] : memref<16x64xf32, #tpu.memory_space<vmem>>, vector<16x64xf32>
      %21 = arith.addf %19, %20 : vector<16x64xf32>
      %c0_20 = arith.constant 0 : index
      %c0_21 = arith.constant 0 : index
      %22 = vector.load %arg8[%c0_20, %c0_21] : memref<1x64xf32, #tpu.memory_space<vmem>>, vector<1x64xf32>
      %23 = vector.broadcast %22 : vector<1x64xf32> to vector<16x64xf32>
      %24 = arith.addf %21, %23 : vector<16x64xf32>
      %c0_22 = arith.constant 0 : index
      %c0_23 = arith.constant 0 : index
      %25 = vector.load %arg9[%c0_22, %c0_23] : memref<16x64xf32, #tpu.memory_space<vmem>>, vector<16x64xf32>
      tpu.vector_store %arg9[%c0_22, %c0_23], %24 {strides = array<i32>} : memref<16x64xf32, #tpu.memory_space<vmem>>, vector<16x64xf32>,
    } else {
    }
    return
  }
  func.func @transform_0(%arg0: i32, %arg1: i32) -> (i32, i32) {
    %c0_i32 = arith.constant 0 : i32
    %c0_i32_0 = arith.constant 0 : i32
    return %arg0, %c0_i32 : i32, i32
  }
  func.func @transform_1(%arg0: i32, %arg1: i32) -> (i32, i32) {
    %c0_i32 = arith.constant 0 : i32
    %c0_i32_0 = arith.constant 0 : i32
    %c0_i32_1 = arith.constant 0 : i32
    return %c0_i32, %c0_i32_0 : i32, i32
  }
  func.func @transform_2(%arg0: i32, %arg1: i32) -> (i32, i32) {
    %c0_i32 = arith.constant 0 : i32
    %c0_i32_0 = arith.constant 0 : i32
    %c0_i32_1 = arith.constant 0 : i32
    return %c0_i32, %c0_i32_0 : i32, i32
  }
  func.func @transform_3(%arg0: i32, %arg1: i32) -> (i32, i32) {
    %c0_i32 = arith.constant 0 : i32
    %c0_i32_0 = arith.constant 0 : i32
    return %c0_i32, %arg1 : i32, i32
  }
  func.func @transform_4(%arg0: i32, %arg1: i32) -> (i32, i32) {
    %c0_i32 = arith.constant 0 : i32
    %c0_i32_0 = arith.constant 0 : i32
    return %c0_i32, %arg1 : i32, i32
  }
  func.func @transform_5(%arg0: i32, %arg1: i32) -> (i32, i32) {
    %c0_i32 = arith.constant 0 : i32
    %c0_i32_0 = arith.constant 0 : i32
    return %arg1, %c0_i32 : i32, i32
  }
  func.func @transform_6(%arg0: i32, %arg1: i32) -> (i32, i32) {
    %c0_i32 = arith.constant 0 : i32
    %c0_i32_0 = arith.constant 0 : i32
    %c0_i32_1 = arith.constant 0 : i32
    return %c0_i32, %c0_i32_0 : i32, i32
  }
  func.func @transform_7(%arg0: i32, %arg1: i32) -> (i32, i32) {
    %c0_i32 = arith.constant 0 : i32
    %c0_i32_0 = arith.constant 0 : i32
    return %arg0, %c0_i32 : i32, i32
  }
}

module attributes {stable_mosaic.version = 11 : i64} {
  func.func @_mha_kernel(%arg0: i32, %arg1: memref<1x8x64xf32, #tpu.memory_space<vmem>>, %arg2: memref<1x8x64xf32, #tpu.memory_space<vmem>>, %arg3: memref<1x8x64xf32, #tpu.memory_space<vmem>>, %arg4: memref<1x8x8xf32, #tpu.memory_space<vmem>>, %arg5: memref<64x64xf32, #tpu.memory_space<vmem>>, %arg6: memref<1x64xf32, #tpu.memory_space<vmem>>, %arg7: memref<1x8x64xf32, #tpu.memory_space<vmem>>, %arg8: memref<1x8x64xf32, #tpu.memory_space<vmem>>) attributes {dimension_semantics = [#tpu.dimension_semantics<parallel>], iteration_bounds = array<i64: 2>, scalar_prefetch = 0 : i64, scratch_operands = 0 : i64, tpu.core_type = #tpu.core_type<tc>, window_params = [{transform_indices = @transform_0, window_bounds = array<i64: 1, 8, 64>}, {transform_indices = @transform_1, window_bounds = array<i64: 1, 8, 64>}, {transform_indices = @transform_2, window_bounds = array<i64: 1, 8, 64>}, {transform_indices = @transform_3, window_bounds = array<i64: 1, 8, 8>}, {pipeline_mode = #tpu.pipeline_mode<synchronous>, transform_indices = @transform_4, window_bounds = array<i64: 64, 64>}, {pipeline_mode = #tpu.pipeline_mode<synchronous>, transform_indices = @transform_5, window_bounds = array<i64: 1, 64>}, {transform_indices = @transform_6, window_bounds = array<i64: 1, 8, 64>}, {transform_indices = @transform_7, window_bounds = array<i64: 1, 8, 64>}]} {
    %c0 = arith.constant 0 : index
    %c0_0 = arith.constant 0 : index
    %c0_1 = arith.constant 0 : index
    %0 = vector.load %arg1[%c0, %c0_0, %c0_1] : memref<1x8x64xf32, #tpu.memory_space<vmem>>, vector<1x8x64xf32>
    %1 = vector.shape_cast %0 : vector<1x8x64xf32> to vector<8x64xf32>
    %c0_2 = arith.constant 0 : index
    %c0_3 = arith.constant 0 : index
    %c0_4 = arith.constant 0 : index
    %2 = vector.load %arg2[%c0_2, %c0_3, %c0_4] : memref<1x8x64xf32, #tpu.memory_space<vmem>>, vector<1x8x64xf32>
    %3 = vector.shape_cast %2 : vector<1x8x64xf32> to vector<8x64xf32>
    %c0_5 = arith.constant 0 : index
    %c0_6 = arith.constant 0 : index
    %c0_7 = arith.constant 0 : index
    %4 = vector.load %arg3[%c0_5, %c0_6, %c0_7] : memref<1x8x64xf32, #tpu.memory_space<vmem>>, vector<1x8x64xf32>
    %5 = vector.shape_cast %4 : vector<1x8x64xf32> to vector<8x64xf32>
    %c0_8 = arith.constant 0 : index
    %c0_9 = arith.constant 0 : index
    %c0_10 = arith.constant 0 : index
    %6 = vector.load %arg4[%c0_8, %c0_9, %c0_10] : memref<1x8x8xf32, #tpu.memory_space<vmem>>, vector<1x8x8xf32>
    %7 = vector.shape_cast %6 : vector<1x8x8xf32> to vector<8x8xf32>
    %c0_11 = arith.constant 0 : index
    %c0_12 = arith.constant 0 : index
    %8 = vector.load %arg5[%c0_11, %c0_12] : memref<64x64xf32, #tpu.memory_space<vmem>>, vector<64x64xf32>
    %cst = arith.constant 0.000000e+00 : f32
    %9 = vector.broadcast %cst : f32 to vector<8x64xf32>
    %10 = vector.extract_strided_slice %1 {offsets = [0, 0], sizes = [8, 16], strides = [1, 1]} : vector<8x64xf32> to vector<8x16xf32>
    %11 = vector.extract_strided_slice %3 {offsets = [0, 0], sizes = [8, 16], strides = [1, 1]} : vector<8x64xf32> to vector<8x16xf32>
    %12 = tpu.transpose %11, [1, 0] : vector<8x16xf32> -> vector<16x8xf32>
    %cst_13 = arith.constant dense<0.000000e+00> : vector<8x8xf32>
    %13 = tpu.matmul %10, %12, %cst_13 {dimension_numbers = #tpu.dot_dimension_numbers<[1], [0], [0], [1], [0, 0, 1, 1], [], []>} : vector<8x16xf32>, vector<16x8xf32>, vector<8x8xf32> -> vector<8x8xf32>
    %cst_14 = arith.constant 2.500000e-01 : f32
    %14 = vector.broadcast %cst_14 : f32 to vector<8x8xf32>
    %15 = arith.mulf %13, %14 : vector<8x8xf32>
    %cst_15 = arith.constant 0.000000e+00 : f32
    %16 = vector.broadcast %cst_15 : f32 to vector<8x8xf32>
    %17 = arith.cmpf oeq, %7, %16 : vector<8x8xf32>
    %cst_16 = arith.constant -1.000000e+09 : f32
    %18 = vector.broadcast %cst_16 : f32 to vector<8x8xf32>
    %19 = arith.select %17, %18, %15 : vector<8x8xi1>, vector<8x8xf32>
    %cst_17 = arith.constant dense<0xFF800000> : vector<8xf32>
    %20 = vector.multi_reduction <maximumf>, %19, %cst_17 [1] : vector<8x8xf32> to vector<8xf32>
    %21 = vector.shape_cast %20 : vector<8xf32> to vector<8x1xf32>
    %22 = vector.broadcast %21 : vector<8x1xf32> to vector<8x8xf32>
    %23 = arith.subf %19, %22 : vector<8x8xf32>
    %24 = math.exp %23 : vector<8x8xf32>
    %cst_18 = arith.constant dense<0.000000e+00> : vector<8xf32>
    %25 = vector.multi_reduction <add>, %24, %cst_18 [1] : vector<8x8xf32> to vector<8xf32>
    %26 = vector.shape_cast %25 : vector<8xf32> to vector<8x1xf32>
    %27 = tpu.reciprocal %26 {approx = true} : vector<8x1xf32> -> vector<8x1xf32>
    %28 = vector.broadcast %27 : vector<8x1xf32> to vector<8x8xf32>
    %29 = arith.mulf %24, %28 : vector<8x8xf32>
    %30 = vector.extract_strided_slice %5 {offsets = [0, 0], sizes = [8, 16], strides = [1, 1]} : vector<8x64xf32> to vector<8x16xf32>
    %cst_19 = arith.constant dense<0.000000e+00> : vector<8x16xf32>
    %31 = tpu.matmul %29, %30, %cst_19 {dimension_numbers = #tpu.dot_dimension_numbers<[1], [0], [0], [1], [0, 0, 1, 1], [], []>} : vector<8x8xf32>, vector<8x16xf32>, vector<8x16xf32> -> vector<8x16xf32>
    %32 = vector.extract_strided_slice %8 {offsets = [0, 0], sizes = [16, 64], strides = [1, 1]} : vector<64x64xf32> to vector<16x64xf32>
    %cst_20 = arith.constant dense<0.000000e+00> : vector<8x64xf32>
    %33 = tpu.matmul %31, %32, %cst_20 {dimension_numbers = #tpu.dot_dimension_numbers<[1], [0], [0], [1], [0, 0, 1, 1], [], []>} : vector<8x16xf32>, vector<16x64xf32>, vector<8x64xf32> -> vector<8x64xf32>
    %34 = arith.addf %9, %33 : vector<8x64xf32>
    %35 = vector.extract_strided_slice %1 {offsets = [0, 16], sizes = [8, 16], strides = [1, 1]} : vector<8x64xf32> to vector<8x16xf32>
    %36 = vector.extract_strided_slice %3 {offsets = [0, 16], sizes = [8, 16], strides = [1, 1]} : vector<8x64xf32> to vector<8x16xf32>
    %37 = tpu.transpose %36, [1, 0] : vector<8x16xf32> -> vector<16x8xf32>
    %cst_21 = arith.constant dense<0.000000e+00> : vector<8x8xf32>
    %38 = tpu.matmul %35, %37, %cst_21 {dimension_numbers = #tpu.dot_dimension_numbers<[1], [0], [0], [1], [0, 0, 1, 1], [], []>} : vector<8x16xf32>, vector<16x8xf32>, vector<8x8xf32> -> vector<8x8xf32>
    %cst_22 = arith.constant 2.500000e-01 : f32
    %39 = vector.broadcast %cst_22 : f32 to vector<8x8xf32>
    %40 = arith.mulf %38, %39 : vector<8x8xf32>
    %cst_23 = arith.constant 0.000000e+00 : f32
    %41 = vector.broadcast %cst_23 : f32 to vector<8x8xf32>
    %42 = arith.cmpf oeq, %7, %41 : vector<8x8xf32>
    %cst_24 = arith.constant -1.000000e+09 : f32
    %43 = vector.broadcast %cst_24 : f32 to vector<8x8xf32>
    %44 = arith.select %42, %43, %40 : vector<8x8xi1>, vector<8x8xf32>
    %cst_25 = arith.constant dense<0xFF800000> : vector<8xf32>
    %45 = vector.multi_reduction <maximumf>, %44, %cst_25 [1] : vector<8x8xf32> to vector<8xf32>
    %46 = vector.shape_cast %45 : vector<8xf32> to vector<8x1xf32>
    %47 = vector.broadcast %46 : vector<8x1xf32> to vector<8x8xf32>
    %48 = arith.subf %44, %47 : vector<8x8xf32>
    %49 = math.exp %48 : vector<8x8xf32>
    %cst_26 = arith.constant dense<0.000000e+00> : vector<8xf32>
    %50 = vector.multi_reduction <add>, %49, %cst_26 [1] : vector<8x8xf32> to vector<8xf32>
    %51 = vector.shape_cast %50 : vector<8xf32> to vector<8x1xf32>
    %52 = tpu.reciprocal %51 {approx = true} : vector<8x1xf32> -> vector<8x1xf32>
    %53 = vector.broadcast %52 : vector<8x1xf32> to vector<8x8xf32>
    %54 = arith.mulf %49, %53 : vector<8x8xf32>
    %55 = vector.extract_strided_slice %5 {offsets = [0, 16], sizes = [8, 16], strides = [1, 1]} : vector<8x64xf32> to vector<8x16xf32>
    %cst_27 = arith.constant dense<0.000000e+00> : vector<8x16xf32>
    %56 = tpu.matmul %54, %55, %cst_27 {dimension_numbers = #tpu.dot_dimension_numbers<[1], [0], [0], [1], [0, 0, 1, 1], [], []>} : vector<8x8xf32>, vector<8x16xf32>, vector<8x16xf32> -> vector<8x16xf32>
    %57 = vector.extract_strided_slice %8 {offsets = [16, 0], sizes = [16, 64], strides = [1, 1]} : vector<64x64xf32> to vector<16x64xf32>
    %cst_28 = arith.constant dense<0.000000e+00> : vector<8x64xf32>
    %58 = tpu.matmul %56, %57, %cst_28 {dimension_numbers = #tpu.dot_dimension_numbers<[1], [0], [0], [1], [0, 0, 1, 1], [], []>} : vector<8x16xf32>, vector<16x64xf32>, vector<8x64xf32> -> vector<8x64xf32>
    %59 = arith.addf %34, %58 : vector<8x64xf32>
    %60 = vector.extract_strided_slice %1 {offsets = [0, 32], sizes = [8, 16], strides = [1, 1]} : vector<8x64xf32> to vector<8x16xf32>
    %61 = vector.extract_strided_slice %3 {offsets = [0, 32], sizes = [8, 16], strides = [1, 1]} : vector<8x64xf32> to vector<8x16xf32>
    %62 = tpu.transpose %61, [1, 0] : vector<8x16xf32> -> vector<16x8xf32>
    %cst_29 = arith.constant dense<0.000000e+00> : vector<8x8xf32>
    %63 = tpu.matmul %60, %62, %cst_29 {dimension_numbers = #tpu.dot_dimension_numbers<[1], [0], [0], [1], [0, 0, 1, 1], [], []>} : vector<8x16xf32>, vector<16x8xf32>, vector<8x8xf32> -> vector<8x8xf32>
    %cst_30 = arith.constant 2.500000e-01 : f32
    %64 = vector.broadcast %cst_30 : f32 to vector<8x8xf32>
    %65 = arith.mulf %63, %64 : vector<8x8xf32>
    %cst_31 = arith.constant 0.000000e+00 : f32
    %66 = vector.broadcast %cst_31 : f32 to vector<8x8xf32>
    %67 = arith.cmpf oeq, %7, %66 : vector<8x8xf32>
    %cst_32 = arith.constant -1.000000e+09 : f32
    %68 = vector.broadcast %cst_32 : f32 to vector<8x8xf32>
    %69 = arith.select %67, %68, %65 : vector<8x8xi1>, vector<8x8xf32>
    %cst_33 = arith.constant dense<0xFF800000> : vector<8xf32>
    %70 = vector.multi_reduction <maximumf>, %69, %cst_33 [1] : vector<8x8xf32> to vector<8xf32>
    %71 = vector.shape_cast %70 : vector<8xf32> to vector<8x1xf32>
    %72 = vector.broadcast %71 : vector<8x1xf32> to vector<8x8xf32>
    %73 = arith.subf %69, %72 : vector<8x8xf32>
    %74 = math.exp %73 : vector<8x8xf32>
    %cst_34 = arith.constant dense<0.000000e+00> : vector<8xf32>
    %75 = vector.multi_reduction <add>, %74, %cst_34 [1] : vector<8x8xf32> to vector<8xf32>
    %76 = vector.shape_cast %75 : vector<8xf32> to vector<8x1xf32>
    %77 = tpu.reciprocal %76 {approx = true} : vector<8x1xf32> -> vector<8x1xf32>
    %78 = vector.broadcast %77 : vector<8x1xf32> to vector<8x8xf32>
    %79 = arith.mulf %74, %78 : vector<8x8xf32>
    %80 = vector.extract_strided_slice %5 {offsets = [0, 32], sizes = [8, 16], strides = [1, 1]} : vector<8x64xf32> to vector<8x16xf32>
    %cst_35 = arith.constant dense<0.000000e+00> : vector<8x16xf32>
    %81 = tpu.matmul %79, %80, %cst_35 {dimension_numbers = #tpu.dot_dimension_numbers<[1], [0], [0], [1], [0, 0, 1, 1], [], []>} : vector<8x8xf32>, vector<8x16xf32>, vector<8x16xf32> -> vector<8x16xf32>
    %82 = vector.extract_strided_slice %8 {offsets = [32, 0], sizes = [16, 64], strides = [1, 1]} : vector<64x64xf32> to vector<16x64xf32>
    %cst_36 = arith.constant dense<0.000000e+00> : vector<8x64xf32>
    %83 = tpu.matmul %81, %82, %cst_36 {dimension_numbers = #tpu.dot_dimension_numbers<[1], [0], [0], [1], [0, 0, 1, 1], [], []>} : vector<8x16xf32>, vector<16x64xf32>, vector<8x64xf32> -> vector<8x64xf32>
    %84 = arith.addf %59, %83 : vector<8x64xf32>
    %85 = vector.extract_strided_slice %1 {offsets = [0, 48], sizes = [8, 16], strides = [1, 1]} : vector<8x64xf32> to vector<8x16xf32>
    %86 = vector.extract_strided_slice %3 {offsets = [0, 48], sizes = [8, 16], strides = [1, 1]} : vector<8x64xf32> to vector<8x16xf32>
    %87 = tpu.transpose %86, [1, 0] : vector<8x16xf32> -> vector<16x8xf32>
    %cst_37 = arith.constant dense<0.000000e+00> : vector<8x8xf32>
    %88 = tpu.matmul %85, %87, %cst_37 {dimension_numbers = #tpu.dot_dimension_numbers<[1], [0], [0], [1], [0, 0, 1, 1], [], []>} : vector<8x16xf32>, vector<16x8xf32>, vector<8x8xf32> -> vector<8x8xf32>
    %cst_38 = arith.constant 2.500000e-01 : f32
    %89 = vector.broadcast %cst_38 : f32 to vector<8x8xf32>
    %90 = arith.mulf %88, %89 : vector<8x8xf32>
    %cst_39 = arith.constant 0.000000e+00 : f32
    %91 = vector.broadcast %cst_39 : f32 to vector<8x8xf32>
    %92 = arith.cmpf oeq, %7, %91 : vector<8x8xf32>
    %cst_40 = arith.constant -1.000000e+09 : f32
    %93 = vector.broadcast %cst_40 : f32 to vector<8x8xf32>
    %94 = arith.select %92, %93, %90 : vector<8x8xi1>, vector<8x8xf32>
    %cst_41 = arith.constant dense<0xFF800000> : vector<8xf32>
    %95 = vector.multi_reduction <maximumf>, %94, %cst_41 [1] : vector<8x8xf32> to vector<8xf32>
    %96 = vector.shape_cast %95 : vector<8xf32> to vector<8x1xf32>
    %97 = vector.broadcast %96 : vector<8x1xf32> to vector<8x8xf32>
    %98 = arith.subf %94, %97 : vector<8x8xf32>
    %99 = math.exp %98 : vector<8x8xf32>
    %cst_42 = arith.constant dense<0.000000e+00> : vector<8xf32>
    %100 = vector.multi_reduction <add>, %99, %cst_42 [1] : vector<8x8xf32> to vector<8xf32>
    %101 = vector.shape_cast %100 : vector<8xf32> to vector<8x1xf32>
    %102 = tpu.reciprocal %101 {approx = true} : vector<8x1xf32> -> vector<8x1xf32>
    %103 = vector.broadcast %102 : vector<8x1xf32> to vector<8x8xf32>
    %104 = arith.mulf %99, %103 : vector<8x8xf32>
    %105 = vector.extract_strided_slice %5 {offsets = [0, 48], sizes = [8, 16], strides = [1, 1]} : vector<8x64xf32> to vector<8x16xf32>
    %cst_43 = arith.constant dense<0.000000e+00> : vector<8x16xf32>
    %106 = tpu.matmul %104, %105, %cst_43 {dimension_numbers = #tpu.dot_dimension_numbers<[1], [0], [0], [1], [0, 0, 1, 1], [], []>} : vector<8x8xf32>, vector<8x16xf32>, vector<8x16xf32> -> vector<8x16xf32>
    %107 = vector.extract_strided_slice %8 {offsets = [48, 0], sizes = [16, 64], strides = [1, 1]} : vector<64x64xf32> to vector<16x64xf32>
    %cst_44 = arith.constant dense<0.000000e+00> : vector<8x64xf32>
    %108 = tpu.matmul %106, %107, %cst_44 {dimension_numbers = #tpu.dot_dimension_numbers<[1], [0], [0], [1], [0, 0, 1, 1], [], []>} : vector<8x16xf32>, vector<16x64xf32>, vector<8x64xf32> -> vector<8x64xf32>
    %109 = arith.addf %84, %108 : vector<8x64xf32>
    %c0_45 = arith.constant 0 : index
    %c0_46 = arith.constant 0 : index
    %110 = vector.load %arg6[%c0_45, %c0_46] : memref<1x64xf32, #tpu.memory_space<vmem>>, vector<1x64xf32>
    %111 = vector.broadcast %110 : vector<1x64xf32> to vector<8x64xf32>
    %112 = arith.addf %109, %111 : vector<8x64xf32>
    %c0_47 = arith.constant 0 : index
    %c0_48 = arith.constant 0 : index
    %c0_49 = arith.constant 0 : index
    %113 = vector.load %arg7[%c0_47, %c0_48, %c0_49] : memref<1x8x64xf32, #tpu.memory_space<vmem>>, vector<1x8x64xf32>
    %114 = vector.shape_cast %113 : vector<1x8x64xf32> to vector<8x64xf32>
    %115 = arith.addf %112, %114 : vector<8x64xf32>
    %c0_50 = arith.constant 0 : index
    %c0_51 = arith.constant 0 : index
    %c0_52 = arith.constant 0 : index
    %116 = vector.load %arg8[%c0_50, %c0_51, %c0_52] : memref<1x8x64xf32, #tpu.memory_space<vmem>>, vector<1x8x64xf32>
    %117 = vector.shape_cast %116 : vector<1x8x64xf32> to vector<8x64xf32>
    %118 = vector.shape_cast %115 : vector<8x64xf32> to vector<1x8x64xf32>
    tpu.vector_store %arg8[%c0_50, %c0_51, %c0_52], %118 {strides = array<i32>} : memref<1x8x64xf32, #tpu.memory_space<vmem>>, vector<1x8x64xf32>,
    return
  }
  func.func @transform_0(%arg0: i32) -> (i32, i32, i32) {
    %c0_i32 = arith.constant 0 : i32
    %c0_i32_0 = arith.constant 0 : i32
    %c0_i32_1 = arith.constant 0 : i32
    return %arg0, %c0_i32, %c0_i32_0 : i32, i32, i32
  }
  func.func @transform_1(%arg0: i32) -> (i32, i32, i32) {
    %c0_i32 = arith.constant 0 : i32
    %c0_i32_0 = arith.constant 0 : i32
    %c0_i32_1 = arith.constant 0 : i32
    return %arg0, %c0_i32, %c0_i32_0 : i32, i32, i32
  }
  func.func @transform_2(%arg0: i32) -> (i32, i32, i32) {
    %c0_i32 = arith.constant 0 : i32
    %c0_i32_0 = arith.constant 0 : i32
    %c0_i32_1 = arith.constant 0 : i32
    return %arg0, %c0_i32, %c0_i32_0 : i32, i32, i32
  }
  func.func @transform_3(%arg0: i32) -> (i32, i32, i32) {
    %c0_i32 = arith.constant 0 : i32
    %c0_i32_0 = arith.constant 0 : i32
    %c0_i32_1 = arith.constant 0 : i32
    return %arg0, %c0_i32, %c0_i32_0 : i32, i32, i32
  }
  func.func @transform_4(%arg0: i32) -> (i32, i32) {
    %c0_i32 = arith.constant 0 : i32
    %c0_i32_0 = arith.constant 0 : i32
    %c0_i32_1 = arith.constant 0 : i32
    return %c0_i32, %c0_i32_0 : i32, i32
  }
  func.func @transform_5(%arg0: i32) -> (i32, i32) {
    %c0_i32 = arith.constant 0 : i32
    %c0_i32_0 = arith.constant 0 : i32
    %c0_i32_1 = arith.constant 0 : i32
    return %c0_i32, %c0_i32_0 : i32, i32
  }
  func.func @transform_6(%arg0: i32) -> (i32, i32, i32) {
    %c0_i32 = arith.constant 0 : i32
    %c0_i32_0 = arith.constant 0 : i32
    %c0_i32_1 = arith.constant 0 : i32
    return %arg0, %c0_i32, %c0_i32_0 : i32, i32, i32
  }
  func.func @transform_7(%arg0: i32) -> (i32, i32, i32) {
    %c0_i32 = arith.constant 0 : i32
    %c0_i32_0 = arith.constant 0 : i32
    %c0_i32_1 = arith.constant 0 : i32
    return %arg0, %c0_i32, %c0_i32_0 : i32, i32, i32
  }
}

module attributes {stable_mosaic.version = 11 : i64} {
  func.func @_layernorm_kernel(%arg0: i32, %arg1: memref<16x64xf32, #tpu.memory_space<vmem>>, %arg2: memref<1x64xf32, #tpu.memory_space<vmem>>, %arg3: memref<1x64xf32, #tpu.memory_space<vmem>>, %arg4: memref<16x64xf32, #tpu.memory_space<vmem>>) attributes {dimension_semantics = [#tpu.dimension_semantics<parallel>], iteration_bounds = array<i64: 1>, scalar_prefetch = 0 : i64, scratch_operands = 0 : i64, tpu.core_type = #tpu.core_type<tc>, window_params = [{transform_indices = @transform_0, window_bounds = array<i64: 16, 64>}, {pipeline_mode = #tpu.pipeline_mode<synchronous>, transform_indices = @transform_1, window_bounds = array<i64: 1, 64>}, {pipeline_mode = #tpu.pipeline_mode<synchronous>, transform_indices = @transform_2, window_bounds = array<i64: 1, 64>}, {transform_indices = @transform_3, window_bounds = array<i64: 16, 64>}]} {
    %c0 = arith.constant 0 : index
    %c0_0 = arith.constant 0 : index
    %0 = vector.load %arg1[%c0, %c0_0] : memref<16x64xf32, #tpu.memory_space<vmem>>, vector<16x64xf32>
    %c0_1 = arith.constant 0 : index
    %c0_2 = arith.constant 0 : index
    %1 = vector.load %arg2[%c0_1, %c0_2] : memref<1x64xf32, #tpu.memory_space<vmem>>, vector<1x64xf32>
    %c0_3 = arith.constant 0 : index
    %c0_4 = arith.constant 0 : index
    %2 = vector.load %arg3[%c0_3, %c0_4] : memref<1x64xf32, #tpu.memory_space<vmem>>, vector<1x64xf32>
    %cst = arith.constant dense<0.000000e+00> : vector<16xf32>
    %3 = vector.multi_reduction <add>, %0, %cst [1] : vector<16x64xf32> to vector<16xf32>
    %4 = vector.shape_cast %3 : vector<16xf32> to vector<16x1xf32>
    %cst_5 = arith.constant 6.400000e+01 : f32
    %5 = vector.broadcast %cst_5 : f32 to vector<16x1xf32>
    %6 = arith.divf %4, %5 : vector<16x1xf32>
    %7 = vector.broadcast %6 : vector<16x1xf32> to vector<16x64xf32>
    %8 = arith.subf %0, %7 : vector<16x64xf32>
    %9 = arith.mulf %8, %8 : vector<16x64xf32>
    %cst_6 = arith.constant dense<0.000000e+00> : vector<16xf32>
    %10 = vector.multi_reduction <add>, %9, %cst_6 [1] : vector<16x64xf32> to vector<16xf32>
    %11 = vector.shape_cast %10 : vector<16xf32> to vector<16x1xf32>
    %cst_7 = arith.constant 0.0158730168 : f32
    %12 = vector.broadcast %cst_7 : f32 to vector<16x1xf32>
    %13 = arith.mulf %11, %12 : vector<16x1xf32>
    %14 = math.sqrt %13 : vector<16x1xf32>
    %cst_8 = arith.constant 9.99999997E-7 : f32
    %15 = vector.broadcast %cst_8 : f32 to vector<16x1xf32>
    %16 = arith.addf %14, %15 : vector<16x1xf32>
    %17 = tpu.reciprocal %16 {approx = true} : vector<16x1xf32> -> vector<16x1xf32>
    %18 = vector.broadcast %6 : vector<16x1xf32> to vector<16x64xf32>
    %19 = arith.subf %0, %18 : vector<16x64xf32>
    %20 = vector.broadcast %1 : vector<1x64xf32> to vector<16x64xf32>
    %21 = arith.mulf %20, %19 : vector<16x64xf32>
    %22 = vector.broadcast %17 : vector<16x1xf32> to vector<16x64xf32>
    %23 = arith.mulf %21, %22 : vector<16x64xf32>
    %24 = vector.broadcast %2 : vector<1x64xf32> to vector<16x64xf32>
    %25 = arith.addf %23, %24 : vector<16x64xf32>
    %c0_9 = arith.constant 0 : index
    %c0_10 = arith.constant 0 : index
    %26 = vector.load %arg4[%c0_9, %c0_10] : memref<16x64xf32, #tpu.memory_space<vmem>>, vector<16x64xf32>
    tpu.vector_store %arg4[%c0_9, %c0_10], %25 {strides = array<i32>} : memref<16x64xf32, #tpu.memory_space<vmem>>, vector<16x64xf32>,
    return
  }
  func.func @transform_0(%arg0: i32) -> (i32, i32) {
    %c0_i32 = arith.constant 0 : i32
    %c0_i32_0 = arith.constant 0 : i32
    return %arg0, %c0_i32 : i32, i32
  }
  func.func @transform_1(%arg0: i32) -> (i32, i32) {
    %c0_i32 = arith.constant 0 : i32
    %c0_i32_0 = arith.constant 0 : i32
    %c0_i32_1 = arith.constant 0 : i32
    return %c0_i32, %c0_i32_0 : i32, i32
  }
  func.func @transform_2(%arg0: i32) -> (i32, i32) {
    %c0_i32 = arith.constant 0 : i32
    %c0_i32_0 = arith.constant 0 : i32
    %c0_i32_1 = arith.constant 0 : i32
    return %c0_i32, %c0_i32_0 : i32, i32
  }
  func.func @transform_3(%arg0: i32) -> (i32, i32) {
    %c0_i32 = arith.constant 0 : i32
    %c0_i32_0 = arith.constant 0 : i32
    return %arg0, %c0_i32 : i32, i32
  }
}

module attributes {stable_mosaic.version = 11 : i64} {
  func.func @_ln_linear_kernel(%arg0: i32, %arg1: i32, %arg2: memref<16x64xf32, #tpu.memory_space<vmem>>, %arg3: memref<1x64xf32, #tpu.memory_space<vmem>>, %arg4: memref<1x64xf32, #tpu.memory_space<vmem>>, %arg5: memref<64x64xf32, #tpu.memory_space<vmem>>, %arg6: memref<1x64xf32, #tpu.memory_space<vmem>>, %arg7: memref<16x64xf32, #tpu.memory_space<vmem>>) attributes {dimension_semantics = [#tpu.dimension_semantics<parallel>, #tpu.dimension_semantics<parallel>], iteration_bounds = array<i64: 1, 1>, scalar_prefetch = 0 : i64, scratch_operands = 0 : i64, tpu.core_type = #tpu.core_type<tc>, window_params = [{transform_indices = @transform_0, window_bounds = array<i64: 16, 64>}, {pipeline_mode = #tpu.pipeline_mode<synchronous>, transform_indices = @transform_1, window_bounds = array<i64: 1, 64>}, {pipeline_mode = #tpu.pipeline_mode<synchronous>, transform_indices = @transform_2, window_bounds = array<i64: 1, 64>}, {transform_indices = @transform_3, window_bounds = array<i64: 64, 64>}, {transform_indices = @transform_4, window_bounds = array<i64: 1, 64>}, {transform_indices = @transform_5, window_bounds = array<i64: 16, 64>}]} {
    %c0 = arith.constant 0 : index
    %c0_0 = arith.constant 0 : index
    %0 = vector.load %arg2[%c0, %c0_0] : memref<16x64xf32, #tpu.memory_space<vmem>>, vector<16x64xf32>
    %c0_1 = arith.constant 0 : index
    %c0_2 = arith.constant 0 : index
    %1 = vector.load %arg3[%c0_1, %c0_2] : memref<1x64xf32, #tpu.memory_space<vmem>>, vector<1x64xf32>
    %c0_3 = arith.constant 0 : index
    %c0_4 = arith.constant 0 : index
    %2 = vector.load %arg4[%c0_3, %c0_4] : memref<1x64xf32, #tpu.memory_space<vmem>>, vector<1x64xf32>
    %cst = arith.constant dense<0.000000e+00> : vector<16xf32>
    %3 = vector.multi_reduction <add>, %0, %cst [1] : vector<16x64xf32> to vector<16xf32>
    %4 = vector.shape_cast %3 : vector<16xf32> to vector<16x1xf32>
    %cst_5 = arith.constant 6.400000e+01 : f32
    %5 = vector.broadcast %cst_5 : f32 to vector<16x1xf32>
    %6 = arith.divf %4, %5 : vector<16x1xf32>
    %7 = vector.broadcast %6 : vector<16x1xf32> to vector<16x64xf32>
    %8 = arith.subf %0, %7 : vector<16x64xf32>
    %9 = arith.mulf %8, %8 : vector<16x64xf32>
    %cst_6 = arith.constant dense<0.000000e+00> : vector<16xf32>
    %10 = vector.multi_reduction <add>, %9, %cst_6 [1] : vector<16x64xf32> to vector<16xf32>
    %11 = vector.shape_cast %10 : vector<16xf32> to vector<16x1xf32>
    %cst_7 = arith.constant 0.0158730168 : f32
    %12 = vector.broadcast %cst_7 : f32 to vector<16x1xf32>
    %13 = arith.mulf %11, %12 : vector<16x1xf32>
    %14 = math.sqrt %13 : vector<16x1xf32>
    %cst_8 = arith.constant 9.99999997E-7 : f32
    %15 = vector.broadcast %cst_8 : f32 to vector<16x1xf32>
    %16 = arith.addf %14, %15 : vector<16x1xf32>
    %17 = tpu.reciprocal %16 {approx = true} : vector<16x1xf32> -> vector<16x1xf32>
    %18 = vector.broadcast %6 : vector<16x1xf32> to vector<16x64xf32>
    %19 = arith.subf %0, %18 : vector<16x64xf32>
    %20 = vector.broadcast %1 : vector<1x64xf32> to vector<16x64xf32>
    %21 = arith.mulf %20, %19 : vector<16x64xf32>
    %22 = vector.broadcast %17 : vector<16x1xf32> to vector<16x64xf32>
    %23 = arith.mulf %21, %22 : vector<16x64xf32>
    %24 = vector.broadcast %2 : vector<1x64xf32> to vector<16x64xf32>
    %25 = arith.addf %23, %24 : vector<16x64xf32>
    %c0_9 = arith.constant 0 : index
    %c0_10 = arith.constant 0 : index
    %26 = vector.load %arg5[%c0_9, %c0_10] : memref<64x64xf32, #tpu.memory_space<vmem>>, vector<64x64xf32>
    %cst_11 = arith.constant dense<0.000000e+00> : vector<16x64xf32>
    %27 = tpu.matmul %25, %26, %cst_11 {dimension_numbers = #tpu.dot_dimension_numbers<[1], [0], [0], [1], [0, 0, 1, 1], [], []>} : vector<16x64xf32>, vector<64x64xf32>, vector<16x64xf32> -> vector<16x64xf32>
    %c0_12 = arith.constant 0 : index
    %c0_13 = arith.constant 0 : index
    %28 = vector.load %arg6[%c0_12, %c0_13] : memref<1x64xf32, #tpu.memory_space<vmem>>, vector<1x64xf32>
    %29 = vector.broadcast %28 : vector<1x64xf32> to vector<16x64xf32>
    %30 = arith.addf %27, %29 : vector<16x64xf32>
    %c0_14 = arith.constant 0 : index
    %c0_15 = arith.constant 0 : index
    %31 = vector.load %arg7[%c0_14, %c0_15] : memref<16x64xf32, #tpu.memory_space<vmem>>, vector<16x64xf32>
    tpu.vector_store %arg7[%c0_14, %c0_15], %30 {strides = array<i32>} : memref<16x64xf32, #tpu.memory_space<vmem>>, vector<16x64xf32>,
    return
  }
  func.func @transform_0(%arg0: i32, %arg1: i32) -> (i32, i32) {
    %c0_i32 = arith.constant 0 : i32
    %c0_i32_0 = arith.constant 0 : i32
    return %arg0, %c0_i32 : i32, i32
  }
  func.func @transform_1(%arg0: i32, %arg1: i32) -> (i32, i32) {
    %c0_i32 = arith.constant 0 : i32
    %c0_i32_0 = arith.constant 0 : i32
    %c0_i32_1 = arith.constant 0 : i32
    return %c0_i32, %c0_i32_0 : i32, i32
  }
  func.func @transform_2(%arg0: i32, %arg1: i32) -> (i32, i32) {
    %c0_i32 = arith.constant 0 : i32
    %c0_i32_0 = arith.constant 0 : i32
    %c0_i32_1 = arith.constant 0 : i32
    return %c0_i32, %c0_i32_0 : i32, i32
  }
  func.func @transform_3(%arg0: i32, %arg1: i32) -> (i32, i32) {
    %c0_i32 = arith.constant 0 : i32
    %c0_i32_0 = arith.constant 0 : i32
    return %c0_i32, %arg1 : i32, i32
  }
  func.func @transform_4(%arg0: i32, %arg1: i32) -> (i32, i32) {
    %c0_i32 = arith.constant 0 : i32
    %c0_i32_0 = arith.constant 0 : i32
    return %c0_i32, %arg1 : i32, i32
  }
  func.func @transform_5(%arg0: i32, %arg1: i32) -> (i32, i32) {
    %c0_i32 = arith.constant 0 : i32
    return %arg0, %arg1 : i32, i32
  }
}

module attributes {stable_mosaic.version = 11 : i64} {
  func.func @_linear_kernel(%arg0: i32, %arg1: i32, %arg2: memref<16x64xf32, #tpu.memory_space<vmem>>, %arg3: memref<64x128xf32, #tpu.memory_space<vmem>>, %arg4: memref<1x128xf32, #tpu.memory_space<vmem>>, %arg5: memref<16x128xf32, #tpu.memory_space<vmem>>) attributes {dimension_semantics = [#tpu.dimension_semantics<parallel>, #tpu.dimension_semantics<parallel>], iteration_bounds = array<i64: 1, 1>, scalar_prefetch = 0 : i64, scratch_operands = 0 : i64, tpu.core_type = #tpu.core_type<tc>, window_params = [{transform_indices = @transform_0, window_bounds = array<i64: 16, 64>}, {transform_indices = @transform_1, window_bounds = array<i64: 64, 128>}, {transform_indices = @transform_2, window_bounds = array<i64: 1, 128>}, {transform_indices = @transform_3, window_bounds = array<i64: 16, 128>}]} {
    %c0 = arith.constant 0 : index
    %c0_0 = arith.constant 0 : index
    %0 = vector.load %arg2[%c0, %c0_0] : memref<16x64xf32, #tpu.memory_space<vmem>>, vector<16x64xf32>
    %c0_1 = arith.constant 0 : index
    %c0_2 = arith.constant 0 : index
    %1 = vector.load %arg3[%c0_1, %c0_2] : memref<64x128xf32, #tpu.memory_space<vmem>>, vector<64x128xf32>
    %cst = arith.constant dense<0.000000e+00> : vector<16x128xf32>
    %2 = tpu.matmul %0, %1, %cst {dimension_numbers = #tpu.dot_dimension_numbers<[1], [0], [0], [1], [0, 0, 1, 1], [], []>} : vector<16x64xf32>, vector<64x128xf32>, vector<16x128xf32> -> vector<16x128xf32>
    %c0_3 = arith.constant 0 : index
    %c0_4 = arith.constant 0 : index
    %3 = vector.load %arg4[%c0_3, %c0_4] : memref<1x128xf32, #tpu.memory_space<vmem>>, vector<1x128xf32>
    %4 = vector.broadcast %3 : vector<1x128xf32> to vector<16x128xf32>
    %5 = arith.addf %2, %4 : vector<16x128xf32>
    %c0_5 = arith.constant 0 : index
    %c0_6 = arith.constant 0 : index
    %6 = vector.load %arg5[%c0_5, %c0_6] : memref<16x128xf32, #tpu.memory_space<vmem>>, vector<16x128xf32>
    tpu.vector_store %arg5[%c0_5, %c0_6], %5 {strides = array<i32>} : memref<16x128xf32, #tpu.memory_space<vmem>>, vector<16x128xf32>,
    return
  }
  func.func @transform_0(%arg0: i32, %arg1: i32) -> (i32, i32) {
    %c0_i32 = arith.constant 0 : i32
    %c0_i32_0 = arith.constant 0 : i32
    return %arg0, %c0_i32 : i32, i32
  }
  func.func @transform_1(%arg0: i32, %arg1: i32) -> (i32, i32) {
    %c0_i32 = arith.constant 0 : i32
    %c0_i32_0 = arith.constant 0 : i32
    return %c0_i32, %arg1 : i32, i32
  }
  func.func @transform_2(%arg0: i32, %arg1: i32) -> (i32, i32) {
    %c0_i32 = arith.constant 0 : i32
    %c0_i32_0 = arith.constant 0 : i32
    return %c0_i32, %arg1 : i32, i32
  }
  func.func @transform_3(%arg0: i32, %arg1: i32) -> (i32, i32) {
    %c0_i32 = arith.constant 0 : i32
    return %arg0, %arg1 : i32, i32
  }
}

module attributes {stable_mosaic.version = 11 : i64} {
  func.func @_layernorm_kernel(%arg0: i32, %arg1: memref<16x64xf32, #tpu.memory_space<vmem>>, %arg2: memref<1x64xf32, #tpu.memory_space<vmem>>, %arg3: memref<1x64xf32, #tpu.memory_space<vmem>>, %arg4: memref<16x64xf32, #tpu.memory_space<vmem>>) attributes {dimension_semantics = [#tpu.dimension_semantics<parallel>], iteration_bounds = array<i64: 1>, scalar_prefetch = 0 : i64, scratch_operands = 0 : i64, tpu.core_type = #tpu.core_type<tc>, window_params = [{transform_indices = @transform_0, window_bounds = array<i64: 16, 64>}, {pipeline_mode = #tpu.pipeline_mode<synchronous>, transform_indices = @transform_1, window_bounds = array<i64: 1, 64>}, {pipeline_mode = #tpu.pipeline_mode<synchronous>, transform_indices = @transform_2, window_bounds = array<i64: 1, 64>}, {transform_indices = @transform_3, window_bounds = array<i64: 16, 64>}]} {
    %c0 = arith.constant 0 : index
    %c0_0 = arith.constant 0 : index
    %0 = vector.load %arg1[%c0, %c0_0] : memref<16x64xf32, #tpu.memory_space<vmem>>, vector<16x64xf32>
    %c0_1 = arith.constant 0 : index
    %c0_2 = arith.constant 0 : index
    %1 = vector.load %arg2[%c0_1, %c0_2] : memref<1x64xf32, #tpu.memory_space<vmem>>, vector<1x64xf32>
    %c0_3 = arith.constant 0 : index
    %c0_4 = arith.constant 0 : index
    %2 = vector.load %arg3[%c0_3, %c0_4] : memref<1x64xf32, #tpu.memory_space<vmem>>, vector<1x64xf32>
    %cst = arith.constant dense<0.000000e+00> : vector<16xf32>
    %3 = vector.multi_reduction <add>, %0, %cst [1] : vector<16x64xf32> to vector<16xf32>
    %4 = vector.shape_cast %3 : vector<16xf32> to vector<16x1xf32>
    %cst_5 = arith.constant 6.400000e+01 : f32
    %5 = vector.broadcast %cst_5 : f32 to vector<16x1xf32>
    %6 = arith.divf %4, %5 : vector<16x1xf32>
    %7 = vector.broadcast %6 : vector<16x1xf32> to vector<16x64xf32>
    %8 = arith.subf %0, %7 : vector<16x64xf32>
    %9 = arith.mulf %8, %8 : vector<16x64xf32>
    %cst_6 = arith.constant dense<0.000000e+00> : vector<16xf32>
    %10 = vector.multi_reduction <add>, %9, %cst_6 [1] : vector<16x64xf32> to vector<16xf32>
    %11 = vector.shape_cast %10 : vector<16xf32> to vector<16x1xf32>
    %cst_7 = arith.constant 0.0158730168 : f32
    %12 = vector.broadcast %cst_7 : f32 to vector<16x1xf32>
    %13 = arith.mulf %11, %12 : vector<16x1xf32>
    %14 = math.sqrt %13 : vector<16x1xf32>
    %cst_8 = arith.constant 9.99999997E-7 : f32
    %15 = vector.broadcast %cst_8 : f32 to vector<16x1xf32>
    %16 = arith.addf %14, %15 : vector<16x1xf32>
    %17 = tpu.reciprocal %16 {approx = true} : vector<16x1xf32> -> vector<16x1xf32>
    %18 = vector.broadcast %6 : vector<16x1xf32> to vector<16x64xf32>
    %19 = arith.subf %0, %18 : vector<16x64xf32>
    %20 = vector.broadcast %1 : vector<1x64xf32> to vector<16x64xf32>
    %21 = arith.mulf %20, %19 : vector<16x64xf32>
    %22 = vector.broadcast %17 : vector<16x1xf32> to vector<16x64xf32>
    %23 = arith.mulf %21, %22 : vector<16x64xf32>
    %24 = vector.broadcast %2 : vector<1x64xf32> to vector<16x64xf32>
    %25 = arith.addf %23, %24 : vector<16x64xf32>
    %c0_9 = arith.constant 0 : index
    %c0_10 = arith.constant 0 : index
    %26 = vector.load %arg4[%c0_9, %c0_10] : memref<16x64xf32, #tpu.memory_space<vmem>>, vector<16x64xf32>
    tpu.vector_store %arg4[%c0_9, %c0_10], %25 {strides = array<i32>} : memref<16x64xf32, #tpu.memory_space<vmem>>, vector<16x64xf32>,
    return
  }
  func.func @transform_0(%arg0: i32) -> (i32, i32) {
    %c0_i32 = arith.constant 0 : i32
    %c0_i32_0 = arith.constant 0 : i32
    return %arg0, %c0_i32 : i32, i32
  }
  func.func @transform_1(%arg0: i32) -> (i32, i32) {
    %c0_i32 = arith.constant 0 : i32
    %c0_i32_0 = arith.constant 0 : i32
    %c0_i32_1 = arith.constant 0 : i32
    return %c0_i32, %c0_i32_0 : i32, i32
  }
  func.func @transform_2(%arg0: i32) -> (i32, i32) {
    %c0_i32 = arith.constant 0 : i32
    %c0_i32_0 = arith.constant 0 : i32
    %c0_i32_1 = arith.constant 0 : i32
    return %c0_i32, %c0_i32_0 : i32, i32
  }
  func.func @transform_3(%arg0: i32) -> (i32, i32) {
    %c0_i32 = arith.constant 0 : i32
    %c0_i32_0 = arith.constant 0 : i32
    return %arg0, %c0_i32 : i32, i32
  }
}

</mosaic_0001>

<llo_original>
// kernel: transformer_forward.26
$region0: #{transformer_forward.26}
  #allocation0 [shape = 'u32[]', space=smem, size = 0x4, offset = 0x4, fixed_abs, tag = 'smem constant byte address 0x4 - core index']
  #allocation1 [shape = 'u32[144,128]{1,0:T(1,128)}', space=vmem, size = 0x12000, scoped, tag = 'internal scratch']
  %s0 = inlined_call_operand.vmem [shape: f32[16,64], index: 0, kind: input, shape index: {}]
  %s1 = inlined_call_operand.vmem [shape: f32[1,64], index: 1, kind: input, shape index: {}]
  %s2 = inlined_call_operand.vmem [shape: f32[1,64], index: 2, kind: input, shape index: {}]
  %s3 = inlined_call_operand.vmem [shape: f32[16,64], index: 3, kind: output, shape index: {}]
  %s4 = sld [smem:[#allocation0]]
  $region22: #{transformer_forward.26} parent=0
    _
  %s6 = ssub.s32 1, %s4
  %s7 = scalar_select 0, %s6, %s4
  // Predicated region
  $region2: #{transformer_forward.26} parent=0 // pred_check
    _
  $region3: #{transformer_forward.26} parent=0 // pred_check_branch
    %9 = sbr.rel (0) target = $region5
  $region4: #{transformer_forward.26} parent=0 // pred_region
    _
  $region5: #{transformer_forward.26} parent=0 // pred_fallthru
    _
  // Predicated region
  $region6: #{transformer_forward.26} parent=0 // pred_check
    _
  $region7: #{transformer_forward.26} parent=0 // pred_check_branch
    %11 = sbr.rel (0) target = $region9
  $region8: #{transformer_forward.26} parent=0 // pred_region
    _
  $region9: #{transformer_forward.26} parent=0 // pred_fallthru
    _
  // Predicated region
  $region10: #{transformer_forward.26} parent=0 // pred_check
    _
  $region11: #{transformer_forward.26} parent=0 // pred_check_branch
    %13 = sbr.rel (0) target = $region13
  $region12: #{transformer_forward.26} parent=0 // pred_region
    _
  $region13: #{transformer_forward.26} parent=0 // pred_fallthru
    _
  %v14 = vld [vmem:[%s0] sm:$0xff]
  %v15 = vld [vmem:[%s0 + $0x8] sm:$0xff]
  %v16 = vld [vmem:[%s1] sm:$0x1]
  %v17 = vld [vmem:[%s2] sm:$0x1]
  %vm18 = vcmask 523264
  %v19 = vsel %vm18, %v14, 0.0
  %20 = vadd.xlane.f32.xlu0 %v19
  %v21 = vpop.xlane.xlu0 %20
  %v22 = vsel %vm18, %v15, 0.0
  %23 = vadd.xlane.f32.xlu0 %v22
  %v24 = vpop.xlane.xlu0 %23
  %v25 = vrcp.pop 64.0
  %v26 = vmul.f32 %v21, %v25
  %v27 = vmul.f32 %v24, %v25
  %v28 = vsub.f32 %v14, %v26
  %v29 = vsub.f32 %v15, %v27
  %v30 = vmul.f32 %v28, %v28
  %v31 = vmul.f32 %v29, %v29
  %v32 = vsel %vm18, %v30, 0.0
  %33 = vadd.xlane.f32.xlu0 %v32
  %v34 = vpop.xlane.xlu0 %33
  %v35 = vsel %vm18, %v31, 0.0
  %36 = vadd.xlane.f32.xlu0 %v35
  %v37 = vpop.xlane.xlu0 %36
  %v38 = vmul.f32 %v34, 0.015873017
  %v39 = vmul.f32 %v37, 0.015873017
  %v40 = vrsqrt.pop %v38
  %v41 = vmul.f32 %v38, %v40
  %vm42 = vcmp.eq.f32.partialorder %v38, inf
  %v43 = vsel %vm42, %v38, %v41
  %vm44 = vcmp.eq.f32.partialorder %v38, 0.0
  %v45 = vand.u32 %v38, 2147483648
  %v46 = vsel %vm44, %v45, %v43
  %v47 = vrsqrt.pop %v39
  %v48 = vmul.f32 %v39, %v47
  %vm49 = vcmp.eq.f32.partialorder %v39, inf
  %v50 = vsel %vm49, %v39, %v48
  %vm51 = vcmp.eq.f32.partialorder %v39, 0.0
  %v52 = vand.u32 %v39, 2147483648
  %v53 = vsel %vm51, %v52, %v50
  %v54 = vadd.f32 %v46, 1e-06
  %v55 = vadd.f32 %v53, 1e-06
  %v56 = vrcp.pop %v54
  %v57 = vrcp.pop %v55
  %v59 = vlaneseq
  %v60 = vshrl.u32 %v59, 7
  %v61 = vsub.s32 0, %v60
  %v62 = vrot.slane %v16, %v61
  %v64 = vmul.f32 %v62, %v28
  %v65 = vmul.f32 %v62, %v29
  %v66 = vmul.f32 %v64, %v56
  %v67 = vmul.f32 %v65, %v57
  %v69 = vlaneseq
  %v70 = vshrl.u32 %v69, 7
  %v71 = vsub.s32 0, %v70
  %v72 = vrot.slane %v17, %v71
  %v74 = vadd.f32 %v66, %v72
  %v75 = vadd.f32 %v67, %v72
  %76 = vst.msk [vmem:[%s3] sm:$0xff] %vm18, %v74
  %77 = vst.msk [vmem:[%s3 + $0x8] sm:$0xff] %vm18, %v75
  // Predicated region
  $region14: #{transformer_forward.26} parent=0 // pred_check
    _
  $region15: #{transformer_forward.26} parent=0 // pred_check_branch
    %79 = sbr.rel (0) target = $region17
  $region16: #{transformer_forward.26} parent=0 // pred_region
    _
  $region17: #{transformer_forward.26} parent=0 // pred_fallthru
    _
  // Predicated region
  $region18: #{transformer_forward.26} parent=0 // pred_check
    _
  $region19: #{transformer_forward.26} parent=0 // pred_check_branch
    %81 = sbr.rel (0) target = $region21
  $region20: #{transformer_forward.26} parent=0 // pred_region
    _
  $region21: #{transformer_forward.26} parent=0 // pred_fallthru
    _

// kernel: transformer_forward.22
$region0: #{transformer_forward.22}
  #allocation0 [shape = 'u32[]', space=smem, size = 0x4, offset = 0x4, fixed_abs, tag = 'smem constant byte address 0x4 - core index']
  #allocation1 [shape = 'u32[144,128]{1,0:T(1,128)}', space=vmem, size = 0x12000, scoped, tag = 'internal scratch']
  #allocation2 [shape = 'f32[16,64]{1,0:T(8,128)}', space=vmem, size = 0x2000, scoped, tag = 'scratch operand']
  #allocation3 [shape = 'f32[16,64]{1,0:T(8,128)}', space=vmem, size = 0x2000, scoped, tag = 'scratch operand']
  %s0 = inlined_call_operand.vmem [shape: f32[16,64], index: 0, kind: input, shape index: {}]
  %s1 = inlined_call_operand.vmem [shape: f32[1,64], index: 1, kind: input, shape index: {}]
  %s2 = inlined_call_operand.vmem [shape: f32[1,64], index: 2, kind: input, shape index: {}]
  %s3 = inlined_call_operand.vmem [shape: f32[64,128], index: 3, kind: input, shape index: {}]
  %s4 = inlined_call_operand.vmem [shape: f32[1,128], index: 4, kind: input, shape index: {}]
  %s5 = inlined_call_operand.vmem [shape: f32[128,64], index: 5, kind: input, shape index: {}]
  %s6 = inlined_call_operand.vmem [shape: f32[1,64], index: 6, kind: input, shape index: {}]
  %s7 = inlined_call_operand.vmem [shape: f32[16,64], index: 7, kind: output, shape index: {}]
  %s8 = sld [smem:[#allocation0]]
  $region46: #{transformer_forward.22} parent=0
    _
  %s10 = ssub.s32 1, %s8
  %s11 = scalar_select 0, %s10, %s8
  // Predicated region
  $region2: #{transformer_forward.22} parent=0 // pred_check
    _
  $region3: #{transformer_forward.22} parent=0 // pred_check_branch
    %13 = sbr.rel (0) target = $region5
  $region4: #{transformer_forward.22} parent=0 // pred_region
    _
  $region5: #{transformer_forward.22} parent=0 // pred_fallthru
    _
  // Predicated region
  $region6: #{transformer_forward.22} parent=0 // pred_check
    _
  $region7: #{transformer_forward.22} parent=0 // pred_check_branch
    %15 = sbr.rel (0) target = $region9
  $region8: #{transformer_forward.22} parent=0 // pred_region
    _
  $region9: #{transformer_forward.22} parent=0 // pred_fallthru
    _
  // Predicated region
  $region10: #{transformer_forward.22} parent=0 // pred_check
    _
  $region11: #{transformer_forward.22} parent=0 // pred_check_branch
    %17 = sbr.rel (0) target = $region13
  $region12: #{transformer_forward.22} parent=0 // pred_region
    _
  $region13: #{transformer_forward.22} parent=0 // pred_fallthru
    _
  // Predicated region
  $region14: #{transformer_forward.22} parent=0 // pred_check
    _
  $region15: #{transformer_forward.22} parent=0 // pred_check_branch
    %19 = sbr.rel (0) target = $region17
  $region16: #{transformer_forward.22} parent=0 // pred_region
    _
  $region17: #{transformer_forward.22} parent=0 // pred_fallthru
    _
  // Predicated region
  $region18: #{transformer_forward.22} parent=0 // pred_check
    _
  $region19: #{transformer_forward.22} parent=0 // pred_check_branch
    %21 = sbr.rel (0) target = $region21
  $region20: #{transformer_forward.22} parent=0 // pred_region
    _
  $region21: #{transformer_forward.22} parent=0 // pred_fallthru
    _
  // Predicated region
  $region22: #{transformer_forward.22} parent=0 // pred_check
    _
  $region23: #{transformer_forward.22} parent=0 // pred_check_branch
    %23 = sbr.rel (0) target = $region25
  $region24: #{transformer_forward.22} parent=0 // pred_region
    _
  $region25: #{transformer_forward.22} parent=0 // pred_fallthru
    _
  // Predicated region
  $region26: #{transformer_forward.22} parent=0 // pred_check
    _
  $region27: #{transformer_forward.22} parent=0 // pred_check_branch
    %25 = sbr.rel (0) target = $region29
  $region28: #{transformer_forward.22} parent=0 // pred_region
    _
  $region29: #{transformer_forward.22} parent=0 // pred_fallthru
    _
  %p26 = scmp.eq.s32.totalorder 0, 0
  // Predicated region
  $region30: #{transformer_forward.22} parent=0 // pred_check
    %p27 = pneg %p26
  $region31: #{transformer_forward.22} parent=0 // pred_check_branch
    %29 = sbr.rel (%p27) target = $region33
  $region32: #{transformer_forward.22} parent=0 // pred_region
    %v30 = vld [vmem:[%s0] sm:$0xff]
    %v31 = vld [vmem:[%s0 + $0x8] sm:$0xff]
    %v32 = vld [vmem:[%s1] sm:$0x1]
    %v33 = vld [vmem:[%s2] sm:$0x1]
    %vm34 = vcmask 523264
    %v35 = vsel %vm34, %v30, 0.0
    %36 = vadd.xlane.f32.xlu0 %v35
    %v37 = vpop.xlane.xlu0 %36
    %v38 = vsel %vm34, %v31, 0.0
    %39 = vadd.xlane.f32.xlu0 %v38
    %v40 = vpop.xlane.xlu0 %39
    %v41 = vrcp.pop 64.0
    %v42 = vmul.f32 %v37, %v41
    %v43 = vmul.f32 %v40, %v41
    %v44 = vsub.f32 %v30, %v42
    %v45 = vsub.f32 %v31, %v43
    %v46 = vmul.f32 %v44, %v44
    %v47 = vmul.f32 %v45, %v45
    %v48 = vsel %vm34, %v46, 0.0
    %49 = vadd.xlane.f32.xlu0 %v48
    %v50 = vpop.xlane.xlu0 %49
    %v51 = vsel %vm34, %v47, 0.0
    %52 = vadd.xlane.f32.xlu0 %v51
    %v53 = vpop.xlane.xlu0 %52
    %v54 = vmul.f32 %v50, 0.015873017
    %v55 = vmul.f32 %v53, 0.015873017
    %v56 = vrsqrt.pop %v54
    %v57 = vmul.f32 %v54, %v56
    %vm58 = vcmp.eq.f32.partialorder %v54, inf
    %v59 = vsel %vm58, %v54, %v57
    %vm60 = vcmp.eq.f32.partialorder %v54, 0.0
    %v61 = vand.u32 %v54, 2147483648
    %v62 = vsel %vm60, %v61, %v59
    %v63 = vrsqrt.pop %v55
    %v64 = vmul.f32 %v55, %v63
    %vm65 = vcmp.eq.f32.partialorder %v55, inf
    %v66 = vsel %vm65, %v55, %v64
    %vm67 = vcmp.eq.f32.partialorder %v55, 0.0
    %v68 = vand.u32 %v55, 2147483648
    %v69 = vsel %vm67, %v68, %v66
    %v70 = vadd.f32 %v62, 1e-06
    %v71 = vadd.f32 %v69, 1e-06
    %v72 = vrcp.pop %v70
    %v73 = vrcp.pop %v71
    %v75 = vlaneseq
    %v76 = vshrl.u32 %v75, 7
    %v77 = vsub.s32 0, %v76
    %v78 = vrot.slane %v32, %v77
    %v80 = vmul.f32 %v78, %v44
    %v81 = vmul.f32 %v78, %v45
    %v82 = vmul.f32 %v80, %v72
    %v83 = vmul.f32 %v81, %v73
    %v85 = vlaneseq
    %v86 = vshrl.u32 %v85, 7
    %v87 = vsub.s32 0, %v86
    %v88 = vrot.slane %v33, %v87
    %v90 = vadd.f32 %v82, %v88
    %v91 = vadd.f32 %v83, %v88
    %92 = vst.msk [vmem:[#allocation2] sm:$0xff] %vm34, %v90
    %93 = vst.msk [vmem:[#allocation2 + $0x8] sm:$0xff] %vm34, %v91
    %94 = vst.msk [vmem:[#allocation3] sm:$0xff] %vm34, 0.0
    %95 = vst.msk [vmem:[#allocation3 + $0x8] sm:$0xff] %vm34, 0.0
  $region33: #{transformer_forward.22} parent=0 // pred_fallthru
    _
  %v96 = vld [vmem:[#allocation2] sm:$0xff]
  %v97 = vld [vmem:[#allocation2 + $0x8] sm:$0xff]
  %v98 = vld [vmem:[%s3] sm:$0xff]
  %v99 = vld [vmem:[%s3 + $0x8] sm:$0xff]
  %v100 = vld [vmem:[%s3 + $0x10] sm:$0xff]
  %v101 = vld [vmem:[%s3 + $0x18] sm:$0xff]
  %v102 = vld [vmem:[%s3 + $0x20] sm:$0xff]
  %v103 = vld [vmem:[%s3 + $0x28] sm:$0xff]
  %v104 = vld [vmem:[%s3 + $0x30] sm:$0xff]
  %v105 = vld [vmem:[%s3 + $0x38] sm:$0xff]
  %v106 = vld [vmem:[%s4] sm:$0x1]
  %v108 = vlaneseq
  %v109 = vshrl.u32 %v108, 7
  %v110 = vsub.s32 0, %v109
  %v111 = vrot.slane %v106, %v110
  %vm113 = vcmask 523264
  %v115 = vsel %vm113, %v96, 0
  %v118 = vsel %vm113, %v97, 0
  %120 = vmatprep.subr.mxu0 0.0
  %121 = vmatpush1.msra.mxu0 %v98
  %122 = vmatprep.subr.mxu0 0.0
  %123 = vmatpush1.msra.mxu0 %v99
  %124 = vmatprep.subr.mxu0 0.0
  %125 = vmatpush1.msra.mxu0 %v100
  %126 = vmatprep.subr.mxu0 0.0
  %127 = vmatpush1.msra.mxu0 %v101
  %128 = vmatprep.subr.mxu0 0.0
  %129 = vmatpush1.msra.mxu0 %v102
  %130 = vmatprep.subr.mxu0 0.0
  %131 = vmatpush1.msra.mxu0 %v103
  %132 = vmatprep.subr.mxu0 0.0
  %133 = vmatpush1.msra.mxu0 %v104
  %134 = vmatprep.subr.mxu0 0.0
  %135 = vmatpush1.msra.mxu0 %v105
  %136 = vmatprep.subr.mxu0 0.0
  %137 = vmatpush1.msra.mxu0 0.0
  %138 = vmatprep.subr.mxu0 0.0
  %139 = vmatpush1.msra.mxu0 0.0
  %140 = vmatprep.subr.mxu0 0.0
  %141 = vmatpush1.msra.mxu0 0.0
  %142 = vmatprep.subr.mxu0 0.0
  %143 = vmatpush1.msra.mxu0 0.0
  %144 = vmatprep.subr.mxu0 0.0
  %145 = vmatpush1.msra.mxu0 0.0
  %146 = vmatprep.subr.mxu0 0.0
  %147 = vmatpush1.msra.mxu0 0.0
  %148 = vmatprep.subr.mxu0 0.0
  %149 = vmatpush1.msra.mxu0 0.0
  %150 = vmatprep.subr.mxu0 0.0
  %151 = vmatpush1.msra.mxu0 0.0
  %152 = vmatprep.subr.mxu0 0.0
  %153 = vmatpush1.msra.mxu0 0.0
  %154 = vmatprep.subr.mxu0 0.0
  %155 = vmatpush1.msra.mxu0 0.0
  %156 = vmatprep.subr.mxu0 0.0
  %157 = vmatpush1.msra.mxu0 0.0
  %158 = vmatprep.subr.mxu0 0.0
  %159 = vmatpush1.msra.mxu0 0.0
  %160 = vmatprep.subr.mxu0 0.0
  %161 = vmatpush1.msra.mxu0 0.0
  %162 = vmatprep.subr.mxu0 0.0
  %163 = vmatpush1.msra.mxu0 0.0
  %164 = vmatprep.subr.mxu0 0.0
  %165 = vmatpush1.msra.mxu0 0.0
  %166 = vmatprep.subr.mxu0 0.0
  %167 = vmatpush1.msra.mxu0 0.0
  %168 = vmatprep.subr.mxu0 0.0
  %169 = vmatpush1.msra.mxu0 0.0
  %170 = vmatprep.subr.mxu0 0.0
  %171 = vmatpush1.msra.mxu0 0.0
  %172 = vmatprep.subr.mxu0 0.0
  %173 = vmatpush1.msra.mxu0 0.0
  %174 = vmatprep.subr.mxu0 0.0
  %175 = vmatpush1.msra.mxu0 0.0
  %176 = vmatprep.subr.mxu0 0.0
  %177 = vmatpush1.msra.mxu0 0.0
  %178 = vmatprep.subr.mxu0 0.0
  %179 = vmatpush1.msra.mxu0 0.0
  %180 = vmatprep.subr.mxu0 0.0
  %181 = vmatpush1.msra.mxu0 0.0
  %182 = vmatprep.subr.mxu0 0.0
  %183 = vmatpush1.msra.mxu0 0.0
  %184 = vmatprep.mubr.f32.mxu0 0.0
  %185 = vmatmul.mubr.f32.gmra.mrb[0].mxu0 %v115
  %v186 = vpop.f32.mrb[0].mxu0
  %v187 = vadd.f32 %v111, %v186
  %v188 = vpop.f32.mrb[0].mxu0
  %189 = vmatprep.mubr.f32.mxu0 0.0
  %190 = vmatmul.mubr.f32.gmra.mrb[0].mxu0 %v118
  %v191 = vpop.f32.mrb[0].mxu0
  %v192 = vadd.f32 %v111, %v191
  %v193 = vpop.f32.mrb[0].mxu0
  %194 = vdwg.mxu0
  %v195 = vmax.f32 %v187, 0.0
  %v196 = vmax.f32 %v192, 0.0
  %v197 = vld [vmem:[#allocation3] sm:$0xff]
  %v198 = vld [vmem:[#allocation3 + $0x8] sm:$0xff]
  %v199 = vld [vmem:[%s5] sm:$0xff]
  %v200 = vld [vmem:[%s5 + $0x8] sm:$0xff]
  %v201 = vld [vmem:[%s5 + $0x10] sm:$0xff]
  %v202 = vld [vmem:[%s5 + $0x18] sm:$0xff]
  %v203 = vld [vmem:[%s5 + $0x20] sm:$0xff]
  %v204 = vld [vmem:[%s5 + $0x28] sm:$0xff]
  %v205 = vld [vmem:[%s5 + $0x30] sm:$0xff]
  %v206 = vld [vmem:[%s5 + $0x38] sm:$0xff]
  %v207 = vld [vmem:[%s5 + $0x40] sm:$0xff]
  %v208 = vld [vmem:[%s5 + $0x48] sm:$0xff]
  %v209 = vld [vmem:[%s5 + $0x50] sm:$0xff]
  %v210 = vld [vmem:[%s5 + $0x58] sm:$0xff]
  %v211 = vld [vmem:[%s5 + $0x60] sm:$0xff]
  %v212 = vld [vmem:[%s5 + $0x68] sm:$0xff]
  %v213 = vld [vmem:[%s5 + $0x70] sm:$0xff]
  %v214 = vld [vmem:[%s5 + $0x78] sm:$0xff]
  %215 = vmatprep.subr.mxu0 0.0
  %216 = vmatpush1.msra.mxu0 %v199
  %217 = vmatprep.subr.mxu0 0.0
  %218 = vmatpush1.msra.mxu0 %v200
  %219 = vmatprep.subr.mxu0 0.0
  %220 = vmatpush1.msra.mxu0 %v201
  %221 = vmatprep.subr.mxu0 0.0
  %222 = vmatpush1.msra.mxu0 %v202
  %223 = vmatprep.subr.mxu0 0.0
  %224 = vmatpush1.msra.mxu0 %v203
  %225 = vmatprep.subr.mxu0 0.0
  %226 = vmatpush1.msra.mxu0 %v204
  %227 = vmatprep.subr.mxu0 0.0
  %228 = vmatpush1.msra.mxu0 %v205
  %229 = vmatprep.subr.mxu0 0.0
  %230 = vmatpush1.msra.mxu0 %v206
  %231 = vmatprep.subr.mxu0 0.0
  %232 = vmatpush1.msra.mxu0 %v207
  %233 = vmatprep.subr.mxu0 0.0
  %234 = vmatpush1.msra.mxu0 %v208
  %235 = vmatprep.subr.mxu0 0.0
  %236 = vmatpush1.msra.mxu0 %v209
  %237 = vmatprep.subr.mxu0 0.0
  %238 = vmatpush1.msra.mxu0 %v210
  %239 = vmatprep.subr.mxu0 0.0
  %240 = vmatpush1.msra.mxu0 %v211
  %241 = vmatprep.subr.mxu0 0.0
  %242 = vmatpush1.msra.mxu0 %v212
  %243 = vmatprep.subr.mxu0 0.0
  %244 = vmatpush1.msra.mxu0 %v213
  %245 = vmatprep.subr.mxu0 0.0
  %246 = vmatpush1.msra.mxu0 %v214
  %247 = vmatprep.subr.mxu0 0.0
  %248 = vmatpush1.msra.mxu0 0.0
  %249 = vmatprep.subr.mxu0 0.0
  %250 = vmatpush1.msra.mxu0 0.0
  %251 = vmatprep.subr.mxu0 0.0
  %252 = vmatpush1.msra.mxu0 0.0
  %253 = vmatprep.subr.mxu0 0.0
  %254 = vmatpush1.msra.mxu0 0.0
  %255 = vmatprep.subr.mxu0 0.0
  %256 = vmatpush1.msra.mxu0 0.0
  %257 = vmatprep.subr.mxu0 0.0
  %258 = vmatpush1.msra.mxu0 0.0
  %259 = vmatprep.subr.mxu0 0.0
  %260 = vmatpush1.msra.mxu0 0.0
  %261 = vmatprep.subr.mxu0 0.0
  %262 = vmatpush1.msra.mxu0 0.0
  %263 = vmatprep.subr.mxu0 0.0
  %264 = vmatpush1.msra.mxu0 0.0
  %265 = vmatprep.subr.mxu0 0.0
  %266 = vmatpush1.msra.mxu0 0.0
  %267 = vmatprep.subr.mxu0 0.0
  %268 = vmatpush1.msra.mxu0 0.0
  %269 = vmatprep.subr.mxu0 0.0
  %270 = vmatpush1.msra.mxu0 0.0
  %271 = vmatprep.subr.mxu0 0.0
  %272 = vmatpush1.msra.mxu0 0.0
  %273 = vmatprep.subr.mxu0 0.0
  %274 = vmatpush1.msra.mxu0 0.0
  %275 = vmatprep.subr.mxu0 0.0
  %276 = vmatpush1.msra.mxu0 0.0
  %277 = vmatprep.subr.mxu0 0.0
  %278 = vmatpush1.msra.mxu0 0.0
  %279 = vmatprep.mubr.f32.mxu0 0.0
  %280 = vmatmul.mubr.f32.gmra.mrb[0].mxu0 %v195
  %v281 = vpop.f32.mrb[0].mxu0
  %v282 = vadd.f32 0.0, %v281
  %v283 = vpop.f32.mrb[0].mxu0
  %284 = vmatprep.mubr.f32.mxu0 0.0
  %285 = vmatmul.mubr.f32.gmra.mrb[0].mxu0 %v196
  %v286 = vpop.f32.mrb[0].mxu0
  %v287 = vadd.f32 0.0, %v286
  %v288 = vpop.f32.mrb[0].mxu0
  %289 = vdwg.mxu0
  %v290 = vadd.f32 %v197, %v282
  %v291 = vadd.f32 %v198, %v287
  %292 = vst.msk [vmem:[#allocation3] sm:$0xff] %vm113, %v290
  %293 = vst.msk [vmem:[#allocation3 + $0x8] sm:$0xff] %vm113, %v291
  // Predicated region
  $region34: #{transformer_forward.22} parent=0 // pred_check
    %p294 = pneg %p26
  $region35: #{transformer_forward.22} parent=0 // pred_check_branch
    %296 = sbr.rel (%p294) target = $region37
  $region36: #{transformer_forward.22} parent=0 // pred_region
    %v297 = vld [vmem:[%s0] sm:$0xff]
    %v298 = vld [vmem:[%s0 + $0x8] sm:$0xff]
    %v299 = vld [vmem:[#allocation3] sm:$0xff]
    %v300 = vld [vmem:[#allocation3 + $0x8] sm:$0xff]
    %v301 = vadd.f32 %v297, %v299
    %v302 = vadd.f32 %v298, %v300
    %v303 = vld [vmem:[%s6] sm:$0x1]
    %v305 = vlaneseq
    %v306 = vshrl.u32 %v305, 7
    %v307 = vsub.s32 0, %v306
    %v308 = vrot.slane %v303, %v307
    %v310 = vadd.f32 %v301, %v308
    %v311 = vadd.f32 %v302, %v308
    %312 = vst.msk [vmem:[%s7] sm:$0xff] %vm113, %v310
    %313 = vst.msk [vmem:[%s7 + $0x8] sm:$0xff] %vm113, %v311
  $region37: #{transformer_forward.22} parent=0 // pred_fallthru
    _
  // Predicated region
  $region38: #{transformer_forward.22} parent=0 // pred_check
    _
  $region39: #{transformer_forward.22} parent=0 // pred_check_branch
    %315 = sbr.rel (0) target = $region41
  $region40: #{transformer_forward.22} parent=0 // pred_region
    _
  $region41: #{transformer_forward.22} parent=0 // pred_fallthru
    _
  // Predicated region
  $region42: #{transformer_forward.22} parent=0 // pred_check
    _
  $region43: #{transformer_forward.22} parent=0 // pred_check_branch
    %317 = sbr.rel (0) target = $region45
  $region44: #{transformer_forward.22} parent=0 // pred_region
    _
  $region45: #{transformer_forward.22} parent=0 // pred_fallthru
    _

// kernel: transformer_forward.20
$region0: #{transformer_forward.20}
  #allocation0 [shape = 'u32[]', space=smem, size = 0x4, offset = 0x4, fixed_abs, tag = 'smem constant byte address 0x4 - core index']
  #allocation1 [shape = 'u32[144,128]{1,0:T(1,128)}', space=vmem, size = 0x12000, scoped, tag = 'internal scratch']
  %s0 = inlined_call_operand.vmem [shape: f32[16,64], index: 0, kind: input, shape index: {}]
  %s1 = inlined_call_operand.vmem [shape: f32[1,64], index: 1, kind: input, shape index: {}]
  %s2 = inlined_call_operand.vmem [shape: f32[1,64], index: 2, kind: input, shape index: {}]
  %s3 = inlined_call_operand.vmem [shape: f32[64,192], index: 3, kind: input, shape index: {}]
  %s4 = inlined_call_operand.vmem [shape: f32[1,192], index: 4, kind: input, shape index: {}]
  %s5 = inlined_call_operand.vmem [shape: f32[16,192], index: 5, kind: output, shape index: {}]
  %s6 = sld [smem:[#allocation0]]
  $region30: #{transformer_forward.20} parent=0
    _
  %s8 = ssub.s32 1, %s6
  %s9 = scalar_select 0, %s8, %s6
  // Predicated region
  $region2: #{transformer_forward.20} parent=0 // pred_check
    _
  $region3: #{transformer_forward.20} parent=0 // pred_check_branch
    %11 = sbr.rel (0) target = $region5
  $region4: #{transformer_forward.20} parent=0 // pred_region
    _
  $region5: #{transformer_forward.20} parent=0 // pred_fallthru
    _
  // Predicated region
  $region6: #{transformer_forward.20} parent=0 // pred_check
    _
  $region7: #{transformer_forward.20} parent=0 // pred_check_branch
    %13 = sbr.rel (0) target = $region9
  $region8: #{transformer_forward.20} parent=0 // pred_region
    _
  $region9: #{transformer_forward.20} parent=0 // pred_fallthru
    _
  // Predicated region
  $region10: #{transformer_forward.20} parent=0 // pred_check
    _
  $region11: #{transformer_forward.20} parent=0 // pred_check_branch
    %15 = sbr.rel (0) target = $region13
  $region12: #{transformer_forward.20} parent=0 // pred_region
    _
  $region13: #{transformer_forward.20} parent=0 // pred_fallthru
    _
  // Predicated region
  $region14: #{transformer_forward.20} parent=0 // pred_check
    _
  $region15: #{transformer_forward.20} parent=0 // pred_check_branch
    %17 = sbr.rel (0) target = $region17
  $region16: #{transformer_forward.20} parent=0 // pred_region
    _
  $region17: #{transformer_forward.20} parent=0 // pred_fallthru
    _
  // Predicated region
  $region18: #{transformer_forward.20} parent=0 // pred_check
    _
  $region19: #{transformer_forward.20} parent=0 // pred_check_branch
    %19 = sbr.rel (0) target = $region21
  $region20: #{transformer_forward.20} parent=0 // pred_region
    _
  $region21: #{transformer_forward.20} parent=0 // pred_fallthru
    _
  %v20 = vld [vmem:[%s0] sm:$0xff]
  %v21 = vld [vmem:[%s0 + $0x8] sm:$0xff]
  %v22 = vld [vmem:[%s1] sm:$0x1]
  %v23 = vld [vmem:[%s2] sm:$0x1]
  %vm24 = vcmask 523264
  %v25 = vsel %vm24, %v20, 0.0
  %26 = vadd.xlane.f32.xlu0 %v25
  %v27 = vpop.xlane.xlu0 %26
  %v28 = vsel %vm24, %v21, 0.0
  %29 = vadd.xlane.f32.xlu0 %v28
  %v30 = vpop.xlane.xlu0 %29
  %v31 = vrcp.pop 64.0
  %v32 = vmul.f32 %v27, %v31
  %v33 = vmul.f32 %v30, %v31
  %v34 = vsub.f32 %v20, %v32
  %v35 = vsub.f32 %v21, %v33
  %v36 = vmul.f32 %v34, %v34
  %v37 = vmul.f32 %v35, %v35
  %v38 = vsel %vm24, %v36, 0.0
  %39 = vadd.xlane.f32.xlu0 %v38
  %v40 = vpop.xlane.xlu0 %39
  %v41 = vsel %vm24, %v37, 0.0
  %42 = vadd.xlane.f32.xlu0 %v41
  %v43 = vpop.xlane.xlu0 %42
  %v44 = vmul.f32 %v40, 0.015873017
  %v45 = vmul.f32 %v43, 0.015873017
  %v46 = vrsqrt.pop %v44
  %v47 = vmul.f32 %v44, %v46
  %vm48 = vcmp.eq.f32.partialorder %v44, inf
  %v49 = vsel %vm48, %v44, %v47
  %vm50 = vcmp.eq.f32.partialorder %v44, 0.0
  %v51 = vand.u32 %v44, 2147483648
  %v52 = vsel %vm50, %v51, %v49
  %v53 = vrsqrt.pop %v45
  %v54 = vmul.f32 %v45, %v53
  %vm55 = vcmp.eq.f32.partialorder %v45, inf
  %v56 = vsel %vm55, %v45, %v54
  %vm57 = vcmp.eq.f32.partialorder %v45, 0.0
  %v58 = vand.u32 %v45, 2147483648
  %v59 = vsel %vm57, %v58, %v56
  %v60 = vadd.f32 %v52, 1e-06
  %v61 = vadd.f32 %v59, 1e-06
  %v62 = vrcp.pop %v60
  %v63 = vrcp.pop %v61
  %v65 = vlaneseq
  %v66 = vshrl.u32 %v65, 7
  %v67 = vsub.s32 0, %v66
  %v68 = vrot.slane %v22, %v67
  %v70 = vmul.f32 %v68, %v34
  %v71 = vmul.f32 %v68, %v35
  %v72 = vmul.f32 %v70, %v62
  %v73 = vmul.f32 %v71, %v63
  %v75 = vlaneseq
  %v76 = vshrl.u32 %v75, 7
  %v77 = vsub.s32 0, %v76
  %v78 = vrot.slane %v23, %v77
  %v80 = vadd.f32 %v72, %v78
  %v81 = vadd.f32 %v73, %v78
  %v82 = vld [vmem:[%s3] sm:$0xff]
  %v83 = vld [vmem:[%s3 + $0x8] sm:$0xff]
  %v84 = vld [vmem:[%s3 + $0x10] sm:$0xff]
  %v85 = vld [vmem:[%s3 + $0x18] sm:$0xff]
  %v86 = vld [vmem:[%s3 + $0x20] sm:$0xff]
  %v87 = vld [vmem:[%s3 + $0x28] sm:$0xff]
  %v88 = vld [vmem:[%s3 + $0x30] sm:$0xff]
  %v89 = vld [vmem:[%s3 + $0x38] sm:$0xff]
  %v90 = vld [vmem:[%s3 + $0x40] sm:$0xff]
  %v91 = vld [vmem:[%s3 + $0x48] sm:$0xff]
  %v92 = vld [vmem:[%s3 + $0x50] sm:$0xff]
  %v93 = vld [vmem:[%s3 + $0x58] sm:$0xff]
  %v94 = vld [vmem:[%s3 + $0x60] sm:$0xff]
  %v95 = vld [vmem:[%s3 + $0x68] sm:$0xff]
  %v96 = vld [vmem:[%s3 + $0x70] sm:$0xff]
  %v97 = vld [vmem:[%s3 + $0x78] sm:$0xff]
  %v98 = vld [vmem:[%s4] sm:$0x3]
  %v100 = vlaneseq
  %v101 = vshrl.u32 %v100, 7
  %v102 = vsub.s32 0, %v101
  %v103 = vrot.slane %v98, %v102
  %v104 = vlaneseq
  %v105 = vshrl.u32 %v104, 7
  %v106 = vsub.s32 1, %v105
  %v107 = vrot.slane %v98, %v106
  %v111 = vsel %vm24, %v80, 0
  %v114 = vsel %vm24, %v81, 0
  %116 = vmatprep.subr.mxu0 %v83
  %117 = vmatpush1.msra.mxu0 %v82
  %118 = vmatprep.subr.mxu0 %v85
  %119 = vmatpush1.msra.mxu0 %v84
  %120 = vmatprep.subr.mxu0 %v87
  %121 = vmatpush1.msra.mxu0 %v86
  %122 = vmatprep.subr.mxu0 %v89
  %123 = vmatpush1.msra.mxu0 %v88
  %124 = vmatprep.subr.mxu0 %v91
  %125 = vmatpush1.msra.mxu0 %v90
  %126 = vmatprep.subr.mxu0 %v93
  %127 = vmatpush1.msra.mxu0 %v92
  %128 = vmatprep.subr.mxu0 %v95
  %129 = vmatpush1.msra.mxu0 %v94
  %130 = vmatprep.subr.mxu0 %v97
  %131 = vmatpush1.msra.mxu0 %v96
  %132 = vmatprep.subr.mxu0 0.0
  %133 = vmatpush1.msra.mxu0 0.0
  %134 = vmatprep.subr.mxu0 0.0
  %135 = vmatpush1.msra.mxu0 0.0
  %136 = vmatprep.subr.mxu0 0.0
  %137 = vmatpush1.msra.mxu0 0.0
  %138 = vmatprep.subr.mxu0 0.0
  %139 = vmatpush1.msra.mxu0 0.0
  %140 = vmatprep.subr.mxu0 0.0
  %141 = vmatpush1.msra.mxu0 0.0
  %142 = vmatprep.subr.mxu0 0.0
  %143 = vmatpush1.msra.mxu0 0.0
  %144 = vmatprep.subr.mxu0 0.0
  %145 = vmatpush1.msra.mxu0 0.0
  %146 = vmatprep.subr.mxu0 0.0
  %147 = vmatpush1.msra.mxu0 0.0
  %148 = vmatprep.subr.mxu0 0.0
  %149 = vmatpush1.msra.mxu0 0.0
  %150 = vmatprep.subr.mxu0 0.0
  %151 = vmatpush1.msra.mxu0 0.0
  %152 = vmatprep.subr.mxu0 0.0
  %153 = vmatpush1.msra.mxu0 0.0
  %154 = vmatprep.subr.mxu0 0.0
  %155 = vmatpush1.msra.mxu0 0.0
  %156 = vmatprep.subr.mxu0 0.0
  %157 = vmatpush1.msra.mxu0 0.0
  %158 = vmatprep.subr.mxu0 0.0
  %159 = vmatpush1.msra.mxu0 0.0
  %160 = vmatprep.subr.mxu0 0.0
  %161 = vmatpush1.msra.mxu0 0.0
  %162 = vmatprep.subr.mxu0 0.0
  %163 = vmatpush1.msra.mxu0 0.0
  %164 = vmatprep.subr.mxu0 0.0
  %165 = vmatpush1.msra.mxu0 0.0
  %166 = vmatprep.subr.mxu0 0.0
  %167 = vmatpush1.msra.mxu0 0.0
  %168 = vmatprep.subr.mxu0 0.0
  %169 = vmatpush1.msra.mxu0 0.0
  %170 = vmatprep.subr.mxu0 0.0
  %171 = vmatpush1.msra.mxu0 0.0
  %172 = vmatprep.subr.mxu0 0.0
  %173 = vmatpush1.msra.mxu0 0.0
  %174 = vmatprep.subr.mxu0 0.0
  %175 = vmatpush1.msra.mxu0 0.0
  %176 = vmatprep.subr.mxu0 0.0
  %177 = vmatpush1.msra.mxu0 0.0
  %178 = vmatprep.subr.mxu0 0.0
  %179 = vmatpush1.msra.mxu0 0.0
  %180 = vmatprep.mubr.f32.mxu0 0.0
  %181 = vmatmul.mubr.f32.gmra.mrb[0].mxu0 %v111
  %v182 = vpop.f32.mrb[0].mxu0
  %v183 = vadd.f32 %v103, %v182
  %v184 = vpop.f32.mrb[0].mxu0
  %v185 = vadd.f32 %v107, %v184
  %186 = vmatprep.mubr.f32.mxu0 0.0
  %187 = vmatmul.mubr.f32.gmra.mrb[0].mxu0 %v114
  %v188 = vpop.f32.mrb[0].mxu0
  %v189 = vadd.f32 %v103, %v188
  %v190 = vpop.f32.mrb[0].mxu0
  %v191 = vadd.f32 %v107, %v190
  %192 = vdwg.mxu0
  %193 = vst [vmem:[%s5] sm:$0xff] %v183
  %194 = vst.msk [vmem:[%s5 + $0x8] sm:$0xff] %vm24, %v185
  %195 = vst [vmem:[%s5 + $0x10] sm:$0xff] %v189
  %196 = vst.msk [vmem:[%s5 + $0x18] sm:$0xff] %vm24, %v191
  // Predicated region
  $region22: #{transformer_forward.20} parent=0 // pred_check
    _
  $region23: #{transformer_forward.20} parent=0 // pred_check_branch
    %198 = sbr.rel (0) target = $region25
  $region24: #{transformer_forward.20} parent=0 // pred_region
    _
  $region25: #{transformer_forward.20} parent=0 // pred_fallthru
    _
  // Predicated region
  $region26: #{transformer_forward.20} parent=0 // pred_check
    _
  $region27: #{transformer_forward.20} parent=0 // pred_check_branch
    %200 = sbr.rel (0) target = $region29
  $region28: #{transformer_forward.20} parent=0 // pred_region
    _
  $region29: #{transformer_forward.20} parent=0 // pred_fallthru
    _

// kernel: transformer_forward.21
$region0: #{transformer_forward.21}
  #allocation0 [shape = 'u32[]', space=smem, size = 0x4, offset = 0x4, fixed_abs, tag = 'smem constant byte address 0x4 - core index']
  #allocation1 [shape = 'u32[144,128]{1,0:T(1,128)}', space=vmem, size = 0x12000, scoped, tag = 'internal scratch']
  %s0 = inlined_call_operand.vmem [shape: f32[2,8,64], index: 0, kind: input, shape index: {}]
  %s1 = inlined_call_operand.vmem [shape: f32[2,8,64], index: 1, kind: input, shape index: {}]
  %s2 = inlined_call_operand.vmem [shape: f32[2,8,64], index: 2, kind: input, shape index: {}]
  %s3 = inlined_call_operand.vmem [shape: f32[2,8,8], index: 3, kind: input, shape index: {}]
  %s4 = inlined_call_operand.vmem [shape: f32[64,64], index: 4, kind: input, shape index: {}]
  %s5 = inlined_call_operand.vmem [shape: f32[1,64], index: 5, kind: input, shape index: {}]
  %s6 = inlined_call_operand.vmem [shape: f32[2,8,64], index: 6, kind: input, shape index: {}]
  %s7 = inlined_call_operand.vmem [shape: f32[2,8,64], index: 7, kind: output, shape index: {}]
  %s8 = sld [smem:[#allocation0]]
  $region61: #{transformer_forward.21} parent=0
    _
  %s10 = ssub.s32 1, %s8
  %s11 = scalar_select 0, %s10, %s8
  loop: start=0, step=1, limit=4
  $region2: #{transformer_forward.21} parent=0 // loop_pre_header
    _
  $region3: #{transformer_forward.21} parent=0 // loop_header
    %s13 = sphi 0, %s17
    %p14 = scmp.ge.s32.totalorder %s13, 4
    %s23 = sphi 0, %s25
    %s26 = sphi 0, %s23
    %s27 = sphi 0, %s26
    %s43 = sphi 0, %s27
    %s49 = sphi 0, %s51
    %s52 = sphi 0, %s49
    %s53 = sphi 0, %s52
    %s69 = sphi 0, %s53
    %s75 = sphi 0, %s77
    %s78 = sphi 0, %s75
    %s79 = sphi 0, %s78
    %s95 = sphi 0, %s79
    %s101 = sphi 0, %s103
    %s104 = sphi 0, %s101
    %s105 = sphi 0, %s104
    %s121 = sphi 0, %s105
    %s125 = sphi 0, %s125
    %s127 = sphi 0, %s125
    %s128 = sphi 0, %s127
    %s142 = sphi 0, %s128
    %s146 = sphi 0, %s146
    %s148 = sphi 0, %s146
    %s149 = sphi 0, %s148
    %s163 = sphi 0, %s149
    %s169 = sphi 0, %s171
    %s172 = sphi 0, %s169
    %s173 = sphi 0, %s172
    %s189 = sphi 0, %s173
    %s195 = sphi 0, %s197
    %s198 = sphi 0, %s195
    %s199 = sphi 0, %s198
    %s215 = sphi 0, %s199
  $region4: #{transformer_forward.21} parent=0 // loop_header_branch
    %16 = sbr.rel (%p14) target = $region8
  $region5: #{transformer_forward.21} parent=0 // loop_body
    %s18 = ssub.s32 %s13, 1
    %s19 = ssub.s32 %s13, 2
    %s20 = sadd.s32 %s13, 1
    %s21 = ssub.s32 %s13, %s20
    %p22 = scmp.eq.s32.totalorder %s21, 0
    %s24 = sadd.s32 %s23, 1
    %s25 = scalar_select %p22, %s23, %s24
    %p28 = pneg %p22
    %p29 = scmp.eq.s32.totalorder %s13, 1
    %p30 = por %p28, %p29
    %p31 = scmp.ne.s32.totalorder %s23, %s26
    %p32 = scmp.eq.s32.totalorder %s13, 0
    %p33 = por %p31, %p32
    %p34 = scmp.ne.s32.totalorder %s23, %s26
    %p35 = scmp.eq.s32.totalorder %s18, 1
    %p36 = por %p34, %p35
    %p37 = scmp.ne.s32.totalorder %s26, %s27
    %p38 = scmp.eq.s32.totalorder %s18, 0
    %p39 = por %p37, %p38
    %p40 = scmp.ne.s32.totalorder %s26, %s27
    %p41 = scmp.eq.s32.totalorder %s19, 1
    %p42 = por %p40, %p41
    %p44 = scmp.ne.s32.totalorder %s27, %s43
    %p45 = scmp.eq.s32.totalorder %s19, 0
    %p46 = por %p44, %p45
    %s47 = ssub.s32 %s13, %s20
    %p48 = scmp.eq.s32.totalorder %s47, 0
    %s50 = sadd.s32 %s49, 1
    %s51 = scalar_select %p48, %s49, %s50
    %p54 = pneg %p48
    %p55 = scmp.eq.s32.totalorder %s13, 1
    %p56 = por %p54, %p55
    %p57 = scmp.ne.s32.totalorder %s49, %s52
    %p58 = scmp.eq.s32.totalorder %s13, 0
    %p59 = por %p57, %p58
    %p60 = scmp.ne.s32.totalorder %s49, %s52
    %p61 = scmp.eq.s32.totalorder %s18, 1
    %p62 = por %p60, %p61
    %p63 = scmp.ne.s32.totalorder %s52, %s53
    %p64 = scmp.eq.s32.totalorder %s18, 0
    %p65 = por %p63, %p64
    %p66 = scmp.ne.s32.totalorder %s52, %s53
    %p67 = scmp.eq.s32.totalorder %s19, 1
    %p68 = por %p66, %p67
    %p70 = scmp.ne.s32.totalorder %s53, %s69
    %p71 = scmp.eq.s32.totalorder %s19, 0
    %p72 = por %p70, %p71
    %s73 = ssub.s32 %s13, %s20
    %p74 = scmp.eq.s32.totalorder %s73, 0
    %s76 = sadd.s32 %s75, 1
    %s77 = scalar_select %p74, %s75, %s76
    %p80 = pneg %p74
    %p81 = scmp.eq.s32.totalorder %s13, 1
    %p82 = por %p80, %p81
    %p83 = scmp.ne.s32.totalorder %s75, %s78
    %p84 = scmp.eq.s32.totalorder %s13, 0
    %p85 = por %p83, %p84
    %p86 = scmp.ne.s32.totalorder %s75, %s78
    %p87 = scmp.eq.s32.totalorder %s18, 1
    %p88 = por %p86, %p87
    %p89 = scmp.ne.s32.totalorder %s78, %s79
    %p90 = scmp.eq.s32.totalorder %s18, 0
    %p91 = por %p89, %p90
    %p92 = scmp.ne.s32.totalorder %s78, %s79
    %p93 = scmp.eq.s32.totalorder %s19, 1
    %p94 = por %p92, %p93
    %p96 = scmp.ne.s32.totalorder %s79, %s95
    %p97 = scmp.eq.s32.totalorder %s19, 0
    %p98 = por %p96, %p97
    %s99 = ssub.s32 %s13, %s20
    %p100 = scmp.eq.s32.totalorder %s99, 0
    %s102 = sadd.s32 %s101, 1
    %s103 = scalar_select %p100, %s101, %s102
    %p106 = pneg %p100
    %p107 = scmp.eq.s32.totalorder %s13, 1
    %p108 = por %p106, %p107
    %p109 = scmp.ne.s32.totalorder %s101, %s104
    %p110 = scmp.eq.s32.totalorder %s13, 0
    %p111 = por %p109, %p110
    %p112 = scmp.ne.s32.totalorder %s101, %s104
    %p113 = scmp.eq.s32.totalorder %s18, 1
    %p114 = por %p112, %p113
    %p115 = scmp.ne.s32.totalorder %s104, %s105
    %p116 = scmp.eq.s32.totalorder %s18, 0
    %p117 = por %p115, %p116
    %p118 = scmp.ne.s32.totalorder %s104, %s105
    %p119 = scmp.eq.s32.totalorder %s19, 1
    %p120 = por %p118, %p119
    %p122 = scmp.ne.s32.totalorder %s105, %s121
    %p123 = scmp.eq.s32.totalorder %s19, 0
    %p124 = por %p122, %p123
    %s126 = sadd.s32 %s125, 1
    %p129 = scmp.eq.s32.totalorder %s13, 1
    %p130 = scmp.ne.s32.totalorder %s125, %s127
    %p131 = scmp.eq.s32.totalorder %s13, 0
    %p132 = por %p130, %p131
    %p133 = scmp.ne.s32.totalorder %s125, %s127
    %p134 = scmp.eq.s32.totalorder %s18, 1
    %p135 = por %p133, %p134
    %p136 = scmp.ne.s32.totalorder %s127, %s128
    %p137 = scmp.eq.s32.totalorder %s18, 0
    %p138 = por %p136, %p137
    %p139 = scmp.ne.s32.totalorder %s127, %s128
    %p140 = scmp.eq.s32.totalorder %s19, 1
    %p141 = por %p139, %p140
    %p143 = scmp.ne.s32.totalorder %s128, %s142
    %p144 = scmp.eq.s32.totalorder %s19, 0
    %p145 = por %p143, %p144
    %s147 = sadd.s32 %s146, 1
    %p150 = scmp.eq.s32.totalorder %s13, 1
    %p151 = scmp.ne.s32.totalorder %s146, %s148
    %p152 = scmp.eq.s32.totalorder %s13, 0
    %p153 = por %p151, %p152
    %p154 = scmp.ne.s32.totalorder %s146, %s148
    %p155 = scmp.eq.s32.totalorder %s18, 1
    %p156 = por %p154, %p155
    %p157 = scmp.ne.s32.totalorder %s148, %s149
    %p158 = scmp.eq.s32.totalorder %s18, 0
    %p159 = por %p157, %p158
    %p160 = scmp.ne.s32.totalorder %s148, %s149
    %p161 = scmp.eq.s32.totalorder %s19, 1
    %p162 = por %p160, %p161
    %p164 = scmp.ne.s32.totalorder %s149, %s163
    %p165 = scmp.eq.s32.totalorder %s19, 0
    %p166 = por %p164, %p165
    %s167 = ssub.s32 %s13, %s20
    %p168 = scmp.eq.s32.totalorder %s167, 0
    %s170 = sadd.s32 %s169, 1
    %s171 = scalar_select %p168, %s169, %s170
    %p174 = pneg %p168
    %p175 = scmp.eq.s32.totalorder %s13, 1
    %p176 = por %p174, %p175
    %p177 = scmp.ne.s32.totalorder %s169, %s172
    %p178 = scmp.eq.s32.totalorder %s13, 0
    %p179 = por %p177, %p178
    %p180 = scmp.ne.s32.totalorder %s169, %s172
    %p181 = scmp.eq.s32.totalorder %s18, 1
    %p182 = por %p180, %p181
    %p183 = scmp.ne.s32.totalorder %s172, %s173
    %p184 = scmp.eq.s32.totalorder %s18, 0
    %p185 = por %p183, %p184
    %p186 = scmp.ne.s32.totalorder %s172, %s173
    %p187 = scmp.eq.s32.totalorder %s19, 1
    %p188 = por %p186, %p187
    %p190 = scmp.ne.s32.totalorder %s173, %s189
    %p191 = scmp.eq.s32.totalorder %s19, 0
    %p192 = por %p190, %p191
    %s193 = ssub.s32 %s13, %s20
    %p194 = scmp.eq.s32.totalorder %s193, 0
    %s196 = sadd.s32 %s195, 1
    %s197 = scalar_select %p194, %s195, %s196
    %p200 = pneg %p194
    %p201 = scmp.eq.s32.totalorder %s13, 1
    %p202 = por %p200, %p201
    %p203 = scmp.ne.s32.totalorder %s195, %s198
    %p204 = scmp.eq.s32.totalorder %s13, 0
    %p205 = por %p203, %p204
    %p206 = scmp.ne.s32.totalorder %s195, %s198
    %p207 = scmp.eq.s32.totalorder %s18, 1
    %p208 = por %p206, %p207
    %p209 = scmp.ne.s32.totalorder %s198, %s199
    %p210 = scmp.eq.s32.totalorder %s18, 0
    %p211 = por %p209, %p210
    %p212 = scmp.ne.s32.totalorder %s198, %s199
    %p213 = scmp.eq.s32.totalorder %s19, 1
    %p214 = por %p212, %p213
    %p216 = scmp.ne.s32.totalorder %s199, %s215
    %p217 = scmp.eq.s32.totalorder %s19, 0
    %p218 = por %p216, %p217
    %p219 = scmp.le.s32.totalorder 1, %s13
    %p220 = scmp.lt.s32.totalorder %s13, 3
    %p221 = pnand %p219, %p220
    %p222 = pneg %p221
    // Predicated region
    $region9: #{transformer_forward.21} parent=5 // pred_check
      _
    $region10: #{transformer_forward.21} parent=5 // pred_check_branch
      %224 = sbr.rel (%p221) target = $region12
    $region11: #{transformer_forward.21} parent=5 // pred_region
      %s225 = ssub.s32 %s13, 1
      // Predicated region
      $region13: #{transformer_forward.21} parent=11 // pred_check
        %p226 = pneg %p138
      $region14: #{transformer_forward.21} parent=11 // pred_check_branch
        %228 = sbr.rel (%p226) target = $region16
      $region15: #{transformer_forward.21} parent=11 // pred_region
        _
      $region16: #{transformer_forward.21} parent=11 // pred_fallthru
        _
      // Predicated region
      $region17: #{transformer_forward.21} parent=11 // pred_check
        %p229 = pneg %p159
      $region18: #{transformer_forward.21} parent=11 // pred_check_branch
        %231 = sbr.rel (%p229) target = $region20
      $region19: #{transformer_forward.21} parent=11 // pred_region
        _
      $region20: #{transformer_forward.21} parent=11 // pred_fallthru
        _
    $region12: #{transformer_forward.21} parent=5 // pred_fallthru
      _
    %p232 = scmp.lt.s32.totalorder %s13, 2
    // Predicated region
    $region21: #{transformer_forward.21} parent=5 // pred_check
      %p233 = pneg %p232
    $region22: #{transformer_forward.21} parent=5 // pred_check_branch
      %235 = sbr.rel (%p233) target = $region24
    $region23: #{transformer_forward.21} parent=5 // pred_region
      // Predicated region
      $region25: #{transformer_forward.21} parent=23 // pred_check
        %p236 = pneg %p33
      $region26: #{transformer_forward.21} parent=23 // pred_check_branch
        %238 = sbr.rel (%p236) target = $region28
      $region27: #{transformer_forward.21} parent=23 // pred_region
        %p239 = scmp.lt.s32.totalorder %s13, 1
        %s240 = scalar_select %p239, %s13, 1
        %s241 = smul.addr %s240, 8
        %s242 = scalar_lea.vmem %s0, %s241
      $region28: #{transformer_forward.21} parent=23 // pred_fallthru
        _
      // Predicated region
      $region29: #{transformer_forward.21} parent=23 // pred_check
        %p243 = pneg %p59
      $region30: #{transformer_forward.21} parent=23 // pred_check_branch
        %245 = sbr.rel (%p243) target = $region32
      $region31: #{transformer_forward.21} parent=23 // pred_region
        %p246 = scmp.lt.s32.totalorder %s13, 1
        %s247 = scalar_select %p246, %s13, 1
        %s248 = smul.addr %s247, 8
        %s249 = scalar_lea.vmem %s1, %s248
      $region32: #{transformer_forward.21} parent=23 // pred_fallthru
        _
      // Predicated region
      $region33: #{transformer_forward.21} parent=23 // pred_check
        %p250 = pneg %p85
      $region34: #{transformer_forward.21} parent=23 // pred_check_branch
        %252 = sbr.rel (%p250) target = $region36
      $region35: #{transformer_forward.21} parent=23 // pred_region
        %p253 = scmp.lt.s32.totalorder %s13, 1
        %s254 = scalar_select %p253, %s13, 1
        %s255 = smul.addr %s254, 8
        %s256 = scalar_lea.vmem %s2, %s255
      $region36: #{transformer_forward.21} parent=23 // pred_fallthru
        _
      // Predicated region
      $region37: #{transformer_forward.21} parent=23 // pred_check
        %p257 = pneg %p111
      $region38: #{transformer_forward.21} parent=23 // pred_check_branch
        %259 = sbr.rel (%p257) target = $region40
      $region39: #{transformer_forward.21} parent=23 // pred_region
        %p260 = scmp.lt.s32.totalorder %s13, 1
        %s261 = scalar_select %p260, %s13, 1
        %s262 = smul.addr %s261, 8
        %s263 = scalar_lea.vmem %s3, %s262
      $region40: #{transformer_forward.21} parent=23 // pred_fallthru
        _
      // Predicated region
      $region41: #{transformer_forward.21} parent=23 // pred_check
        %p264 = pneg %p179
      $region42: #{transformer_forward.21} parent=23 // pred_check_branch
        %266 = sbr.rel (%p264) target = $region44
      $region43: #{transformer_forward.21} parent=23 // pred_region
        %p267 = scmp.lt.s32.totalorder %s13, 1
        %s268 = scalar_select %p267, %s13, 1
        %s269 = smul.addr %s268, 8
        %s270 = scalar_lea.vmem %s6, %s269
      $region44: #{transformer_forward.21} parent=23 // pred_fallthru
        _
    $region24: #{transformer_forward.21} parent=5 // pred_fallthru
      _
    %p271 = scmp.le.s32.totalorder 1, %s13
    %p272 = scmp.lt.s32.totalorder %s13, 3
    %p273 = pnand %p271, %p272
    %p274 = pneg %p273
    // Predicated region
    $region45: #{transformer_forward.21} parent=5 // pred_check
      _
    $region46: #{transformer_forward.21} parent=5 // pred_check_branch
      %276 = sbr.rel (%p273) target = $region48
    $region47: #{transformer_forward.21} parent=5 // pred_region
      %s277 = ssub.s32 %s13, 1
      %p278 = scmp.lt.s32.totalorder %s18, 1
      %s279 = scalar_select %p278, %s18, 1
      %s280 = smul.addr %s279, 8
      %s281 = scalar_lea.vmem %s0, %s280
      %p282 = pneg %p39
      %p283 = pneg %p36
      %p284 = scmp.lt.s32.totalorder %s18, 1
      %s285 = scalar_select %p284, %s18, 1
      %s286 = smul.addr %s285, 8
      %s287 = scalar_lea.vmem %s1, %s286
      %p288 = pneg %p65
      %p289 = pneg %p62
      %p290 = scmp.lt.s32.totalorder %s18, 1
      %s291 = scalar_select %p290, %s18, 1
      %s292 = smul.addr %s291, 8
      %s293 = scalar_lea.vmem %s2, %s292
      %p294 = pneg %p91
      %p295 = pneg %p88
      %p296 = scmp.lt.s32.totalorder %s18, 1
      %s297 = scalar_select %p296, %s18, 1
      %s298 = smul.addr %s297, 8
      %s299 = scalar_lea.vmem %s3, %s298
      %p300 = pneg %p117
      %p301 = pneg %p114
      %p302 = pneg %p138
      %p303 = pneg %p135
      %p304 = pneg %p159
      %p305 = pneg %p156
      %p306 = scmp.lt.s32.totalorder %s18, 1
      %s307 = scalar_select %p306, %s18, 1
      %s308 = smul.addr %s307, 8
      %s309 = scalar_lea.vmem %s6, %s308
      %p310 = pneg %p185
      %p311 = pneg %p182
      %p312 = pneg %p211
      %p313 = pneg %p208
      %p314 = scmp.lt.s32.totalorder %s18, 1
      %s315 = scalar_select %p314, %s18, 1
      %s316 = smul.addr %s315, 8
      %s317 = scalar_lea.vmem %s7, %s316
      %p318 = scmp.lt.s32.totalorder %s18, 1
      %s319 = scalar_select %p318, %s18, 1
      %s320 = smul.addr %s319, 8
      %s321 = scalar_lea.vmem %s0, %s320
      %p322 = scmp.lt.s32.totalorder %s18, 1
      %s323 = scalar_select %p322, %s18, 1
      %s324 = smul.addr %s323, 8
      %s325 = scalar_lea.vmem %s1, %s324
      %p326 = scmp.lt.s32.totalorder %s18, 1
      %s327 = scalar_select %p326, %s18, 1
      %s328 = smul.addr %s327, 8
      %s329 = scalar_lea.vmem %s2, %s328
      %p330 = scmp.lt.s32.totalorder %s18, 1
      %s331 = scalar_select %p330, %s18, 1
      %s332 = smul.addr %s331, 8
      %s333 = scalar_lea.vmem %s3, %s332
      %p334 = scmp.lt.s32.totalorder %s18, 1
      %s335 = scalar_select %p334, %s18, 1
      %s336 = smul.addr %s335, 8
      %s337 = scalar_lea.vmem %s6, %s336
      %p338 = scmp.lt.s32.totalorder %s18, 1
      %s339 = scalar_select %p338, %s18, 1
      %s340 = smul.addr %s339, 8
      %s341 = scalar_lea.vmem %s7, %s340
      %v342 = vld [vmem:[%s321] sm:$0xff]
      %v343 = vld [vmem:[%s325] sm:$0xff]
      %v344 = vld [vmem:[%s329] sm:$0xff]
      %v345 = vld [vmem:[%s333] sm:$0xff]
      %v346 = vld [vmem:[%s4] sm:$0xff]
      %v347 = vld [vmem:[%s4 + $0x8] sm:$0xff]
      %v348 = vld [vmem:[%s4 + $0x10] sm:$0xff]
      %v349 = vld [vmem:[%s4 + $0x18] sm:$0xff]
      %v350 = vld [vmem:[%s4 + $0x20] sm:$0xff]
      %v351 = vld [vmem:[%s4 + $0x28] sm:$0xff]
      %v352 = vld [vmem:[%s4 + $0x30] sm:$0xff]
      %v353 = vld [vmem:[%s4 + $0x38] sm:$0xff]
      %vm354 = vcmask 130048
      %v356 = vsel %vm354, %v342, 0
      %v359 = vsel %vm354, %v343, 0
      %361 = vmatprep.subr.mxu0 0.0
      %362 = vmatpush1.xpose.msra.mxu0 %v359
      %363 = vmatprep.subr.mxu0 0.0
      %364 = vmatpush1.xpose.msra.mxu0 0.0
      %365 = vmatprep.subr.mxu0 0.0
      %366 = vmatpush1.xpose.msra.mxu0 0.0
      %367 = vmatprep.subr.mxu0 0.0
      %368 = vmatpush1.xpose.msra.mxu0 0.0
      %369 = vmatprep.subr.mxu0 0.0
      %370 = vmatpush1.xpose.msra.mxu0 0.0
      %371 = vmatprep.subr.mxu0 0.0
      %372 = vmatpush1.xpose.msra.mxu0 0.0
      %373 = vmatprep.subr.mxu0 0.0
      %374 = vmatpush1.xpose.msra.mxu0 0.0
      %375 = vmatprep.subr.mxu0 0.0
      %376 = vmatpush1.xpose.msra.mxu0 0.0
      %377 = vmatprep.subr.mxu0 0.0
      %378 = vmatpush1.xpose.msra.mxu0 0.0
      %379 = vmatprep.subr.mxu0 0.0
      %380 = vmatpush1.xpose.msra.mxu0 0.0
      %381 = vmatprep.subr.mxu0 0.0
      %382 = vmatpush1.xpose.msra.mxu0 0.0
      %383 = vmatprep.subr.mxu0 0.0
      %384 = vmatpush1.xpose.msra.mxu0 0.0
      %385 = vmatprep.subr.mxu0 0.0
      %386 = vmatpush1.xpose.msra.mxu0 0.0
      %387 = vmatprep.subr.mxu0 0.0
      %388 = vmatpush1.xpose.msra.mxu0 0.0
      %389 = vmatprep.subr.mxu0 0.0
      %390 = vmatpush1.xpose.msra.mxu0 0.0
      %391 = vmatprep.subr.mxu0 0.0
      %392 = vmatpush1.xpose.msra.mxu0 0.0
      %393 = vmatprep.subr.mxu0 0.0
      %394 = vmatpush1.xpose.msra.mxu0 0.0
      %395 = vmatprep.subr.mxu0 0.0
      %396 = vmatpush1.xpose.msra.mxu0 0.0
      %397 = vmatprep.subr.mxu0 0.0
      %398 = vmatpush1.xpose.msra.mxu0 0.0
      %399 = vmatprep.subr.mxu0 0.0
      %400 = vmatpush1.xpose.msra.mxu0 0.0
      %401 = vmatprep.subr.mxu0 0.0
      %402 = vmatpush1.xpose.msra.mxu0 0.0
      %403 = vmatprep.subr.mxu0 0.0
      %404 = vmatpush1.xpose.msra.mxu0 0.0
      %405 = vmatprep.subr.mxu0 0.0
      %406 = vmatpush1.xpose.msra.mxu0 0.0
      %407 = vmatprep.subr.mxu0 0.0
      %408 = vmatpush1.xpose.msra.mxu0 0.0
      %409 = vmatprep.subr.mxu0 0.0
      %410 = vmatpush1.xpose.msra.mxu0 0.0
      %411 = vmatprep.subr.mxu0 0.0
      %412 = vmatpush1.xpose.msra.mxu0 0.0
      %413 = vmatprep.subr.mxu0 0.0
      %414 = vmatpush1.xpose.msra.mxu0 0.0
      %415 = vmatprep.subr.mxu0 0.0
      %416 = vmatpush1.xpose.msra.mxu0 0.0
      %417 = vmatprep.subr.mxu0 0.0
      %418 = vmatpush1.xpose.msra.mxu0 0.0
      %419 = vmatprep.subr.mxu0 0.0
      %420 = vmatpush1.xpose.msra.mxu0 0.0
      %421 = vmatprep.subr.mxu0 0.0
      %422 = vmatpush1.xpose.msra.mxu0 0.0
      %423 = vmatprep.subr.mxu0 0.0
      %424 = vmatpush1.xpose.msra.mxu0 0.0
      %425 = vmatprep.mubr.f32.mxu0 0.0
      %426 = vmatmul.mubr.f32.gmra.mrb[0].mxu0 %v356
      %v427 = vpop.f32.mrb[0].mxu0
      %v428 = vadd.f32 0.0, %v427
      %v429 = vpop.f32.mrb[0].mxu0
      %430 = vdwg.mxu0
      %v431 = vmul.f32 %v428, 0.25
      %vm432 = vcmp.eq.f32.partialorder %v345, 0.0
      %v433 = vsel %vm432, -1e+09, %v431
      %vm434 = vcmask 64512
      %v435 = vsel %vm434, %v433, -inf
      %436 = vmax.xlane.f32.xlu0 %v435
      %v437 = vpop.xlane.xlu0 %436
      %v438 = vsub.f32 %v433, %v437
      %v439 = vmul.f32 %v438, 1.442695
      %v440 = vpow.pop %v439
      %v441 = vsel %vm434, %v440, 0.0
      %442 = vadd.xlane.f32.xlu0 %v441
      %v443 = vpop.xlane.xlu0 %442
      %v444 = vrcp.pop %v443
      %v445 = vmul.f32 %v440, %v444
      %v447 = vsel %vm434, %v445, 0
      %449 = vmatprep.subr.mxu0 0.0
      %450 = vmatpush1.msra.mxu0 %v344
      %451 = vmatprep.subr.mxu0 0.0
      %452 = vmatpush1.msra.mxu0 0.0
      %453 = vmatprep.subr.mxu0 0.0
      %454 = vmatpush1.msra.mxu0 0.0
      %455 = vmatprep.subr.mxu0 0.0
      %456 = vmatpush1.msra.mxu0 0.0
      %457 = vmatprep.subr.mxu0 0.0
      %458 = vmatpush1.msra.mxu0 0.0
      %459 = vmatprep.subr.mxu0 0.0
      %460 = vmatpush1.msra.mxu0 0.0
      %461 = vmatprep.subr.mxu0 0.0
      %462 = vmatpush1.msra.mxu0 0.0
      %463 = vmatprep.subr.mxu0 0.0
      %464 = vmatpush1.msra.mxu0 0.0
      %465 = vmatprep.subr.mxu0 0.0
      %466 = vmatpush1.msra.mxu0 0.0
      %467 = vmatprep.subr.mxu0 0.0
      %468 = vmatpush1.msra.mxu0 0.0
      %469 = vmatprep.subr.mxu0 0.0
      %470 = vmatpush1.msra.mxu0 0.0
      %471 = vmatprep.subr.mxu0 0.0
      %472 = vmatpush1.msra.mxu0 0.0
      %473 = vmatprep.subr.mxu0 0.0
      %474 = vmatpush1.msra.mxu0 0.0
      %475 = vmatprep.subr.mxu0 0.0
      %476 = vmatpush1.msra.mxu0 0.0
      %477 = vmatprep.subr.mxu0 0.0
      %478 = vmatpush1.msra.mxu0 0.0
      %479 = vmatprep.subr.mxu0 0.0
      %480 = vmatpush1.msra.mxu0 0.0
      %481 = vmatprep.subr.mxu0 0.0
      %482 = vmatpush1.msra.mxu0 0.0
      %483 = vmatprep.subr.mxu0 0.0
      %484 = vmatpush1.msra.mxu0 0.0
      %485 = vmatprep.subr.mxu0 0.0
      %486 = vmatpush1.msra.mxu0 0.0
      %487 = vmatprep.subr.mxu0 0.0
      %488 = vmatpush1.msra.mxu0 0.0
      %489 = vmatprep.subr.mxu0 0.0
      %490 = vmatpush1.msra.mxu0 0.0
      %491 = vmatprep.subr.mxu0 0.0
      %492 = vmatpush1.msra.mxu0 0.0
      %493 = vmatprep.subr.mxu0 0.0
      %494 = vmatpush1.msra.mxu0 0.0
      %495 = vmatprep.subr.mxu0 0.0
      %496 = vmatpush1.msra.mxu0 0.0
      %497 = vmatprep.subr.mxu0 0.0
      %498 = vmatpush1.msra.mxu0 0.0
      %499 = vmatprep.subr.mxu0 0.0
      %500 = vmatpush1.msra.mxu0 0.0
      %501 = vmatprep.subr.mxu0 0.0
      %502 = vmatpush1.msra.mxu0 0.0
      %503 = vmatprep.subr.mxu0 0.0
      %504 = vmatpush1.msra.mxu0 0.0
      %505 = vmatprep.subr.mxu0 0.0
      %506 = vmatpush1.msra.mxu0 0.0
      %507 = vmatprep.subr.mxu0 0.0
      %508 = vmatpush1.msra.mxu0 0.0
      %509 = vmatprep.subr.mxu0 0.0
      %510 = vmatpush1.msra.mxu0 0.0
      %511 = vmatprep.subr.mxu0 0.0
      %512 = vmatpush1.msra.mxu0 0.0
      %513 = vmatprep.mubr.f32.mxu0 0.0
      %514 = vmatmul.mubr.f32.gmra.mrb[0].mxu0 %v447
      %v515 = vpop.f32.mrb[0].mxu0
      %v516 = vadd.f32 0.0, %v515
      %v517 = vpop.f32.mrb[0].mxu0
      %518 = vdwg.mxu0
      %519 = vrot.lane.b32.xlu0 %v342, 112
      %v520 = vpop.permute.xlu0 %519
      %521 = vrot.lane.b32.xlu0 %v343, 112
      %v522 = vpop.permute.xlu0 %521
      %v523 = vsel %vm354, %v520, 0
      %v525 = vsel %vm354, %v522, 0
      %527 = vmatprep.subr.mxu0 0.0
      %528 = vmatpush1.xpose.msra.mxu0 %v525
      %529 = vmatprep.subr.mxu0 0.0
      %530 = vmatpush1.xpose.msra.mxu0 0.0
      %531 = vmatprep.subr.mxu0 0.0
      %532 = vmatpush1.xpose.msra.mxu0 0.0
      %533 = vmatprep.subr.mxu0 0.0
      %534 = vmatpush1.xpose.msra.mxu0 0.0
      %535 = vmatprep.subr.mxu0 0.0
      %536 = vmatpush1.xpose.msra.mxu0 0.0
      %537 = vmatprep.subr.mxu0 0.0
      %538 = vmatpush1.xpose.msra.mxu0 0.0
      %539 = vmatprep.subr.mxu0 0.0
      %540 = vmatpush1.xpose.msra.mxu0 0.0
      %541 = vmatprep.subr.mxu0 0.0
      %542 = vmatpush1.xpose.msra.mxu0 0.0
      %543 = vmatprep.subr.mxu0 0.0
      %544 = vmatpush1.xpose.msra.mxu0 0.0
      %545 = vmatprep.subr.mxu0 0.0
      %546 = vmatpush1.xpose.msra.mxu0 0.0
      %547 = vmatprep.subr.mxu0 0.0
      %548 = vmatpush1.xpose.msra.mxu0 0.0
      %549 = vmatprep.subr.mxu0 0.0
      %550 = vmatpush1.xpose.msra.mxu0 0.0
      %551 = vmatprep.subr.mxu0 0.0
      %552 = vmatpush1.xpose.msra.mxu0 0.0
      %553 = vmatprep.subr.mxu0 0.0
      %554 = vmatpush1.xpose.msra.mxu0 0.0
      %555 = vmatprep.subr.mxu0 0.0
      %556 = vmatpush1.xpose.msra.mxu0 0.0
      %557 = vmatprep.subr.mxu0 0.0
      %558 = vmatpush1.xpose.msra.mxu0 0.0
      %559 = vmatprep.subr.mxu0 0.0
      %560 = vmatpush1.xpose.msra.mxu0 0.0
      %561 = vmatprep.subr.mxu0 0.0
      %562 = vmatpush1.xpose.msra.mxu0 0.0
      %563 = vmatprep.subr.mxu0 0.0
      %564 = vmatpush1.xpose.msra.mxu0 0.0
      %565 = vmatprep.subr.mxu0 0.0
      %566 = vmatpush1.xpose.msra.mxu0 0.0
      %567 = vmatprep.subr.mxu0 0.0
      %568 = vmatpush1.xpose.msra.mxu0 0.0
      %569 = vmatprep.subr.mxu0 0.0
      %570 = vmatpush1.xpose.msra.mxu0 0.0
      %571 = vmatprep.subr.mxu0 0.0
      %572 = vmatpush1.xpose.msra.mxu0 0.0
      %573 = vmatprep.subr.mxu0 0.0
      %574 = vmatpush1.xpose.msra.mxu0 0.0
      %575 = vmatprep.subr.mxu0 0.0
      %576 = vmatpush1.xpose.msra.mxu0 0.0
      %577 = vmatprep.subr.mxu0 0.0
      %578 = vmatpush1.xpose.msra.mxu0 0.0
      %579 = vmatprep.subr.mxu0 0.0
      %580 = vmatpush1.xpose.msra.mxu0 0.0
      %581 = vmatprep.subr.mxu0 0.0
      %582 = vmatpush1.xpose.msra.mxu0 0.0
      %583 = vmatprep.subr.mxu0 0.0
      %584 = vmatpush1.xpose.msra.mxu0 0.0
      %585 = vmatprep.subr.mxu0 0.0
      %586 = vmatpush1.xpose.msra.mxu0 0.0
      %587 = vmatprep.subr.mxu0 0.0
      %588 = vmatpush1.xpose.msra.mxu0 0.0
      %589 = vmatprep.subr.mxu0 0.0
      %590 = vmatpush1.xpose.msra.mxu0 0.0
      %591 = vmatprep.mubr.f32.mxu0 0.0
      %592 = vmatmul.mubr.f32.gmra.mrb[0].mxu0 %v523
      %v593 = vpop.f32.mrb[0].mxu0
      %v594 = vadd.f32 0.0, %v593
      %v595 = vpop.f32.mrb[0].mxu0
      %596 = vdwg.mxu0
      %v597 = vmul.f32 %v594, 0.25
      %v598 = vsel %vm432, -1e+09, %v597
      %v599 = vsel %vm434, %v598, -inf
      %600 = vmax.xlane.f32.xlu0 %v599
      %v601 = vpop.xlane.xlu0 %600
      %v602 = vsub.f32 %v598, %v601
      %v603 = vmul.f32 %v602, 1.442695
      %v604 = vpow.pop %v603
      %v605 = vsel %vm434, %v604, 0.0
      %606 = vadd.xlane.f32.xlu0 %v605
      %v607 = vpop.xlane.xlu0 %606
      %v608 = vrcp.pop %v607
      %v609 = vmul.f32 %v604, %v608
      %611 = vrot.lane.b32.xlu0 %v344, 112
      %v612 = vpop.permute.xlu0 %611
      %v615 = vsel %vm434, %v609, 0
      %617 = vmatprep.subr.mxu0 0.0
      %618 = vmatpush1.msra.mxu0 %v612
      %619 = vmatprep.subr.mxu0 0.0
      %620 = vmatpush1.msra.mxu0 0.0
      %621 = vmatprep.subr.mxu0 0.0
      %622 = vmatpush1.msra.mxu0 0.0
      %623 = vmatprep.subr.mxu0 0.0
      %624 = vmatpush1.msra.mxu0 0.0
      %625 = vmatprep.subr.mxu0 0.0
      %626 = vmatpush1.msra.mxu0 0.0
      %627 = vmatprep.subr.mxu0 0.0
      %628 = vmatpush1.msra.mxu0 0.0
      %629 = vmatprep.subr.mxu0 0.0
      %630 = vmatpush1.msra.mxu0 0.0
      %631 = vmatprep.subr.mxu0 0.0
      %632 = vmatpush1.msra.mxu0 0.0
      %633 = vmatprep.subr.mxu0 0.0
      %634 = vmatpush1.msra.mxu0 0.0
      %635 = vmatprep.subr.mxu0 0.0
      %636 = vmatpush1.msra.mxu0 0.0
      %637 = vmatprep.subr.mxu0 0.0
      %638 = vmatpush1.msra.mxu0 0.0
      %639 = vmatprep.subr.mxu0 0.0
      %640 = vmatpush1.msra.mxu0 0.0
      %641 = vmatprep.subr.mxu0 0.0
      %642 = vmatpush1.msra.mxu0 0.0
      %643 = vmatprep.subr.mxu0 0.0
      %644 = vmatpush1.msra.mxu0 0.0
      %645 = vmatprep.subr.mxu0 0.0
      %646 = vmatpush1.msra.mxu0 0.0
      %647 = vmatprep.subr.mxu0 0.0
      %648 = vmatpush1.msra.mxu0 0.0
      %649 = vmatprep.subr.mxu0 0.0
      %650 = vmatpush1.msra.mxu0 0.0
      %651 = vmatprep.subr.mxu0 0.0
      %652 = vmatpush1.msra.mxu0 0.0
      %653 = vmatprep.subr.mxu0 0.0
      %654 = vmatpush1.msra.mxu0 0.0
      %655 = vmatprep.subr.mxu0 0.0
      %656 = vmatpush1.msra.mxu0 0.0
      %657 = vmatprep.subr.mxu0 0.0
      %658 = vmatpush1.msra.mxu0 0.0
      %659 = vmatprep.subr.mxu0 0.0
      %660 = vmatpush1.msra.mxu0 0.0
      %661 = vmatprep.subr.mxu0 0.0
      %662 = vmatpush1.msra.mxu0 0.0
      %663 = vmatprep.subr.mxu0 0.0
      %664 = vmatpush1.msra.mxu0 0.0
      %665 = vmatprep.subr.mxu0 0.0
      %666 = vmatpush1.msra.mxu0 0.0
      %667 = vmatprep.subr.mxu0 0.0
      %668 = vmatpush1.msra.mxu0 0.0
      %669 = vmatprep.subr.mxu0 0.0
      %670 = vmatpush1.msra.mxu0 0.0
      %671 = vmatprep.subr.mxu0 0.0
      %672 = vmatpush1.msra.mxu0 0.0
      %673 = vmatprep.subr.mxu0 0.0
      %674 = vmatpush1.msra.mxu0 0.0
      %675 = vmatprep.subr.mxu0 0.0
      %676 = vmatpush1.msra.mxu0 0.0
      %677 = vmatprep.subr.mxu0 0.0
      %678 = vmatpush1.msra.mxu0 0.0
      %679 = vmatprep.subr.mxu0 0.0
      %680 = vmatpush1.msra.mxu0 0.0
      %681 = vmatprep.mubr.f32.mxu0 0.0
      %682 = vmatmul.mubr.f32.gmra.mrb[0].mxu0 %v615
      %v683 = vpop.f32.mrb[0].mxu0
      %v684 = vadd.f32 0.0, %v683
      %v685 = vpop.f32.mrb[0].mxu0
      %686 = vdwg.mxu0
      %v688 = vsel %vm354, %v684, 0
      %690 = vmatprep.subr.mxu0 0.0
      %691 = vmatpush1.msra.mxu0 %v348
      %692 = vmatprep.subr.mxu0 0.0
      %693 = vmatpush1.msra.mxu0 %v349
      %694 = vmatprep.subr.mxu0 0.0
      %695 = vmatpush1.msra.mxu0 0.0
      %696 = vmatprep.subr.mxu0 0.0
      %697 = vmatpush1.msra.mxu0 0.0
      %698 = vmatprep.subr.mxu0 0.0
      %699 = vmatpush1.msra.mxu0 0.0
      %700 = vmatprep.subr.mxu0 0.0
      %701 = vmatpush1.msra.mxu0 0.0
      %702 = vmatprep.subr.mxu0 0.0
      %703 = vmatpush1.msra.mxu0 0.0
      %704 = vmatprep.subr.mxu0 0.0
      %705 = vmatpush1.msra.mxu0 0.0
      %706 = vmatprep.subr.mxu0 0.0
      %707 = vmatpush1.msra.mxu0 0.0
      %708 = vmatprep.subr.mxu0 0.0
      %709 = vmatpush1.msra.mxu0 0.0
      %710 = vmatprep.subr.mxu0 0.0
      %711 = vmatpush1.msra.mxu0 0.0
      %712 = vmatprep.subr.mxu0 0.0
      %713 = vmatpush1.msra.mxu0 0.0
      %714 = vmatprep.subr.mxu0 0.0
      %715 = vmatpush1.msra.mxu0 0.0
      %716 = vmatprep.subr.mxu0 0.0
      %717 = vmatpush1.msra.mxu0 0.0
      %718 = vmatprep.subr.mxu0 0.0
      %719 = vmatpush1.msra.mxu0 0.0
      %720 = vmatprep.subr.mxu0 0.0
      %721 = vmatpush1.msra.mxu0 0.0
      %722 = vmatprep.subr.mxu0 0.0
      %723 = vmatpush1.msra.mxu0 0.0
      %724 = vmatprep.subr.mxu0 0.0
      %725 = vmatpush1.msra.mxu0 0.0
      %726 = vmatprep.subr.mxu0 0.0
      %727 = vmatpush1.msra.mxu0 0.0
      %728 = vmatprep.subr.mxu0 0.0
      %729 = vmatpush1.msra.mxu0 0.0
      %730 = vmatprep.subr.mxu0 0.0
      %731 = vmatpush1.msra.mxu0 0.0
      %732 = vmatprep.subr.mxu0 0.0
      %733 = vmatpush1.msra.mxu0 0.0
      %734 = vmatprep.subr.mxu0 0.0
      %735 = vmatpush1.msra.mxu0 0.0
      %736 = vmatprep.subr.mxu0 0.0
      %737 = vmatpush1.msra.mxu0 0.0
      %738 = vmatprep.subr.mxu0 0.0
      %739 = vmatpush1.msra.mxu0 0.0
      %740 = vmatprep.subr.mxu0 0.0
      %741 = vmatpush1.msra.mxu0 0.0
      %742 = vmatprep.subr.mxu0 0.0
      %743 = vmatpush1.msra.mxu0 0.0
      %744 = vmatprep.subr.mxu0 0.0
      %745 = vmatpush1.msra.mxu0 0.0
      %746 = vmatprep.subr.mxu0 0.0
      %747 = vmatpush1.msra.mxu0 0.0
      %748 = vmatprep.subr.mxu0 0.0
      %749 = vmatpush1.msra.mxu0 0.0
      %750 = vmatprep.subr.mxu0 0.0
      %751 = vmatpush1.msra.mxu0 0.0
      %752 = vmatprep.subr.mxu0 0.0
      %753 = vmatpush1.msra.mxu0 0.0
      %754 = vmatprep.mubr.f32.mxu0 0.0
      %755 = vmatmul.mubr.f32.gmra.mrb[0].mxu0 %v688
      %v756 = vpop.f32.mrb[0].mxu0
      %v757 = vadd.f32 0.0, %v756
      %v758 = vpop.f32.mrb[0].mxu0
      %759 = vdwg.mxu0
      %v761 = vsel %vm354, %v516, 0
      %763 = vmatprep.subr.mxu0 0.0
      %764 = vmatpush1.msra.mxu0 %v346
      %765 = vmatprep.subr.mxu0 0.0
      %766 = vmatpush1.msra.mxu0 %v347
      %767 = vmatprep.subr.mxu0 0.0
      %768 = vmatpush1.msra.mxu0 0.0
      %769 = vmatprep.subr.mxu0 0.0
      %770 = vmatpush1.msra.mxu0 0.0
      %771 = vmatprep.subr.mxu0 0.0
      %772 = vmatpush1.msra.mxu0 0.0
      %773 = vmatprep.subr.mxu0 0.0
      %774 = vmatpush1.msra.mxu0 0.0
      %775 = vmatprep.subr.mxu0 0.0
      %776 = vmatpush1.msra.mxu0 0.0
      %777 = vmatprep.subr.mxu0 0.0
      %778 = vmatpush1.msra.mxu0 0.0
      %779 = vmatprep.subr.mxu0 0.0
      %780 = vmatpush1.msra.mxu0 0.0
      %781 = vmatprep.subr.mxu0 0.0
      %782 = vmatpush1.msra.mxu0 0.0
      %783 = vmatprep.subr.mxu0 0.0
      %784 = vmatpush1.msra.mxu0 0.0
      %785 = vmatprep.subr.mxu0 0.0
      %786 = vmatpush1.msra.mxu0 0.0
      %787 = vmatprep.subr.mxu0 0.0
      %788 = vmatpush1.msra.mxu0 0.0
      %789 = vmatprep.subr.mxu0 0.0
      %790 = vmatpush1.msra.mxu0 0.0
      %791 = vmatprep.subr.mxu0 0.0
      %792 = vmatpush1.msra.mxu0 0.0
      %793 = vmatprep.subr.mxu0 0.0
      %794 = vmatpush1.msra.mxu0 0.0
      %795 = vmatprep.subr.mxu0 0.0
      %796 = vmatpush1.msra.mxu0 0.0
      %797 = vmatprep.subr.mxu0 0.0
      %798 = vmatpush1.msra.mxu0 0.0
      %799 = vmatprep.subr.mxu0 0.0
      %800 = vmatpush1.msra.mxu0 0.0
      %801 = vmatprep.subr.mxu0 0.0
      %802 = vmatpush1.msra.mxu0 0.0
      %803 = vmatprep.subr.mxu0 0.0
      %804 = vmatpush1.msra.mxu0 0.0
      %805 = vmatprep.subr.mxu0 0.0
      %806 = vmatpush1.msra.mxu0 0.0
      %807 = vmatprep.subr.mxu0 0.0
      %808 = vmatpush1.msra.mxu0 0.0
      %809 = vmatprep.subr.mxu0 0.0
      %810 = vmatpush1.msra.mxu0 0.0
      %811 = vmatprep.subr.mxu0 0.0
      %812 = vmatpush1.msra.mxu0 0.0
      %813 = vmatprep.subr.mxu0 0.0
      %814 = vmatpush1.msra.mxu0 0.0
      %815 = vmatprep.subr.mxu0 0.0
      %816 = vmatpush1.msra.mxu0 0.0
      %817 = vmatprep.subr.mxu0 0.0
      %818 = vmatpush1.msra.mxu0 0.0
      %819 = vmatprep.subr.mxu0 0.0
      %820 = vmatpush1.msra.mxu0 0.0
      %821 = vmatprep.subr.mxu0 0.0
      %822 = vmatpush1.msra.mxu0 0.0
      %823 = vmatprep.subr.mxu0 0.0
      %824 = vmatpush1.msra.mxu0 0.0
      %825 = vmatprep.subr.mxu0 0.0
      %826 = vmatpush1.msra.mxu0 0.0
      %827 = vmatprep.mubr.f32.mxu0 0.0
      %828 = vmatmul.mubr.f32.gmra.mrb[0].mxu0 %v761
      %v829 = vpop.f32.mrb[0].mxu0
      %v830 = vadd.f32 %v757, %v829
      %v831 = vpop.f32.mrb[0].mxu0
      %832 = vdwg.mxu0
      %833 = vrot.lane.b32.xlu0 %v342, 96
      %v834 = vpop.permute.xlu0 %833
      %835 = vrot.lane.b32.xlu0 %v343, 96
      %v836 = vpop.permute.xlu0 %835
      %v837 = vsel %vm354, %v834, 0
      %v839 = vsel %vm354, %v836, 0
      %841 = vmatprep.subr.mxu0 0.0
      %842 = vmatpush1.xpose.msra.mxu0 %v839
      %843 = vmatprep.subr.mxu0 0.0
      %844 = vmatpush1.xpose.msra.mxu0 0.0
      %845 = vmatprep.subr.mxu0 0.0
      %846 = vmatpush1.xpose.msra.mxu0 0.0
      %847 = vmatprep.subr.mxu0 0.0
      %848 = vmatpush1.xpose.msra.mxu0 0.0
      %849 = vmatprep.subr.mxu0 0.0
      %850 = vmatpush1.xpose.msra.mxu0 0.0
      %851 = vmatprep.subr.mxu0 0.0
      %852 = vmatpush1.xpose.msra.mxu0 0.0
      %853 = vmatprep.subr.mxu0 0.0
      %854 = vmatpush1.xpose.msra.mxu0 0.0
      %855 = vmatprep.subr.mxu0 0.0
      %856 = vmatpush1.xpose.msra.mxu0 0.0
      %857 = vmatprep.subr.mxu0 0.0
      %858 = vmatpush1.xpose.msra.mxu0 0.0
      %859 = vmatprep.subr.mxu0 0.0
      %860 = vmatpush1.xpose.msra.mxu0 0.0
      %861 = vmatprep.subr.mxu0 0.0
      %862 = vmatpush1.xpose.msra.mxu0 0.0
      %863 = vmatprep.subr.mxu0 0.0
      %864 = vmatpush1.xpose.msra.mxu0 0.0
      %865 = vmatprep.subr.mxu0 0.0
      %866 = vmatpush1.xpose.msra.mxu0 0.0
      %867 = vmatprep.subr.mxu0 0.0
      %868 = vmatpush1.xpose.msra.mxu0 0.0
      %869 = vmatprep.subr.mxu0 0.0
      %870 = vmatpush1.xpose.msra.mxu0 0.0
      %871 = vmatprep.subr.mxu0 0.0
      %872 = vmatpush1.xpose.msra.mxu0 0.0
      %873 = vmatprep.subr.mxu0 0.0
      %874 = vmatpush1.xpose.msra.mxu0 0.0
      %875 = vmatprep.subr.mxu0 0.0
      %876 = vmatpush1.xpose.msra.mxu0 0.0
      %877 = vmatprep.subr.mxu0 0.0
      %878 = vmatpush1.xpose.msra.mxu0 0.0
      %879 = vmatprep.subr.mxu0 0.0
      %880 = vmatpush1.xpose.msra.mxu0 0.0
      %881 = vmatprep.subr.mxu0 0.0
      %882 = vmatpush1.xpose.msra.mxu0 0.0
      %883 = vmatprep.subr.mxu0 0.0
      %884 = vmatpush1.xpose.msra.mxu0 0.0
      %885 = vmatprep.subr.mxu0 0.0
      %886 = vmatpush1.xpose.msra.mxu0 0.0
      %887 = vmatprep.subr.mxu0 0.0
      %888 = vmatpush1.xpose.msra.mxu0 0.0
      %889 = vmatprep.subr.mxu0 0.0
      %890 = vmatpush1.xpose.msra.mxu0 0.0
      %891 = vmatprep.subr.mxu0 0.0
      %892 = vmatpush1.xpose.msra.mxu0 0.0
      %893 = vmatprep.subr.mxu0 0.0
      %894 = vmatpush1.xpose.msra.mxu0 0.0
      %895 = vmatprep.subr.mxu0 0.0
      %896 = vmatpush1.xpose.msra.mxu0 0.0
      %897 = vmatprep.subr.mxu0 0.0
      %898 = vmatpush1.xpose.msra.mxu0 0.0
      %899 = vmatprep.subr.mxu0 0.0
      %900 = vmatpush1.xpose.msra.mxu0 0.0
      %901 = vmatprep.subr.mxu0 0.0
      %902 = vmatpush1.xpose.msra.mxu0 0.0
      %903 = vmatprep.subr.mxu0 0.0
      %904 = vmatpush1.xpose.msra.mxu0 0.0
      %905 = vmatprep.mubr.f32.mxu0 0.0
      %906 = vmatmul.mubr.f32.gmra.mrb[0].mxu0 %v837
      %v907 = vpop.f32.mrb[0].mxu0
      %v908 = vadd.f32 0.0, %v907
      %v909 = vpop.f32.mrb[0].mxu0
      %910 = vdwg.mxu0
      %v911 = vmul.f32 %v908, 0.25
      %v912 = vsel %vm432, -1e+09, %v911
      %v913 = vsel %vm434, %v912, -inf
      %914 = vmax.xlane.f32.xlu0 %v913
      %v915 = vpop.xlane.xlu0 %914
      %v916 = vsub.f32 %v912, %v915
      %v917 = vmul.f32 %v916, 1.442695
      %v918 = vpow.pop %v917
      %v919 = vsel %vm434, %v918, 0.0
      %920 = vadd.xlane.f32.xlu0 %v919
      %v921 = vpop.xlane.xlu0 %920
      %v922 = vrcp.pop %v921
      %v923 = vmul.f32 %v918, %v922
      %924 = vrot.lane.b32.xlu0 %v344, 96
      %v925 = vpop.permute.xlu0 %924
      %v928 = vsel %vm434, %v923, 0
      %930 = vmatprep.subr.mxu0 0.0
      %931 = vmatpush1.msra.mxu0 %v925
      %932 = vmatprep.subr.mxu0 0.0
      %933 = vmatpush1.msra.mxu0 0.0
      %934 = vmatprep.subr.mxu0 0.0
      %935 = vmatpush1.msra.mxu0 0.0
      %936 = vmatprep.subr.mxu0 0.0
      %937 = vmatpush1.msra.mxu0 0.0
      %938 = vmatprep.subr.mxu0 0.0
      %939 = vmatpush1.msra.mxu0 0.0
      %940 = vmatprep.subr.mxu0 0.0
      %941 = vmatpush1.msra.mxu0 0.0
      %942 = vmatprep.subr.mxu0 0.0
      %943 = vmatpush1.msra.mxu0 0.0
      %944 = vmatprep.subr.mxu0 0.0
      %945 = vmatpush1.msra.mxu0 0.0
      %946 = vmatprep.subr.mxu0 0.0
      %947 = vmatpush1.msra.mxu0 0.0
      %948 = vmatprep.subr.mxu0 0.0
      %949 = vmatpush1.msra.mxu0 0.0
      %950 = vmatprep.subr.mxu0 0.0
      %951 = vmatpush1.msra.mxu0 0.0
      %952 = vmatprep.subr.mxu0 0.0
      %953 = vmatpush1.msra.mxu0 0.0
      %954 = vmatprep.subr.mxu0 0.0
      %955 = vmatpush1.msra.mxu0 0.0
      %956 = vmatprep.subr.mxu0 0.0
      %957 = vmatpush1.msra.mxu0 0.0
      %958 = vmatprep.subr.mxu0 0.0
      %959 = vmatpush1.msra.mxu0 0.0
      %960 = vmatprep.subr.mxu0 0.0
      %961 = vmatpush1.msra.mxu0 0.0
      %962 = vmatprep.subr.mxu0 0.0
      %963 = vmatpush1.msra.mxu0 0.0
      %964 = vmatprep.subr.mxu0 0.0
      %965 = vmatpush1.msra.mxu0 0.0
      %966 = vmatprep.subr.mxu0 0.0
      %967 = vmatpush1.msra.mxu0 0.0
      %968 = vmatprep.subr.mxu0 0.0
      %969 = vmatpush1.msra.mxu0 0.0
      %970 = vmatprep.subr.mxu0 0.0
      %971 = vmatpush1.msra.mxu0 0.0
      %972 = vmatprep.subr.mxu0 0.0
      %973 = vmatpush1.msra.mxu0 0.0
      %974 = vmatprep.subr.mxu0 0.0
      %975 = vmatpush1.msra.mxu0 0.0
      %976 = vmatprep.subr.mxu0 0.0
      %977 = vmatpush1.msra.mxu0 0.0
      %978 = vmatprep.subr.mxu0 0.0
      %979 = vmatpush1.msra.mxu0 0.0
      %980 = vmatprep.subr.mxu0 0.0
      %981 = vmatpush1.msra.mxu0 0.0
      %982 = vmatprep.subr.mxu0 0.0
      %983 = vmatpush1.msra.mxu0 0.0
      %984 = vmatprep.subr.mxu0 0.0
      %985 = vmatpush1.msra.mxu0 0.0
      %986 = vmatprep.subr.mxu0 0.0
      %987 = vmatpush1.msra.mxu0 0.0
      %988 = vmatprep.subr.mxu0 0.0
      %989 = vmatpush1.msra.mxu0 0.0
      %990 = vmatprep.subr.mxu0 0.0
      %991 = vmatpush1.msra.mxu0 0.0
      %992 = vmatprep.subr.mxu0 0.0
      %993 = vmatpush1.msra.mxu0 0.0
      %994 = vmatprep.mubr.f32.mxu0 0.0
      %995 = vmatmul.mubr.f32.gmra.mrb[0].mxu0 %v928
      %v996 = vpop.f32.mrb[0].mxu0
      %v997 = vadd.f32 0.0, %v996
      %v998 = vpop.f32.mrb[0].mxu0
      %999 = vdwg.mxu0
      %v1001 = vsel %vm354, %v997, 0
      %1003 = vmatprep.subr.mxu0 0.0
      %1004 = vmatpush1.msra.mxu0 %v350
      %1005 = vmatprep.subr.mxu0 0.0
      %1006 = vmatpush1.msra.mxu0 %v351
      %1007 = vmatprep.subr.mxu0 0.0
      %1008 = vmatpush1.msra.mxu0 0.0
      %1009 = vmatprep.subr.mxu0 0.0
      %1010 = vmatpush1.msra.mxu0 0.0
      %1011 = vmatprep.subr.mxu0 0.0
      %1012 = vmatpush1.msra.mxu0 0.0
      %1013 = vmatprep.subr.mxu0 0.0
      %1014 = vmatpush1.msra.mxu0 0.0
      %1015 = vmatprep.subr.mxu0 0.0
      %1016 = vmatpush1.msra.mxu0 0.0
      %1017 = vmatprep.subr.mxu0 0.0
      %1018 = vmatpush1.msra.mxu0 0.0
      %1019 = vmatprep.subr.mxu0 0.0
      %1020 = vmatpush1.msra.mxu0 0.0
      %1021 = vmatprep.subr.mxu0 0.0
      %1022 = vmatpush1.msra.mxu0 0.0
      %1023 = vmatprep.subr.mxu0 0.0
      %1024 = vmatpush1.msra.mxu0 0.0
      %1025 = vmatprep.subr.mxu0 0.0
      %1026 = vmatpush1.msra.mxu0 0.0
      %1027 = vmatprep.subr.mxu0 0.0
      %1028 = vmatpush1.msra.mxu0 0.0
      %1029 = vmatprep.subr.mxu0 0.0
      %1030 = vmatpush1.msra.mxu0 0.0
      %1031 = vmatprep.subr.mxu0 0.0
      %1032 = vmatpush1.msra.mxu0 0.0
      %1033 = vmatprep.subr.mxu0 0.0
      %1034 = vmatpush1.msra.mxu0 0.0
      %1035 = vmatprep.subr.mxu0 0.0
      %1036 = vmatpush1.msra.mxu0 0.0
      %1037 = vmatprep.subr.mxu0 0.0
      %1038 = vmatpush1.msra.mxu0 0.0
      %1039 = vmatprep.subr.mxu0 0.0
      %1040 = vmatpush1.msra.mxu0 0.0
      %1041 = vmatprep.subr.mxu0 0.0
      %1042 = vmatpush1.msra.mxu0 0.0
      %1043 = vmatprep.subr.mxu0 0.0
      %1044 = vmatpush1.msra.mxu0 0.0
      %1045 = vmatprep.subr.mxu0 0.0
      %1046 = vmatpush1.msra.mxu0 0.0
      %1047 = vmatprep.subr.mxu0 0.0
      %1048 = vmatpush1.msra.mxu0 0.0
      %1049 = vmatprep.subr.mxu0 0.0
      %1050 = vmatpush1.msra.mxu0 0.0
      %1051 = vmatprep.subr.mxu0 0.0
      %1052 = vmatpush1.msra.mxu0 0.0
      %1053 = vmatprep.subr.mxu0 0.0
      %1054 = vmatpush1.msra.mxu0 0.0
      %1055 = vmatprep.subr.mxu0 0.0
      %1056 = vmatpush1.msra.mxu0 0.0
      %1057 = vmatprep.subr.mxu0 0.0
      %1058 = vmatpush1.msra.mxu0 0.0
      %1059 = vmatprep.subr.mxu0 0.0
      %1060 = vmatpush1.msra.mxu0 0.0
      %1061 = vmatprep.subr.mxu0 0.0
      %1062 = vmatpush1.msra.mxu0 0.0
      %1063 = vmatprep.subr.mxu0 0.0
      %1064 = vmatpush1.msra.mxu0 0.0
      %1065 = vmatprep.subr.mxu0 0.0
      %1066 = vmatpush1.msra.mxu0 0.0
      %1067 = vmatprep.mubr.f32.mxu0 0.0
      %1068 = vmatmul.mubr.f32.gmra.mrb[0].mxu0 %v1001
      %v1069 = vpop.f32.mrb[0].mxu0
      %v1070 = vadd.f32 0.0, %v1069
      %v1071 = vpop.f32.mrb[0].mxu0
      %1072 = vdwg.mxu0
      %v1073 = vadd.f32 %v830, %v1070
      %1074 = vrot.lane.b32.xlu0 %v342, 80
      %v1075 = vpop.permute.xlu0 %1074
      %1076 = vrot.lane.b32.xlu0 %v343, 80
      %v1077 = vpop.permute.xlu0 %1076
      %v1078 = vsel %vm354, %v1075, 0
      %v1080 = vsel %vm354, %v1077, 0
      %1082 = vmatprep.subr.mxu0 0.0
      %1083 = vmatpush1.xpose.msra.mxu0 %v1080
      %1084 = vmatprep.subr.mxu0 0.0
      %1085 = vmatpush1.xpose.msra.mxu0 0.0
      %1086 = vmatprep.subr.mxu0 0.0
      %1087 = vmatpush1.xpose.msra.mxu0 0.0
      %1088 = vmatprep.subr.mxu0 0.0
      %1089 = vmatpush1.xpose.msra.mxu0 0.0
      %1090 = vmatprep.subr.mxu0 0.0
      %1091 = vmatpush1.xpose.msra.mxu0 0.0
      %1092 = vmatprep.subr.mxu0 0.0
      %1093 = vmatpush1.xpose.msra.mxu0 0.0
      %1094 = vmatprep.subr.mxu0 0.0
      %1095 = vmatpush1.xpose.msra.mxu0 0.0
      %1096 = vmatprep.subr.mxu0 0.0
      %1097 = vmatpush1.xpose.msra.mxu0 0.0
      %1098 = vmatprep.subr.mxu0 0.0
      %1099 = vmatpush1.xpose.msra.mxu0 0.0
      %1100 = vmatprep.subr.mxu0 0.0
      %1101 = vmatpush1.xpose.msra.mxu0 0.0
      %1102 = vmatprep.subr.mxu0 0.0
      %1103 = vmatpush1.xpose.msra.mxu0 0.0
      %1104 = vmatprep.subr.mxu0 0.0
      %1105 = vmatpush1.xpose.msra.mxu0 0.0
      %1106 = vmatprep.subr.mxu0 0.0
      %1107 = vmatpush1.xpose.msra.mxu0 0.0
      %1108 = vmatprep.subr.mxu0 0.0
      %1109 = vmatpush1.xpose.msra.mxu0 0.0
      %1110 = vmatprep.subr.mxu0 0.0
      %1111 = vmatpush1.xpose.msra.mxu0 0.0
      %1112 = vmatprep.subr.mxu0 0.0
      %1113 = vmatpush1.xpose.msra.mxu0 0.0
      %1114 = vmatprep.subr.mxu0 0.0
      %1115 = vmatpush1.xpose.msra.mxu0 0.0
      %1116 = vmatprep.subr.mxu0 0.0
      %1117 = vmatpush1.xpose.msra.mxu0 0.0
      %1118 = vmatprep.subr.mxu0 0.0
      %1119 = vmatpush1.xpose.msra.mxu0 0.0
      %1120 = vmatprep.subr.mxu0 0.0
      %1121 = vmatpush1.xpose.msra.mxu0 0.0
      %1122 = vmatprep.subr.mxu0 0.0
      %1123 = vmatpush1.xpose.msra.mxu0 0.0
      %1124 = vmatprep.subr.mxu0 0.0
      %1125 = vmatpush1.xpose.msra.mxu0 0.0
      %1126 = vmatprep.subr.mxu0 0.0
      %1127 = vmatpush1.xpose.msra.mxu0 0.0
      %1128 = vmatprep.subr.mxu0 0.0
      %1129 = vmatpush1.xpose.msra.mxu0 0.0
      %1130 = vmatprep.subr.mxu0 0.0
      %1131 = vmatpush1.xpose.msra.mxu0 0.0
      %1132 = vmatprep.subr.mxu0 0.0
      %1133 = vmatpush1.xpose.msra.mxu0 0.0
      %1134 = vmatprep.subr.mxu0 0.0
      %1135 = vmatpush1.xpose.msra.mxu0 0.0
      %1136 = vmatprep.subr.mxu0 0.0
      %1137 = vmatpush1.xpose.msra.mxu0 0.0
      %1138 = vmatprep.subr.mxu0 0.0
      %1139 = vmatpush1.xpose.msra.mxu0 0.0
      %1140 = vmatprep.subr.mxu0 0.0
      %1141 = vmatpush1.xpose.msra.mxu0 0.0
      %1142 = vmatprep.subr.mxu0 0.0
      %1143 = vmatpush1.xpose.msra.mxu0 0.0
      %1144 = vmatprep.subr.mxu0 0.0
      %1145 = vmatpush1.xpose.msra.mxu0 0.0
      %1146 = vmatprep.mubr.f32.mxu0 0.0
      %1147 = vmatmul.mubr.f32.gmra.mrb[0].mxu0 %v1078
      %v1148 = vpop.f32.mrb[0].mxu0
      %v1149 = vadd.f32 0.0, %v1148
      %v1150 = vpop.f32.mrb[0].mxu0
      %1151 = vdwg.mxu0
      %v1152 = vmul.f32 %v1149, 0.25
      %v1153 = vsel %vm432, -1e+09, %v1152
      %v1154 = vsel %vm434, %v1153, -inf
      %1155 = vmax.xlane.f32.xlu0 %v1154
      %v1156 = vpop.xlane.xlu0 %1155
      %v1157 = vsub.f32 %v1153, %v1156
      %v1158 = vmul.f32 %v1157, 1.442695
      %v1159 = vpow.pop %v1158
      %v1160 = vsel %vm434, %v1159, 0.0
      %1161 = vadd.xlane.f32.xlu0 %v1160
      %v1162 = vpop.xlane.xlu0 %1161
      %v1163 = vrcp.pop %v1162
      %v1164 = vmul.f32 %v1159, %v1163
      %1165 = vrot.lane.b32.xlu0 %v344, 80
      %v1166 = vpop.permute.xlu0 %1165
      %v1169 = vsel %vm434, %v1164, 0
      %1171 = vmatprep.subr.mxu0 0.0
      %1172 = vmatpush1.msra.mxu0 %v1166
      %1173 = vmatprep.subr.mxu0 0.0
      %1174 = vmatpush1.msra.mxu0 0.0
      %1175 = vmatprep.subr.mxu0 0.0
      %1176 = vmatpush1.msra.mxu0 0.0
      %1177 = vmatprep.subr.mxu0 0.0
      %1178 = vmatpush1.msra.mxu0 0.0
      %1179 = vmatprep.subr.mxu0 0.0
      %1180 = vmatpush1.msra.mxu0 0.0
      %1181 = vmatprep.subr.mxu0 0.0
      %1182 = vmatpush1.msra.mxu0 0.0
      %1183 = vmatprep.subr.mxu0 0.0
      %1184 = vmatpush1.msra.mxu0 0.0
      %1185 = vmatprep.subr.mxu0 0.0
      %1186 = vmatpush1.msra.mxu0 0.0
      %1187 = vmatprep.subr.mxu0 0.0
      %1188 = vmatpush1.msra.mxu0 0.0
      %1189 = vmatprep.subr.mxu0 0.0
      %1190 = vmatpush1.msra.mxu0 0.0
      %1191 = vmatprep.subr.mxu0 0.0
      %1192 = vmatpush1.msra.mxu0 0.0
      %1193 = vmatprep.subr.mxu0 0.0
      %1194 = vmatpush1.msra.mxu0 0.0
      %1195 = vmatprep.subr.mxu0 0.0
      %1196 = vmatpush1.msra.mxu0 0.0
      %1197 = vmatprep.subr.mxu0 0.0
      %1198 = vmatpush1.msra.mxu0 0.0
      %1199 = vmatprep.subr.mxu0 0.0
      %1200 = vmatpush1.msra.mxu0 0.0
      %1201 = vmatprep.subr.mxu0 0.0
      %1202 = vmatpush1.msra.mxu0 0.0
      %1203 = vmatprep.subr.mxu0 0.0
      %1204 = vmatpush1.msra.mxu0 0.0
      %1205 = vmatprep.subr.mxu0 0.0
      %1206 = vmatpush1.msra.mxu0 0.0
      %1207 = vmatprep.subr.mxu0 0.0
      %1208 = vmatpush1.msra.mxu0 0.0
      %1209 = vmatprep.subr.mxu0 0.0
      %1210 = vmatpush1.msra.mxu0 0.0
      %1211 = vmatprep.subr.mxu0 0.0
      %1212 = vmatpush1.msra.mxu0 0.0
      %1213 = vmatprep.subr.mxu0 0.0
      %1214 = vmatpush1.msra.mxu0 0.0
      %1215 = vmatprep.subr.mxu0 0.0
      %1216 = vmatpush1.msra.mxu0 0.0
      %1217 = vmatprep.subr.mxu0 0.0
      %1218 = vmatpush1.msra.mxu0 0.0
      %1219 = vmatprep.subr.mxu0 0.0
      %1220 = vmatpush1.msra.mxu0 0.0
      %1221 = vmatprep.subr.mxu0 0.0
      %1222 = vmatpush1.msra.mxu0 0.0
      %1223 = vmatprep.subr.mxu0 0.0
      %1224 = vmatpush1.msra.mxu0 0.0
      %1225 = vmatprep.subr.mxu0 0.0
      %1226 = vmatpush1.msra.mxu0 0.0
      %1227 = vmatprep.subr.mxu0 0.0
      %1228 = vmatpush1.msra.mxu0 0.0
      %1229 = vmatprep.subr.mxu0 0.0
      %1230 = vmatpush1.msra.mxu0 0.0
      %1231 = vmatprep.subr.mxu0 0.0
      %1232 = vmatpush1.msra.mxu0 0.0
      %1233 = vmatprep.subr.mxu0 0.0
      %1234 = vmatpush1.msra.mxu0 0.0
      %1235 = vmatprep.mubr.f32.mxu0 0.0
      %1236 = vmatmul.mubr.f32.gmra.mrb[0].mxu0 %v1169
      %v1237 = vpop.f32.mrb[0].mxu0
      %v1238 = vadd.f32 0.0, %v1237
      %v1239 = vpop.f32.mrb[0].mxu0
      %1240 = vdwg.mxu0
      %v1242 = vsel %vm354, %v1238, 0
      %1244 = vmatprep.subr.mxu0 0.0
      %1245 = vmatpush1.msra.mxu0 %v352
      %1246 = vmatprep.subr.mxu0 0.0
      %1247 = vmatpush1.msra.mxu0 %v353
      %1248 = vmatprep.subr.mxu0 0.0
      %1249 = vmatpush1.msra.mxu0 0.0
      %1250 = vmatprep.subr.mxu0 0.0
      %1251 = vmatpush1.msra.mxu0 0.0
      %1252 = vmatprep.subr.mxu0 0.0
      %1253 = vmatpush1.msra.mxu0 0.0
      %1254 = vmatprep.subr.mxu0 0.0
      %1255 = vmatpush1.msra.mxu0 0.0
      %1256 = vmatprep.subr.mxu0 0.0
      %1257 = vmatpush1.msra.mxu0 0.0
      %1258 = vmatprep.subr.mxu0 0.0
      %1259 = vmatpush1.msra.mxu0 0.0
      %1260 = vmatprep.subr.mxu0 0.0
      %1261 = vmatpush1.msra.mxu0 0.0
      %1262 = vmatprep.subr.mxu0 0.0
      %1263 = vmatpush1.msra.mxu0 0.0
      %1264 = vmatprep.subr.mxu0 0.0
      %1265 = vmatpush1.msra.mxu0 0.0
      %1266 = vmatprep.subr.mxu0 0.0
      %1267 = vmatpush1.msra.mxu0 0.0
      %1268 = vmatprep.subr.mxu0 0.0
      %1269 = vmatpush1.msra.mxu0 0.0
      %1270 = vmatprep.subr.mxu0 0.0
      %1271 = vmatpush1.msra.mxu0 0.0
      %1272 = vmatprep.subr.mxu0 0.0
      %1273 = vmatpush1.msra.mxu0 0.0
      %1274 = vmatprep.subr.mxu0 0.0
      %1275 = vmatpush1.msra.mxu0 0.0
      %1276 = vmatprep.subr.mxu0 0.0
      %1277 = vmatpush1.msra.mxu0 0.0
      %1278 = vmatprep.subr.mxu0 0.0
      %1279 = vmatpush1.msra.mxu0 0.0
      %1280 = vmatprep.subr.mxu0 0.0
      %1281 = vmatpush1.msra.mxu0 0.0
      %1282 = vmatprep.subr.mxu0 0.0
      %1283 = vmatpush1.msra.mxu0 0.0
      %1284 = vmatprep.subr.mxu0 0.0
      %1285 = vmatpush1.msra.mxu0 0.0
      %1286 = vmatprep.subr.mxu0 0.0
      %1287 = vmatpush1.msra.mxu0 0.0
      %1288 = vmatprep.subr.mxu0 0.0
      %1289 = vmatpush1.msra.mxu0 0.0
      %1290 = vmatprep.subr.mxu0 0.0
      %1291 = vmatpush1.msra.mxu0 0.0
      %1292 = vmatprep.subr.mxu0 0.0
      %1293 = vmatpush1.msra.mxu0 0.0
      %1294 = vmatprep.subr.mxu0 0.0
      %1295 = vmatpush1.msra.mxu0 0.0
      %1296 = vmatprep.subr.mxu0 0.0
      %1297 = vmatpush1.msra.mxu0 0.0
      %1298 = vmatprep.subr.mxu0 0.0
      %1299 = vmatpush1.msra.mxu0 0.0
      %1300 = vmatprep.subr.mxu0 0.0
      %1301 = vmatpush1.msra.mxu0 0.0
      %1302 = vmatprep.subr.mxu0 0.0
      %1303 = vmatpush1.msra.mxu0 0.0
      %1304 = vmatprep.subr.mxu0 0.0
      %1305 = vmatpush1.msra.mxu0 0.0
      %1306 = vmatprep.subr.mxu0 0.0
      %1307 = vmatpush1.msra.mxu0 0.0
      %1308 = vmatprep.mubr.f32.mxu0 0.0
      %1309 = vmatmul.mubr.f32.gmra.mrb[0].mxu0 %v1242
      %v1310 = vpop.f32.mrb[0].mxu0
      %v1311 = vadd.f32 0.0, %v1310
      %v1312 = vpop.f32.mrb[0].mxu0
      %1313 = vdwg.mxu0
      %v1314 = vadd.f32 %v1073, %v1311
      %v1315 = vld [vmem:[%s5] sm:$0x1]
      %v1317 = vlaneseq
      %v1318 = vshrl.u32 %v1317, 7
      %v1319 = vsub.s32 0, %v1318
      %v1320 = vrot.slane %v1315, %v1319
      %v1322 = vadd.f32 %v1314, %v1320
      %v1323 = vld [vmem:[%s337] sm:$0xff]
      %v1324 = vadd.f32 %v1322, %v1323
      %vm1325 = vcmask 523264
      %1326 = vst.msk [vmem:[%s341] sm:$0xff] %vm1325, %v1324
      %p1327 = scmp.lt.s32.totalorder %s18, 1
      %s1328 = scalar_select %p1327, %s18, 1
      %s1329 = smul.addr %s1328, 8
      %s1330 = scalar_lea.vmem %s7, %s1329
      // Predicated region
      $region49: #{transformer_forward.21} parent=47 // pred_check
        %p1331 = pneg %p208
      $region50: #{transformer_forward.21} parent=47 // pred_check_branch
        %1333 = sbr.rel (%p1331) target = $region52
      $region51: #{transformer_forward.21} parent=47 // pred_region
        _
      $region52: #{transformer_forward.21} parent=47 // pred_fallthru
        _
    $region48: #{transformer_forward.21} parent=5 // pred_fallthru
      _
    %p1334 = scmp.le.s32.totalorder 2, %s13
    // Predicated region
    $region53: #{transformer_forward.21} parent=5 // pred_check
      %p1335 = pneg %p1334
    $region54: #{transformer_forward.21} parent=5 // pred_check_branch
      %1337 = sbr.rel (%p1335) target = $region56
    $region55: #{transformer_forward.21} parent=5 // pred_region
      %s1338 = ssub.s32 %s13, 2
      // Predicated region
      $region57: #{transformer_forward.21} parent=55 // pred_check
        %p1339 = pneg %p214
      $region58: #{transformer_forward.21} parent=55 // pred_check_branch
        %1341 = sbr.rel (%p1339) target = $region60
      $region59: #{transformer_forward.21} parent=55 // pred_region
        %p1342 = scmp.lt.s32.totalorder %s19, 1
        %s1343 = scalar_select %p1342, %s19, 1
        %s1344 = smul.addr %s1343, 8
        %s1345 = scalar_lea.vmem %s7, %s1344
      $region60: #{transformer_forward.21} parent=55 // pred_fallthru
        _
    $region56: #{transformer_forward.21} parent=5 // pred_fallthru
      _
  $region6: #{transformer_forward.21} parent=0 // loop_footer
    %s17 = sadd.s32 1, %s13
  $region7: #{transformer_forward.21} parent=0 // loop_footer_branch
    %12 = sbr.rel target = $region3
  $region8: #{transformer_forward.21} parent=0 // loop_exit
    _

// kernel: transformer_forward.30
$region0: #{transformer_forward.30}
  #allocation0 [shape = 'u32[]', space=smem, size = 0x4, offset = 0x4, fixed_abs, tag = 'smem constant byte address 0x4 - core index']
  #allocation1 [shape = 'u32[144,128]{1,0:T(1,128)}', space=vmem, size = 0x12000, scoped, tag = 'internal scratch']
  %s0 = inlined_call_operand.vmem [shape: f32[16,64], index: 0, kind: input, shape index: {}]
  %s1 = inlined_call_operand.vmem [shape: f32[64,128], index: 1, kind: input, shape index: {}]
  %s2 = inlined_call_operand.vmem [shape: f32[1,128], index: 2, kind: input, shape index: {}]
  %s3 = inlined_call_operand.vmem [shape: f32[16,128], index: 3, kind: output, shape index: {}]
  %s4 = sld [smem:[#allocation0]]
  $region22: #{transformer_forward.30} parent=0
    _
  %s6 = ssub.s32 1, %s4
  %s7 = scalar_select 0, %s6, %s4
  // Predicated region
  $region2: #{transformer_forward.30} parent=0 // pred_check
    _
  $region3: #{transformer_forward.30} parent=0 // pred_check_branch
    %9 = sbr.rel (0) target = $region5
  $region4: #{transformer_forward.30} parent=0 // pred_region
    _
  $region5: #{transformer_forward.30} parent=0 // pred_fallthru
    _
  // Predicated region
  $region6: #{transformer_forward.30} parent=0 // pred_check
    _
  $region7: #{transformer_forward.30} parent=0 // pred_check_branch
    %11 = sbr.rel (0) target = $region9
  $region8: #{transformer_forward.30} parent=0 // pred_region
    _
  $region9: #{transformer_forward.30} parent=0 // pred_fallthru
    _
  // Predicated region
  $region10: #{transformer_forward.30} parent=0 // pred_check
    _
  $region11: #{transformer_forward.30} parent=0 // pred_check_branch
    %13 = sbr.rel (0) target = $region13
  $region12: #{transformer_forward.30} parent=0 // pred_region
    _
  $region13: #{transformer_forward.30} parent=0 // pred_fallthru
    _
  %v14 = vld [vmem:[%s0] sm:$0xff]
  %v15 = vld [vmem:[%s0 + $0x8] sm:$0xff]
  %v16 = vld [vmem:[%s1] sm:$0xff]
  %v17 = vld [vmem:[%s1 + $0x8] sm:$0xff]
  %v18 = vld [vmem:[%s1 + $0x10] sm:$0xff]
  %v19 = vld [vmem:[%s1 + $0x18] sm:$0xff]
  %v20 = vld [vmem:[%s1 + $0x20] sm:$0xff]
  %v21 = vld [vmem:[%s1 + $0x28] sm:$0xff]
  %v22 = vld [vmem:[%s1 + $0x30] sm:$0xff]
  %v23 = vld [vmem:[%s1 + $0x38] sm:$0xff]
  %v24 = vld [vmem:[%s2] sm:$0x1]
  %v26 = vlaneseq
  %v27 = vshrl.u32 %v26, 7
  %v28 = vsub.s32 0, %v27
  %v29 = vrot.slane %v24, %v28
  %vm31 = vcmask 523264
  %v33 = vsel %vm31, %v14, 0
  %v36 = vsel %vm31, %v15, 0
  %38 = vmatprep.subr.mxu0 0.0
  %39 = vmatpush1.msra.mxu0 %v16
  %40 = vmatprep.subr.mxu0 0.0
  %41 = vmatpush1.msra.mxu0 %v17
  %42 = vmatprep.subr.mxu0 0.0
  %43 = vmatpush1.msra.mxu0 %v18
  %44 = vmatprep.subr.mxu0 0.0
  %45 = vmatpush1.msra.mxu0 %v19
  %46 = vmatprep.subr.mxu0 0.0
  %47 = vmatpush1.msra.mxu0 %v20
  %48 = vmatprep.subr.mxu0 0.0
  %49 = vmatpush1.msra.mxu0 %v21
  %50 = vmatprep.subr.mxu0 0.0
  %51 = vmatpush1.msra.mxu0 %v22
  %52 = vmatprep.subr.mxu0 0.0
  %53 = vmatpush1.msra.mxu0 %v23
  %54 = vmatprep.subr.mxu0 0.0
  %55 = vmatpush1.msra.mxu0 0.0
  %56 = vmatprep.subr.mxu0 0.0
  %57 = vmatpush1.msra.mxu0 0.0
  %58 = vmatprep.subr.mxu0 0.0
  %59 = vmatpush1.msra.mxu0 0.0
  %60 = vmatprep.subr.mxu0 0.0
  %61 = vmatpush1.msra.mxu0 0.0
  %62 = vmatprep.subr.mxu0 0.0
  %63 = vmatpush1.msra.mxu0 0.0
  %64 = vmatprep.subr.mxu0 0.0
  %65 = vmatpush1.msra.mxu0 0.0
  %66 = vmatprep.subr.mxu0 0.0
  %67 = vmatpush1.msra.mxu0 0.0
  %68 = vmatprep.subr.mxu0 0.0
  %69 = vmatpush1.msra.mxu0 0.0
  %70 = vmatprep.subr.mxu0 0.0
  %71 = vmatpush1.msra.mxu0 0.0
  %72 = vmatprep.subr.mxu0 0.0
  %73 = vmatpush1.msra.mxu0 0.0
  %74 = vmatprep.subr.mxu0 0.0
  %75 = vmatpush1.msra.mxu0 0.0
  %76 = vmatprep.subr.mxu0 0.0
  %77 = vmatpush1.msra.mxu0 0.0
  %78 = vmatprep.subr.mxu0 0.0
  %79 = vmatpush1.msra.mxu0 0.0
  %80 = vmatprep.subr.mxu0 0.0
  %81 = vmatpush1.msra.mxu0 0.0
  %82 = vmatprep.subr.mxu0 0.0
  %83 = vmatpush1.msra.mxu0 0.0
  %84 = vmatprep.subr.mxu0 0.0
  %85 = vmatpush1.msra.mxu0 0.0
  %86 = vmatprep.subr.mxu0 0.0
  %87 = vmatpush1.msra.mxu0 0.0
  %88 = vmatprep.subr.mxu0 0.0
  %89 = vmatpush1.msra.mxu0 0.0
  %90 = vmatprep.subr.mxu0 0.0
  %91 = vmatpush1.msra.mxu0 0.0
  %92 = vmatprep.subr.mxu0 0.0
  %93 = vmatpush1.msra.mxu0 0.0
  %94 = vmatprep.subr.mxu0 0.0
  %95 = vmatpush1.msra.mxu0 0.0
  %96 = vmatprep.subr.mxu0 0.0
  %97 = vmatpush1.msra.mxu0 0.0
  %98 = vmatprep.subr.mxu0 0.0
  %99 = vmatpush1.msra.mxu0 0.0
  %100 = vmatprep.subr.mxu0 0.0
  %101 = vmatpush1.msra.mxu0 0.0
  %102 = vmatprep.mubr.f32.mxu0 0.0
  %103 = vmatmul.mubr.f32.gmra.mrb[0].mxu0 %v33
  %v104 = vpop.f32.mrb[0].mxu0
  %v105 = vadd.f32 %v29, %v104
  %v106 = vpop.f32.mrb[0].mxu0
  %107 = vmatprep.mubr.f32.mxu0 0.0
  %108 = vmatmul.mubr.f32.gmra.mrb[0].mxu0 %v36
  %v109 = vpop.f32.mrb[0].mxu0
  %v110 = vadd.f32 %v29, %v109
  %v111 = vpop.f32.mrb[0].mxu0
  %112 = vdwg.mxu0
  %113 = vst [vmem:[%s3] sm:$0xff] %v105
  %114 = vst [vmem:[%s3 + $0x8] sm:$0xff] %v110
  // Predicated region
  $region14: #{transformer_forward.30} parent=0 // pred_check
    _
  $region15: #{transformer_forward.30} parent=0 // pred_check_branch
    %116 = sbr.rel (0) target = $region17
  $region16: #{transformer_forward.30} parent=0 // pred_region
    _
  $region17: #{transformer_forward.30} parent=0 // pred_fallthru
    _
  // Predicated region
  $region18: #{transformer_forward.30} parent=0 // pred_check
    _
  $region19: #{transformer_forward.30} parent=0 // pred_check_branch
    %118 = sbr.rel (0) target = $region21
  $region20: #{transformer_forward.30} parent=0 // pred_region
    _
  $region21: #{transformer_forward.30} parent=0 // pred_fallthru
    _

// kernel: transformer_forward.29
$region0: #{transformer_forward.29}
  #allocation0 [shape = 'u32[]', space=smem, size = 0x4, offset = 0x4, fixed_abs, tag = 'smem constant byte address 0x4 - core index']
  #allocation1 [shape = 'u32[144,128]{1,0:T(1,128)}', space=vmem, size = 0x12000, scoped, tag = 'internal scratch']
  %s0 = inlined_call_operand.vmem [shape: f32[16,64], index: 0, kind: input, shape index: {}]
  %s1 = inlined_call_operand.vmem [shape: f32[1,64], index: 1, kind: input, shape index: {}]
  %s2 = inlined_call_operand.vmem [shape: f32[1,64], index: 2, kind: input, shape index: {}]
  %s3 = inlined_call_operand.vmem [shape: f32[64,64], index: 3, kind: input, shape index: {}]
  %s4 = inlined_call_operand.vmem [shape: f32[1,64], index: 4, kind: input, shape index: {}]
  %s5 = inlined_call_operand.vmem [shape: f32[16,64], index: 5, kind: output, shape index: {}]
  %s6 = sld [smem:[#allocation0]]
  $region30: #{transformer_forward.29} parent=0
    _
  %s8 = ssub.s32 1, %s6
  %s9 = scalar_select 0, %s8, %s6
  // Predicated region
  $region2: #{transformer_forward.29} parent=0 // pred_check
    _
  $region3: #{transformer_forward.29} parent=0 // pred_check_branch
    %11 = sbr.rel (0) target = $region5
  $region4: #{transformer_forward.29} parent=0 // pred_region
    _
  $region5: #{transformer_forward.29} parent=0 // pred_fallthru
    _
  // Predicated region
  $region6: #{transformer_forward.29} parent=0 // pred_check
    _
  $region7: #{transformer_forward.29} parent=0 // pred_check_branch
    %13 = sbr.rel (0) target = $region9
  $region8: #{transformer_forward.29} parent=0 // pred_region
    _
  $region9: #{transformer_forward.29} parent=0 // pred_fallthru
    _
  // Predicated region
  $region10: #{transformer_forward.29} parent=0 // pred_check
    _
  $region11: #{transformer_forward.29} parent=0 // pred_check_branch
    %15 = sbr.rel (0) target = $region13
  $region12: #{transformer_forward.29} parent=0 // pred_region
    _
  $region13: #{transformer_forward.29} parent=0 // pred_fallthru
    _
  // Predicated region
  $region14: #{transformer_forward.29} parent=0 // pred_check
    _
  $region15: #{transformer_forward.29} parent=0 // pred_check_branch
    %17 = sbr.rel (0) target = $region17
  $region16: #{transformer_forward.29} parent=0 // pred_region
    _
  $region17: #{transformer_forward.29} parent=0 // pred_fallthru
    _
  // Predicated region
  $region18: #{transformer_forward.29} parent=0 // pred_check
    _
  $region19: #{transformer_forward.29} parent=0 // pred_check_branch
    %19 = sbr.rel (0) target = $region21
  $region20: #{transformer_forward.29} parent=0 // pred_region
    _
  $region21: #{transformer_forward.29} parent=0 // pred_fallthru
    _
  %v20 = vld [vmem:[%s0] sm:$0xff]
  %v21 = vld [vmem:[%s0 + $0x8] sm:$0xff]
  %v22 = vld [vmem:[%s1] sm:$0x1]
  %v23 = vld [vmem:[%s2] sm:$0x1]
  %vm24 = vcmask 523264
  %v25 = vsel %vm24, %v20, 0.0
  %26 = vadd.xlane.f32.xlu0 %v25
  %v27 = vpop.xlane.xlu0 %26
  %v28 = vsel %vm24, %v21, 0.0
  %29 = vadd.xlane.f32.xlu0 %v28
  %v30 = vpop.xlane.xlu0 %29
  %v31 = vrcp.pop 64.0
  %v32 = vmul.f32 %v27, %v31
  %v33 = vmul.f32 %v30, %v31
  %v34 = vsub.f32 %v20, %v32
  %v35 = vsub.f32 %v21, %v33
  %v36 = vmul.f32 %v34, %v34
  %v37 = vmul.f32 %v35, %v35
  %v38 = vsel %vm24, %v36, 0.0
  %39 = vadd.xlane.f32.xlu0 %v38
  %v40 = vpop.xlane.xlu0 %39
  %v41 = vsel %vm24, %v37, 0.0
  %42 = vadd.xlane.f32.xlu0 %v41
  %v43 = vpop.xlane.xlu0 %42
  %v44 = vmul.f32 %v40, 0.015873017
  %v45 = vmul.f32 %v43, 0.015873017
  %v46 = vrsqrt.pop %v44
  %v47 = vmul.f32 %v44, %v46
  %vm48 = vcmp.eq.f32.partialorder %v44, inf
  %v49 = vsel %vm48, %v44, %v47
  %vm50 = vcmp.eq.f32.partialorder %v44, 0.0
  %v51 = vand.u32 %v44, 2147483648
  %v52 = vsel %vm50, %v51, %v49
  %v53 = vrsqrt.pop %v45
  %v54 = vmul.f32 %v45, %v53
  %vm55 = vcmp.eq.f32.partialorder %v45, inf
  %v56 = vsel %vm55, %v45, %v54
  %vm57 = vcmp.eq.f32.partialorder %v45, 0.0
  %v58 = vand.u32 %v45, 2147483648
  %v59 = vsel %vm57, %v58, %v56
  %v60 = vadd.f32 %v52, 1e-06
  %v61 = vadd.f32 %v59, 1e-06
  %v62 = vrcp.pop %v60
  %v63 = vrcp.pop %v61
  %v65 = vlaneseq
  %v66 = vshrl.u32 %v65, 7
  %v67 = vsub.s32 0, %v66
  %v68 = vrot.slane %v22, %v67
  %v70 = vmul.f32 %v68, %v34
  %v71 = vmul.f32 %v68, %v35
  %v72 = vmul.f32 %v70, %v62
  %v73 = vmul.f32 %v71, %v63
  %v75 = vlaneseq
  %v76 = vshrl.u32 %v75, 7
  %v77 = vsub.s32 0, %v76
  %v78 = vrot.slane %v23, %v77
  %v80 = vadd.f32 %v72, %v78
  %v81 = vadd.f32 %v73, %v78
  %v82 = vld [vmem:[%s3] sm:$0xff]
  %v83 = vld [vmem:[%s3 + $0x8] sm:$0xff]
  %v84 = vld [vmem:[%s3 + $0x10] sm:$0xff]
  %v85 = vld [vmem:[%s3 + $0x18] sm:$0xff]
  %v86 = vld [vmem:[%s3 + $0x20] sm:$0xff]
  %v87 = vld [vmem:[%s3 + $0x28] sm:$0xff]
  %v88 = vld [vmem:[%s3 + $0x30] sm:$0xff]
  %v89 = vld [vmem:[%s3 + $0x38] sm:$0xff]
  %v90 = vld [vmem:[%s4] sm:$0x1]
  %v92 = vlaneseq
  %v93 = vshrl.u32 %v92, 7
  %v94 = vsub.s32 0, %v93
  %v95 = vrot.slane %v90, %v94
  %v98 = vsel %vm24, %v80, 0
  %v101 = vsel %vm24, %v81, 0
  %103 = vmatprep.subr.mxu0 0.0
  %104 = vmatpush1.msra.mxu0 %v82
  %105 = vmatprep.subr.mxu0 0.0
  %106 = vmatpush1.msra.mxu0 %v83
  %107 = vmatprep.subr.mxu0 0.0
  %108 = vmatpush1.msra.mxu0 %v84
  %109 = vmatprep.subr.mxu0 0.0
  %110 = vmatpush1.msra.mxu0 %v85
  %111 = vmatprep.subr.mxu0 0.0
  %112 = vmatpush1.msra.mxu0 %v86
  %113 = vmatprep.subr.mxu0 0.0
  %114 = vmatpush1.msra.mxu0 %v87
  %115 = vmatprep.subr.mxu0 0.0
  %116 = vmatpush1.msra.mxu0 %v88
  %117 = vmatprep.subr.mxu0 0.0
  %118 = vmatpush1.msra.mxu0 %v89
  %119 = vmatprep.subr.mxu0 0.0
  %120 = vmatpush1.msra.mxu0 0.0
  %121 = vmatprep.subr.mxu0 0.0
  %122 = vmatpush1.msra.mxu0 0.0
  %123 = vmatprep.subr.mxu0 0.0
  %124 = vmatpush1.msra.mxu0 0.0
  %125 = vmatprep.subr.mxu0 0.0
  %126 = vmatpush1.msra.mxu0 0.0
  %127 = vmatprep.subr.mxu0 0.0
  %128 = vmatpush1.msra.mxu0 0.0
  %129 = vmatprep.subr.mxu0 0.0
  %130 = vmatpush1.msra.mxu0 0.0
  %131 = vmatprep.subr.mxu0 0.0
  %132 = vmatpush1.msra.mxu0 0.0
  %133 = vmatprep.subr.mxu0 0.0
  %134 = vmatpush1.msra.mxu0 0.0
  %135 = vmatprep.subr.mxu0 0.0
  %136 = vmatpush1.msra.mxu0 0.0
  %137 = vmatprep.subr.mxu0 0.0
  %138 = vmatpush1.msra.mxu0 0.0
  %139 = vmatprep.subr.mxu0 0.0
  %140 = vmatpush1.msra.mxu0 0.0
  %141 = vmatprep.subr.mxu0 0.0
  %142 = vmatpush1.msra.mxu0 0.0
  %143 = vmatprep.subr.mxu0 0.0
  %144 = vmatpush1.msra.mxu0 0.0
  %145 = vmatprep.subr.mxu0 0.0
  %146 = vmatpush1.msra.mxu0 0.0
  %147 = vmatprep.subr.mxu0 0.0
  %148 = vmatpush1.msra.mxu0 0.0
  %149 = vmatprep.subr.mxu0 0.0
  %150 = vmatpush1.msra.mxu0 0.0
  %151 = vmatprep.subr.mxu0 0.0
  %152 = vmatpush1.msra.mxu0 0.0
  %153 = vmatprep.subr.mxu0 0.0
  %154 = vmatpush1.msra.mxu0 0.0
  %155 = vmatprep.subr.mxu0 0.0
  %156 = vmatpush1.msra.mxu0 0.0
  %157 = vmatprep.subr.mxu0 0.0
  %158 = vmatpush1.msra.mxu0 0.0
  %159 = vmatprep.subr.mxu0 0.0
  %160 = vmatpush1.msra.mxu0 0.0
  %161 = vmatprep.subr.mxu0 0.0
  %162 = vmatpush1.msra.mxu0 0.0
  %163 = vmatprep.subr.mxu0 0.0
  %164 = vmatpush1.msra.mxu0 0.0
  %165 = vmatprep.subr.mxu0 0.0
  %166 = vmatpush1.msra.mxu0 0.0
  %167 = vmatprep.mubr.f32.mxu0 0.0
  %168 = vmatmul.mubr.f32.gmra.mrb[0].mxu0 %v98
  %v169 = vpop.f32.mrb[0].mxu0
  %v170 = vadd.f32 %v95, %v169
  %v171 = vpop.f32.mrb[0].mxu0
  %172 = vmatprep.mubr.f32.mxu0 0.0
  %173 = vmatmul.mubr.f32.gmra.mrb[0].mxu0 %v101
  %v174 = vpop.f32.mrb[0].mxu0
  %v175 = vadd.f32 %v95, %v174
  %v176 = vpop.f32.mrb[0].mxu0
  %177 = vdwg.mxu0
  %178 = vst.msk [vmem:[%s5] sm:$0xff] %vm24, %v170
  %179 = vst.msk [vmem:[%s5 + $0x8] sm:$0xff] %vm24, %v175
  // Predicated region
  $region22: #{transformer_forward.29} parent=0 // pred_check
    _
  $region23: #{transformer_forward.29} parent=0 // pred_check_branch
    %181 = sbr.rel (0) target = $region25
  $region24: #{transformer_forward.29} parent=0 // pred_region
    _
  $region25: #{transformer_forward.29} parent=0 // pred_fallthru
    _
  // Predicated region
  $region26: #{transformer_forward.29} parent=0 // pred_check
    _
  $region27: #{transformer_forward.29} parent=0 // pred_check_branch
    %183 = sbr.rel (0) target = $region29
  $region28: #{transformer_forward.29} parent=0 // pred_region
    _
  $region29: #{transformer_forward.29} parent=0 // pred_fallthru
    _

// kernel: transformer_forward.39
$region0: #{transformer_forward.39}
  #allocation0 [shape = 'u32[]', space=smem, size = 0x4, offset = 0x4, fixed_abs, tag = 'smem constant byte address 0x4 - core index']
  #allocation1 [shape = 'u32[144,128]{1,0:T(1,128)}', space=vmem, size = 0x12000, scoped, tag = 'internal scratch']
  %s0 = inlined_call_operand.vmem [shape: f32[16,64], index: 0, kind: input, shape index: {}]
  %s1 = inlined_call_operand.vmem [shape: f32[1,64], index: 1, kind: input, shape index: {}]
  %s2 = inlined_call_operand.vmem [shape: f32[1,64], index: 2, kind: input, shape index: {}]
  %s3 = inlined_call_operand.hbm [shape: f32[16,64], index: 3, kind: output, shape index: {}]
  %s4 = sld [smem:[#allocation0]]
  $region22: #{transformer_forward.39} parent=0
    _
  %s6 = ssub.s32 1, %s4
  %s7 = scalar_select 0, %s6, %s4
  $region1: #{transformer_forward.39} parent=0
    #allocation2 [shape = 'u8[8192]{0}', space=vmem, size = 0x2000, scoped, tag = 'output window, operand 0, single buffered']
    #allocation3 [shape = 's32[1]{0}', space=sflag, size = 0x4, scoped, tag = 'scoped memory for transformer_forward.39']
    %8 = vsyncpa [#allocation3], 0
    // Predicated region
    $region2: #{transformer_forward.39} parent=1 // pred_check
      _
    $region3: #{transformer_forward.39} parent=1 // pred_check_branch
      %10 = sbr.rel (0) target = $region5
    $region4: #{transformer_forward.39} parent=1 // pred_region
      _
    $region5: #{transformer_forward.39} parent=1 // pred_fallthru
      _
    // Predicated region
    $region6: #{transformer_forward.39} parent=1 // pred_check
      _
    $region7: #{transformer_forward.39} parent=1 // pred_check_branch
      %12 = sbr.rel (0) target = $region9
    $region8: #{transformer_forward.39} parent=1 // pred_region
      _
    $region9: #{transformer_forward.39} parent=1 // pred_fallthru
      _
    // Predicated region
    $region10: #{transformer_forward.39} parent=1 // pred_check
      _
    $region11: #{transformer_forward.39} parent=1 // pred_check_branch
      %14 = sbr.rel (0) target = $region13
    $region12: #{transformer_forward.39} parent=1 // pred_region
      _
    $region13: #{transformer_forward.39} parent=1 // pred_fallthru
      _
    %v15 = vld [vmem:[%s0] sm:$0xff]
    %v16 = vld [vmem:[%s0 + $0x8] sm:$0xff]
    %v17 = vld [vmem:[%s1] sm:$0x1]
    %v18 = vld [vmem:[%s2] sm:$0x1]
    %vm19 = vcmask 523264
    %v20 = vsel %vm19, %v15, 0.0
    %21 = vadd.xlane.f32.xlu0 %v20
    %v22 = vpop.xlane.xlu0 %21
    %v23 = vsel %vm19, %v16, 0.0
    %24 = vadd.xlane.f32.xlu0 %v23
    %v25 = vpop.xlane.xlu0 %24
    %v26 = vrcp.pop 64.0
    %v27 = vmul.f32 %v22, %v26
    %v28 = vmul.f32 %v25, %v26
    %v29 = vsub.f32 %v15, %v27
    %v30 = vsub.f32 %v16, %v28
    %v31 = vmul.f32 %v29, %v29
    %v32 = vmul.f32 %v30, %v30
    %v33 = vsel %vm19, %v31, 0.0
    %34 = vadd.xlane.f32.xlu0 %v33
    %v35 = vpop.xlane.xlu0 %34
    %v36 = vsel %vm19, %v32, 0.0
    %37 = vadd.xlane.f32.xlu0 %v36
    %v38 = vpop.xlane.xlu0 %37
    %v39 = vmul.f32 %v35, 0.015873017
    %v40 = vmul.f32 %v38, 0.015873017
    %v41 = vrsqrt.pop %v39
    %v42 = vmul.f32 %v39, %v41
    %vm43 = vcmp.eq.f32.partialorder %v39, inf
    %v44 = vsel %vm43, %v39, %v42
    %vm45 = vcmp.eq.f32.partialorder %v39, 0.0
    %v46 = vand.u32 %v39, 2147483648
    %v47 = vsel %vm45, %v46, %v44
    %v48 = vrsqrt.pop %v40
    %v49 = vmul.f32 %v40, %v48
    %vm50 = vcmp.eq.f32.partialorder %v40, inf
    %v51 = vsel %vm50, %v40, %v49
    %vm52 = vcmp.eq.f32.partialorder %v40, 0.0
    %v53 = vand.u32 %v40, 2147483648
    %v54 = vsel %vm52, %v53, %v51
    %v55 = vadd.f32 %v47, 1e-06
    %v56 = vadd.f32 %v54, 1e-06
    %v57 = vrcp.pop %v55
    %v58 = vrcp.pop %v56
    %v60 = vlaneseq
    %v61 = vshrl.u32 %v60, 7
    %v62 = vsub.s32 0, %v61
    %v63 = vrot.slane %v17, %v62
    %v65 = vmul.f32 %v63, %v29
    %v66 = vmul.f32 %v63, %v30
    %v67 = vmul.f32 %v65, %v57
    %v68 = vmul.f32 %v66, %v58
    %v70 = vlaneseq
    %v71 = vshrl.u32 %v70, 7
    %v72 = vsub.s32 0, %v71
    %v73 = vrot.slane %v18, %v72
    %v75 = vadd.f32 %v67, %v73
    %v76 = vadd.f32 %v68, %v73
    %77 = vst.msk [vmem:[#allocation2] sm:$0xff] %vm19, %v75
    %78 = vst.msk [vmem:[#allocation2 + $0x8] sm:$0xff] %vm19, %v76
    // Predicated region
    $region14: #{transformer_forward.39} parent=1 // pred_check
      _
    $region15: #{transformer_forward.39} parent=1 // pred_check_branch
      %80 = sbr.rel (0) target = $region17
    $region16: #{transformer_forward.39} parent=1 // pred_region
      %s82 = ssub.s32 256, 256
      %83 = vsyncadd [#allocation3], %s82
      %s84 = sshll.u32 [#allocation2], 4
      %s85 = int_to_ptr.vmem [resolvable:$true] %s84
      %90 = dma.vmem_to_hbm [thread:$0]  %s85, 256, %s3, [#allocation3], 128, 128, 8
    $region17: #{transformer_forward.39} parent=1 // pred_fallthru
      _
    // Predicated region
    $region18: #{transformer_forward.39} parent=1 // pred_check
      _
    $region19: #{transformer_forward.39} parent=1 // pred_check_branch
      %92 = sbr.rel (0) target = $region21
    $region20: #{transformer_forward.39} parent=1 // pred_region
      %93 = dma.done [#allocation3], 256
    $region21: #{transformer_forward.39} parent=1 // pred_fallthru
      _
    %94 = vsyncpa [#allocation3], 1

</llo_original>
